<compile_context>
chip_gen: v7x
topology: tpu7x:2x2x1
jax: 0.10.0
libtpu: 0.0.40
codegen_flags: <defaults>
</compile_context>

<pallas_src>
import functools

import jax
import jax.numpy as jnp
from jax.experimental import pallas as pl
from jax.experimental.pallas import tpu as pltpu

_EPS = 1e-5  # PyTorch InstanceNorm2d default


def _reflect_pad_into(pad_ref, a, H, W):
    """Write ReflectionPad2d(1)(a) into the (H+2, W+2, C) VMEM scratch."""
    pad_ref[1:H + 1, 1:W + 1, :] = a                      # interior
    pad_ref[0:1, 1:W + 1, :] = a[1:2]                     # top row  <- row 1
    pad_ref[H + 1:H + 2, 1:W + 1, :] = a[H - 2:H - 1]     # bottom   <- row H-2
    pad_ref[:, 0:1, :] = pad_ref[:, 2:3, :]               # left col (incl. corners)
    pad_ref[:, W + 1:W + 2, :] = pad_ref[:, W - 1:W, :]   # right col


def _resnet_block_kernel(x_ref, w1_ref, w2_ref, out_ref, pad_ref, *,
                         H, W, C, mm_dtype):
    """One grid step = one batch image, fully fused ResnetBlock forward.

    x_ref:   (1, H, W, C)   input image (also the residual)
    w*_ref:  (9*C, C)       conv weights, tap-major (dy, dx, cin) rows
    out_ref: (1, H, W, C)
    pad_ref: (H+2, W+2, C)  f32 VMEM scratch reused for both reflection pads
    """
    xs = x_ref[0].astype(jnp.float32)                     # (H, W, C), residual
    w1 = w1_ref[...].astype(mm_dtype)
    w2 = w2_ref[...].astype(mm_dtype)

    def conv3x3_im2col(w9):
        # Reads the reflection-padded image from pad_ref; builds the im2col
        # buffer (H*W, 9C) once and does a single MXU matmul (K = 9C).
        xp = pad_ref[...]                                  # (H+2, W+2, C) f32
        cols = [xp[dy:dy + H, dx:dx + W, :].reshape(H * W, C)
                for dy in range(3) for dx in range(3)]
        patches = jnp.concatenate(cols, axis=-1)           # (H*W, 9C) f32
        return jnp.dot(patches.astype(mm_dtype), w9,
                       preferred_element_type=jnp.float32)  # (H*W, C) f32

    def instance_norm(a):
        # Per-channel stats over spatial dims, single pass (E[x^2] - mean^2).
        inv_hw = 1.0 / (H * W)
        mean = jnp.sum(a, axis=0, keepdims=True) * inv_hw
        var = jnp.sum(a * a, axis=0, keepdims=True) * inv_hw - mean * mean
        return (a - mean) * jax.lax.rsqrt(var + _EPS)

    # ---- stage 1: reflect-pad -> conv1 -> IN -> ReLU (bias is a no-op) ----
    _reflect_pad_into(pad_ref, xs, H, W)
    y = jnp.maximum(instance_norm(conv3x3_im2col(w1)), 0.0).reshape(H, W, C)

    # ---- stage 2: reflect-pad(y) into same scratch -> conv2 -> IN ---------
    _reflect_pad_into(pad_ref, y, H, W)
    z = instance_norm(conv3x3_im2col(w2)).reshape(H, W, C)

    # ---- residual add (f32) and store -------------------------------------
    out_ref[0] = (xs + z).astype(out_ref.dtype)


def resnet_block_forward(x_nchw, w1_hwio, b1, w2_hwio, b2, *, use_bf16_mm=True):
    """x_nchw: (N, C, H, W) float32. Weights HWIO (3,3,C,C), biases (1,C).

    Biases are accepted for parity with nn.Conv2d(..., bias=True) but are not
    used: InstanceNorm2d(affine=False) subtracts the per-channel mean, which
    cancels the bias exactly.
    """
    del b1, b2
    N, C, H, W = x_nchw.shape
    x = jnp.transpose(x_nchw, (0, 2, 3, 1))                # NHWC, C on lanes
    mm_dtype = jnp.bfloat16 if use_bf16_mm else x.dtype
    # Tap-major (dy, dx, cin) weight layout for the im2col matmul; stored in
    # HBM as bf16 (half the weight traffic), accumulation stays f32.
    w1 = w1_hwio.reshape(9 * C, C).astype(mm_dtype)
    w2 = w2_hwio.reshape(9 * C, C).astype(mm_dtype)

    kern = functools.partial(_resnet_block_kernel, H=H, W=W, C=C,
                             mm_dtype=mm_dtype)
    out = pl.pallas_call(
        kern,
        out_shape=jax.ShapeDtypeStruct((N, H, W, C), x.dtype),
        grid=(N,),
        in_specs=[
            pl.BlockSpec((1, H, W, C), lambda n: (n, 0, 0, 0)),
            pl.BlockSpec((9 * C, C), lambda n: (0, 0)),
            pl.BlockSpec((9 * C, C), lambda n: (0, 0)),
        ],
        out_specs=pl.BlockSpec((1, H, W, C), lambda n: (n, 0, 0, 0)),
        scratch_shapes=[pltpu.VMEM((H + 2, W + 2, C), jnp.float32)],
        compiler_params=pltpu.CompilerParams(
            dimension_semantics=("parallel",),     # batch across cores (v7x)
            vmem_limit_bytes=64 * 1024 * 1024,     # raise default scoped limit
        ),
    )(x, w1, w2)
    return jnp.transpose(out, (0, 3, 1, 2))                # back to NCHW


def _reference_forward(x_nchw, w1, b1, w2, b2):
    """Pure-JAX f32 reference with the exact module semantics (incl. bias)."""
    def conv_in(x, w, b, relu):
        xpad = jnp.pad(x, ((0, 0), (1, 1), (1, 1), (0, 0)), mode="reflect")
        y = jax.lax.conv_general_dilated(
            xpad, w, window_strides=(1, 1), padding="VALID",
            dimension_numbers=("NHWC", "HWIO", "NHWC"))
        y = y + b.reshape(1, 1, 1, -1)
        mean = jnp.mean(y, axis=(1, 2), keepdims=True)
        var = jnp.mean((y - mean) ** 2, axis=(1, 2), keepdims=True)
        y = (y - mean) * jax.lax.rsqrt(var + _EPS)
        return jnp.maximum(y, 0.0) if relu else y

    x = jnp.transpose(x_nchw, (0, 2, 3, 1))
    y = conv_in(x, w1, b1, True)
    y = conv_in(y, w2, b2, False)
    return jnp.transpose(x + y, (0, 3, 1, 2))


if __name__ == "__main__":
    N, C, H, W = 2, 4, 16, 16
    key = jax.random.PRNGKey(0)
    kx, kw1, kb1, kw2, kb2 = jax.random.split(key, 5)

    x = jax.random.normal(kx, (N, C, H, W), jnp.float32)
    # Deterministic synthetic parameters (nn.Conv2d(dim, dim, 3, bias=True) x2).
    w1 = jax.random.normal(kw1, (3, 3, C, C), jnp.float32) * 0.1
    b1 = jax.random.normal(kb1, (1, C), jnp.float32) * 0.1
    w2 = jax.random.normal(kw2, (3, 3, C, C), jnp.float32) * 0.1
    b2 = jax.random.normal(kb2, (1, C), jnp.float32) * 0.1

    ref = jax.block_until_ready(_reference_forward(x, w1, b1, w2, b2))

    # f32-MXU path: tight parity with the module semantics (also demonstrates
    # that dropping the bias is numerically a no-op under InstanceNorm).
    out_f32 = jax.block_until_ready(
        resnet_block_forward(x, w1, b1, w2, b2, use_bf16_mm=False))
    assert out_f32.shape == (N, C, H, W)
    assert jnp.allclose(out_f32, ref, atol=1e-4, rtol=1e-4), "f32 mismatch"

    # Default bf16-MXU path: operands rounded to bf16 for ~2x MXU throughput,
    # IN statistics / normalization / residual in f32 -> looser tolerance.
    out = jax.block_until_ready(resnet_block_forward(x, w1, b1, w2, b2))
    assert out.shape == (N, C, H, W)
    assert jnp.allclose(out, ref, atol=5e-2, rtol=5e-2), "bf16 mismatch"

    print("KERNEL_OK")
</pallas_src>

<mosaic_0001>
module attributes {stable_mosaic.version = 11 : i64} {
  func.func @_resnet_block_kernel(%arg0: i32, %arg1: memref<1x16x16x4xf32, #tpu.memory_space<vmem>>, %arg2: memref<36x4xf32, #tpu.memory_space<vmem>>, %arg3: memref<36x4xf32, #tpu.memory_space<vmem>>, %arg4: memref<1x16x16x4xf32, #tpu.memory_space<vmem>>, %arg5: memref<18x18x4xf32, #tpu.memory_space<vmem>>) attributes {dimension_semantics = [#tpu.dimension_semantics<parallel>], iteration_bounds = array<i64: 2>, scalar_prefetch = 0 : i64, scratch_operands = 1 : i64, tpu.core_type = #tpu.core_type<tc>, window_params = [{transform_indices = @transform_0, window_bounds = array<i64: 1, 16, 16, 4>}, {pipeline_mode = #tpu.pipeline_mode<synchronous>, transform_indices = @transform_1, window_bounds = array<i64: 36, 4>}, {pipeline_mode = #tpu.pipeline_mode<synchronous>, transform_indices = @transform_2, window_bounds = array<i64: 36, 4>}, {transform_indices = @transform_3, window_bounds = array<i64: 1, 16, 16, 4>}]} {
    %c0 = arith.constant 0 : index
    %c0_0 = arith.constant 0 : index
    %c0_1 = arith.constant 0 : index
    %c0_2 = arith.constant 0 : index
    %0 = vector.load %arg1[%c0, %c0_0, %c0_1, %c0_2] : memref<1x16x16x4xf32, #tpu.memory_space<vmem>>, vector<1x16x16x4xf32>
    %1 = vector.shape_cast %0 : vector<1x16x16x4xf32> to vector<16x16x4xf32>
    %c0_3 = arith.constant 0 : index
    %c0_4 = arith.constant 0 : index
    %2 = vector.load %arg2[%c0_3, %c0_4] : memref<36x4xf32, #tpu.memory_space<vmem>>, vector<36x4xf32>
    %c0_5 = arith.constant 0 : index
    %c0_6 = arith.constant 0 : index
    %3 = vector.load %arg3[%c0_5, %c0_6] : memref<36x4xf32, #tpu.memory_space<vmem>>, vector<36x4xf32>
    %c1 = arith.constant 1 : index
    %c1_7 = arith.constant 1 : index
    %c0_8 = arith.constant 0 : index
    %4 = vector.load %arg5[%c1, %c1_7, %c0_8] : memref<18x18x4xf32, #tpu.memory_space<vmem>>, vector<16x16x4xf32>
    tpu.vector_store %arg5[%c1, %c1_7, %c0_8], %1 {strides = array<i32>} : memref<18x18x4xf32, #tpu.memory_space<vmem>>, vector<16x16x4xf32>,
    %5 = vector.extract_strided_slice %1 {offsets = [1, 0, 0], sizes = [1, 16, 4], strides = [1, 1, 1]} : vector<16x16x4xf32> to vector<1x16x4xf32>
    %c0_9 = arith.constant 0 : index
    %c1_10 = arith.constant 1 : index
    %c0_11 = arith.constant 0 : index
    %6 = vector.load %arg5[%c0_9, %c1_10, %c0_11] : memref<18x18x4xf32, #tpu.memory_space<vmem>>, vector<1x16x4xf32>
    tpu.vector_store %arg5[%c0_9, %c1_10, %c0_11], %5 {strides = array<i32>} : memref<18x18x4xf32, #tpu.memory_space<vmem>>, vector<1x16x4xf32>,
    %7 = vector.extract_strided_slice %1 {offsets = [14, 0, 0], sizes = [1, 16, 4], strides = [1, 1, 1]} : vector<16x16x4xf32> to vector<1x16x4xf32>
    %c17 = arith.constant 17 : index
    %c1_12 = arith.constant 1 : index
    %c0_13 = arith.constant 0 : index
    %8 = vector.load %arg5[%c17, %c1_12, %c0_13] : memref<18x18x4xf32, #tpu.memory_space<vmem>>, vector<1x16x4xf32>
    tpu.vector_store %arg5[%c17, %c1_12, %c0_13], %7 {strides = array<i32>} : memref<18x18x4xf32, #tpu.memory_space<vmem>>, vector<1x16x4xf32>,
    %c0_14 = arith.constant 0 : index
    %c2 = arith.constant 2 : index
    %c0_15 = arith.constant 0 : index
    %9 = vector.load %arg5[%c0_14, %c2, %c0_15] : memref<18x18x4xf32, #tpu.memory_space<vmem>>, vector<18x1x4xf32>
    %c0_16 = arith.constant 0 : index
    %c0_17 = arith.constant 0 : index
    %c0_18 = arith.constant 0 : index
    %10 = vector.load %arg5[%c0_16, %c0_17, %c0_18] : memref<18x18x4xf32, #tpu.memory_space<vmem>>, vector<18x1x4xf32>
    tpu.vector_store %arg5[%c0_16, %c0_17, %c0_18], %9 {strides = array<i32>} : memref<18x18x4xf32, #tpu.memory_space<vmem>>, vector<18x1x4xf32>,
    %c0_19 = arith.constant 0 : index
    %c15 = arith.constant 15 : index
    %c0_20 = arith.constant 0 : index
    %11 = vector.load %arg5[%c0_19, %c15, %c0_20] : memref<18x18x4xf32, #tpu.memory_space<vmem>>, vector<18x1x4xf32>
    %c0_21 = arith.constant 0 : index
    %c17_22 = arith.constant 17 : index
    %c0_23 = arith.constant 0 : index
    %12 = vector.load %arg5[%c0_21, %c17_22, %c0_23] : memref<18x18x4xf32, #tpu.memory_space<vmem>>, vector<18x1x4xf32>
    tpu.vector_store %arg5[%c0_21, %c17_22, %c0_23], %11 {strides = array<i32>} : memref<18x18x4xf32, #tpu.memory_space<vmem>>, vector<18x1x4xf32>,
    %c0_24 = arith.constant 0 : index
    %c0_25 = arith.constant 0 : index
    %c0_26 = arith.constant 0 : index
    %13 = vector.load %arg5[%c0_24, %c0_25, %c0_26] : memref<18x18x4xf32, #tpu.memory_space<vmem>>, vector<18x18x4xf32>
    %14 = vector.extract_strided_slice %13 {offsets = [0, 0, 0], sizes = [16, 16, 4], strides = [1, 1, 1]} : vector<18x18x4xf32> to vector<16x16x4xf32>
    %15 = vector.shape_cast %14 : vector<16x16x4xf32> to vector<256x4xf32>
    %16 = vector.extract_strided_slice %13 {offsets = [0, 1, 0], sizes = [16, 16, 4], strides = [1, 1, 1]} : vector<18x18x4xf32> to vector<16x16x4xf32>
    %17 = vector.shape_cast %16 : vector<16x16x4xf32> to vector<256x4xf32>
    %18 = vector.extract_strided_slice %13 {offsets = [0, 2, 0], sizes = [16, 16, 4], strides = [1, 1, 1]} : vector<18x18x4xf32> to vector<16x16x4xf32>
    %19 = vector.shape_cast %18 : vector<16x16x4xf32> to vector<256x4xf32>
    %20 = vector.extract_strided_slice %13 {offsets = [1, 0, 0], sizes = [16, 16, 4], strides = [1, 1, 1]} : vector<18x18x4xf32> to vector<16x16x4xf32>
    %21 = vector.shape_cast %20 : vector<16x16x4xf32> to vector<256x4xf32>
    %22 = vector.extract_strided_slice %13 {offsets = [1, 1, 0], sizes = [16, 16, 4], strides = [1, 1, 1]} : vector<18x18x4xf32> to vector<16x16x4xf32>
    %23 = vector.shape_cast %22 : vector<16x16x4xf32> to vector<256x4xf32>
    %24 = vector.extract_strided_slice %13 {offsets = [1, 2, 0], sizes = [16, 16, 4], strides = [1, 1, 1]} : vector<18x18x4xf32> to vector<16x16x4xf32>
    %25 = vector.shape_cast %24 : vector<16x16x4xf32> to vector<256x4xf32>
    %26 = vector.extract_strided_slice %13 {offsets = [2, 0, 0], sizes = [16, 16, 4], strides = [1, 1, 1]} : vector<18x18x4xf32> to vector<16x16x4xf32>
    %27 = vector.shape_cast %26 : vector<16x16x4xf32> to vector<256x4xf32>
    %28 = vector.extract_strided_slice %13 {offsets = [2, 1, 0], sizes = [16, 16, 4], strides = [1, 1, 1]} : vector<18x18x4xf32> to vector<16x16x4xf32>
    %29 = vector.shape_cast %28 : vector<16x16x4xf32> to vector<256x4xf32>
    %30 = vector.extract_strided_slice %13 {offsets = [2, 2, 0], sizes = [16, 16, 4], strides = [1, 1, 1]} : vector<18x18x4xf32> to vector<16x16x4xf32>
    %31 = vector.shape_cast %30 : vector<16x16x4xf32> to vector<256x4xf32>
    %32 = tpu.concatenate %15, %17, %19, %21, %23, %25, %27, %29, %31 in 1 : vector<256x4xf32>, vector<256x4xf32>, vector<256x4xf32>, vector<256x4xf32>, vector<256x4xf32>, vector<256x4xf32>, vector<256x4xf32>, vector<256x4xf32>, vector<256x4xf32> -> vector<256x36xf32>
    %cst = arith.constant dense<0.000000e+00> : vector<256x4xf32>
    %33 = tpu.matmul %32, %2, %cst {dimension_numbers = #tpu.dot_dimension_numbers<[1], [0], [0], [1], [0, 0, 1, 1], [], []>} : vector<256x36xf32>, vector<36x4xf32>, vector<256x4xf32> -> vector<256x4xf32>
    %cst_27 = arith.constant dense<0.000000e+00> : vector<4xf32>
    %34 = vector.multi_reduction <add>, %33, %cst_27 [0] : vector<256x4xf32> to vector<4xf32>
    %35 = vector.shape_cast %34 : vector<4xf32> to vector<1x4xf32>
    %cst_28 = arith.constant 3.906250e-03 : f32
    %36 = vector.broadcast %cst_28 : f32 to vector<1x4xf32>
    %37 = arith.mulf %35, %36 : vector<1x4xf32>
    %38 = arith.mulf %33, %33 : vector<256x4xf32>
    %cst_29 = arith.constant dense<0.000000e+00> : vector<4xf32>
    %39 = vector.multi_reduction <add>, %38, %cst_29 [0] : vector<256x4xf32> to vector<4xf32>
    %40 = vector.shape_cast %39 : vector<4xf32> to vector<1x4xf32>
    %cst_30 = arith.constant 3.906250e-03 : f32
    %41 = vector.broadcast %cst_30 : f32 to vector<1x4xf32>
    %42 = arith.mulf %40, %41 : vector<1x4xf32>
    %43 = arith.mulf %37, %37 : vector<1x4xf32>
    %44 = arith.subf %42, %43 : vector<1x4xf32>
    %45 = vector.broadcast %37 : vector<1x4xf32> to vector<256x4xf32>
    %46 = arith.subf %33, %45 : vector<256x4xf32>
    %cst_31 = arith.constant 9.99999974E-6 : f32
    %47 = vector.broadcast %cst_31 : f32 to vector<1x4xf32>
    %48 = arith.addf %44, %47 : vector<1x4xf32>
    %49 = math.rsqrt %48 : vector<1x4xf32>
    %50 = vector.broadcast %49 : vector<1x4xf32> to vector<256x4xf32>
    %51 = arith.mulf %46, %50 : vector<256x4xf32>
    %cst_32 = arith.constant 0.000000e+00 : f32
    %52 = vector.broadcast %cst_32 : f32 to vector<256x4xf32>
    %53 = arith.maximumf %51, %52 : vector<256x4xf32>
    %54 = vector.shape_cast %53 : vector<256x4xf32> to vector<16x16x4xf32>
    %c1_33 = arith.constant 1 : index
    %c1_34 = arith.constant 1 : index
    %c0_35 = arith.constant 0 : index
    %55 = vector.load %arg5[%c1_33, %c1_34, %c0_35] : memref<18x18x4xf32, #tpu.memory_space<vmem>>, vector<16x16x4xf32>
    tpu.vector_store %arg5[%c1_33, %c1_34, %c0_35], %54 {strides = array<i32>} : memref<18x18x4xf32, #tpu.memory_space<vmem>>, vector<16x16x4xf32>,
    %56 = vector.extract_strided_slice %54 {offsets = [1, 0, 0], sizes = [1, 16, 4], strides = [1, 1, 1]} : vector<16x16x4xf32> to vector<1x16x4xf32>
    %c0_36 = arith.constant 0 : index
    %c1_37 = arith.constant 1 : index
    %c0_38 = arith.constant 0 : index
    %57 = vector.load %arg5[%c0_36, %c1_37, %c0_38] : memref<18x18x4xf32, #tpu.memory_space<vmem>>, vector<1x16x4xf32>
    tpu.vector_store %arg5[%c0_36, %c1_37, %c0_38], %56 {strides = array<i32>} : memref<18x18x4xf32, #tpu.memory_space<vmem>>, vector<1x16x4xf32>,
    %58 = vector.extract_strided_slice %54 {offsets = [14, 0, 0], sizes = [1, 16, 4], strides = [1, 1, 1]} : vector<16x16x4xf32> to vector<1x16x4xf32>
    %c17_39 = arith.constant 17 : index
    %c1_40 = arith.constant 1 : index
    %c0_41 = arith.constant 0 : index
    %59 = vector.load %arg5[%c17_39, %c1_40, %c0_41] : memref<18x18x4xf32, #tpu.memory_space<vmem>>, vector<1x16x4xf32>
    tpu.vector_store %arg5[%c17_39, %c1_40, %c0_41], %58 {strides = array<i32>} : memref<18x18x4xf32, #tpu.memory_space<vmem>>, vector<1x16x4xf32>,
    %c0_42 = arith.constant 0 : index
    %c2_43 = arith.constant 2 : index
    %c0_44 = arith.constant 0 : index
    %60 = vector.load %arg5[%c0_42, %c2_43, %c0_44] : memref<18x18x4xf32, #tpu.memory_space<vmem>>, vector<18x1x4xf32>
    %c0_45 = arith.constant 0 : index
    %c0_46 = arith.constant 0 : index
    %c0_47 = arith.constant 0 : index
    %61 = vector.load %arg5[%c0_45, %c0_46, %c0_47] : memref<18x18x4xf32, #tpu.memory_space<vmem>>, vector<18x1x4xf32>
    tpu.vector_store %arg5[%c0_45, %c0_46, %c0_47], %60 {strides = array<i32>} : memref<18x18x4xf32, #tpu.memory_space<vmem>>, vector<18x1x4xf32>,
    %c0_48 = arith.constant 0 : index
    %c15_49 = arith.constant 15 : index
    %c0_50 = arith.constant 0 : index
    %62 = vector.load %arg5[%c0_48, %c15_49, %c0_50] : memref<18x18x4xf32, #tpu.memory_space<vmem>>, vector<18x1x4xf32>
    %c0_51 = arith.constant 0 : index
    %c17_52 = arith.constant 17 : index
    %c0_53 = arith.constant 0 : index
    %63 = vector.load %arg5[%c0_51, %c17_52, %c0_53] : memref<18x18x4xf32, #tpu.memory_space<vmem>>, vector<18x1x4xf32>
    tpu.vector_store %arg5[%c0_51, %c17_52, %c0_53], %62 {strides = array<i32>} : memref<18x18x4xf32, #tpu.memory_space<vmem>>, vector<18x1x4xf32>,
    %c0_54 = arith.constant 0 : index
    %c0_55 = arith.constant 0 : index
    %c0_56 = arith.constant 0 : index
    %64 = vector.load %arg5[%c0_54, %c0_55, %c0_56] : memref<18x18x4xf32, #tpu.memory_space<vmem>>, vector<18x18x4xf32>
    %65 = vector.extract_strided_slice %64 {offsets = [0, 0, 0], sizes = [16, 16, 4], strides = [1, 1, 1]} : vector<18x18x4xf32> to vector<16x16x4xf32>
    %66 = vector.shape_cast %65 : vector<16x16x4xf32> to vector<256x4xf32>
    %67 = vector.extract_strided_slice %64 {offsets = [0, 1, 0], sizes = [16, 16, 4], strides = [1, 1, 1]} : vector<18x18x4xf32> to vector<16x16x4xf32>
    %68 = vector.shape_cast %67 : vector<16x16x4xf32> to vector<256x4xf32>
    %69 = vector.extract_strided_slice %64 {offsets = [0, 2, 0], sizes = [16, 16, 4], strides = [1, 1, 1]} : vector<18x18x4xf32> to vector<16x16x4xf32>
    %70 = vector.shape_cast %69 : vector<16x16x4xf32> to vector<256x4xf32>
    %71 = vector.extract_strided_slice %64 {offsets = [1, 0, 0], sizes = [16, 16, 4], strides = [1, 1, 1]} : vector<18x18x4xf32> to vector<16x16x4xf32>
    %72 = vector.shape_cast %71 : vector<16x16x4xf32> to vector<256x4xf32>
    %73 = vector.extract_strided_slice %64 {offsets = [1, 1, 0], sizes = [16, 16, 4], strides = [1, 1, 1]} : vector<18x18x4xf32> to vector<16x16x4xf32>
    %74 = vector.shape_cast %73 : vector<16x16x4xf32> to vector<256x4xf32>
    %75 = vector.extract_strided_slice %64 {offsets = [1, 2, 0], sizes = [16, 16, 4], strides = [1, 1, 1]} : vector<18x18x4xf32> to vector<16x16x4xf32>
    %76 = vector.shape_cast %75 : vector<16x16x4xf32> to vector<256x4xf32>
    %77 = vector.extract_strided_slice %64 {offsets = [2, 0, 0], sizes = [16, 16, 4], strides = [1, 1, 1]} : vector<18x18x4xf32> to vector<16x16x4xf32>
    %78 = vector.shape_cast %77 : vector<16x16x4xf32> to vector<256x4xf32>
    %79 = vector.extract_strided_slice %64 {offsets = [2, 1, 0], sizes = [16, 16, 4], strides = [1, 1, 1]} : vector<18x18x4xf32> to vector<16x16x4xf32>
    %80 = vector.shape_cast %79 : vector<16x16x4xf32> to vector<256x4xf32>
    %81 = vector.extract_strided_slice %64 {offsets = [2, 2, 0], sizes = [16, 16, 4], strides = [1, 1, 1]} : vector<18x18x4xf32> to vector<16x16x4xf32>
    %82 = vector.shape_cast %81 : vector<16x16x4xf32> to vector<256x4xf32>
    %83 = tpu.concatenate %66, %68, %70, %72, %74, %76, %78, %80, %82 in 1 : vector<256x4xf32>, vector<256x4xf32>, vector<256x4xf32>, vector<256x4xf32>, vector<256x4xf32>, vector<256x4xf32>, vector<256x4xf32>, vector<256x4xf32>, vector<256x4xf32> -> vector<256x36xf32>
    %cst_57 = arith.constant dense<0.000000e+00> : vector<256x4xf32>
    %84 = tpu.matmul %83, %3, %cst_57 {dimension_numbers = #tpu.dot_dimension_numbers<[1], [0], [0], [1], [0, 0, 1, 1], [], []>} : vector<256x36xf32>, vector<36x4xf32>, vector<256x4xf32> -> vector<256x4xf32>
    %cst_58 = arith.constant dense<0.000000e+00> : vector<4xf32>
    %85 = vector.multi_reduction <add>, %84, %cst_58 [0] : vector<256x4xf32> to vector<4xf32>
    %86 = vector.shape_cast %85 : vector<4xf32> to vector<1x4xf32>
    %cst_59 = arith.constant 3.906250e-03 : f32
    %87 = vector.broadcast %cst_59 : f32 to vector<1x4xf32>
    %88 = arith.mulf %86, %87 : vector<1x4xf32>
    %89 = arith.mulf %84, %84 : vector<256x4xf32>
    %cst_60 = arith.constant dense<0.000000e+00> : vector<4xf32>
    %90 = vector.multi_reduction <add>, %89, %cst_60 [0] : vector<256x4xf32> to vector<4xf32>
    %91 = vector.shape_cast %90 : vector<4xf32> to vector<1x4xf32>
    %cst_61 = arith.constant 3.906250e-03 : f32
    %92 = vector.broadcast %cst_61 : f32 to vector<1x4xf32>
    %93 = arith.mulf %91, %92 : vector<1x4xf32>
    %94 = arith.mulf %88, %88 : vector<1x4xf32>
    %95 = arith.subf %93, %94 : vector<1x4xf32>
    %96 = vector.broadcast %88 : vector<1x4xf32> to vector<256x4xf32>
    %97 = arith.subf %84, %96 : vector<256x4xf32>
    %cst_62 = arith.constant 9.99999974E-6 : f32
    %98 = vector.broadcast %cst_62 : f32 to vector<1x4xf32>
    %99 = arith.addf %95, %98 : vector<1x4xf32>
    %100 = math.rsqrt %99 : vector<1x4xf32>
    %101 = vector.broadcast %100 : vector<1x4xf32> to vector<256x4xf32>
    %102 = arith.mulf %97, %101 : vector<256x4xf32>
    %103 = vector.shape_cast %102 : vector<256x4xf32> to vector<16x16x4xf32>
    %104 = arith.addf %1, %103 : vector<16x16x4xf32>
    %c0_63 = arith.constant 0 : index
    %c0_64 = arith.constant 0 : index
    %c0_65 = arith.constant 0 : index
    %c0_66 = arith.constant 0 : index
    %105 = vector.load %arg4[%c0_63, %c0_64, %c0_65, %c0_66] : memref<1x16x16x4xf32, #tpu.memory_space<vmem>>, vector<1x16x16x4xf32>
    %106 = vector.shape_cast %105 : vector<1x16x16x4xf32> to vector<16x16x4xf32>
    %107 = vector.shape_cast %104 : vector<16x16x4xf32> to vector<1x16x16x4xf32>
    tpu.vector_store %arg4[%c0_63, %c0_64, %c0_65, %c0_66], %107 {strides = array<i32>} : memref<1x16x16x4xf32, #tpu.memory_space<vmem>>, vector<1x16x16x4xf32>,
    return
  }
  func.func @transform_0(%arg0: i32) -> (i32, i32, i32, i32) {
    %c0_i32 = arith.constant 0 : i32
    %c0_i32_0 = arith.constant 0 : i32
    %c0_i32_1 = arith.constant 0 : i32
    %c0_i32_2 = arith.constant 0 : i32
    return %arg0, %c0_i32, %c0_i32_0, %c0_i32_1 : i32, i32, i32, i32
  }
  func.func @transform_1(%arg0: i32) -> (i32, i32) {
    %c0_i32 = arith.constant 0 : i32
    %c0_i32_0 = arith.constant 0 : i32
    %c0_i32_1 = arith.constant 0 : i32
    return %c0_i32, %c0_i32_0 : i32, i32
  }
  func.func @transform_2(%arg0: i32) -> (i32, i32) {
    %c0_i32 = arith.constant 0 : i32
    %c0_i32_0 = arith.constant 0 : i32
    %c0_i32_1 = arith.constant 0 : i32
    return %c0_i32, %c0_i32_0 : i32, i32
  }
  func.func @transform_3(%arg0: i32) -> (i32, i32, i32, i32) {
    %c0_i32 = arith.constant 0 : i32
    %c0_i32_0 = arith.constant 0 : i32
    %c0_i32_1 = arith.constant 0 : i32
    %c0_i32_2 = arith.constant 0 : i32
    return %arg0, %c0_i32, %c0_i32_0, %c0_i32_1 : i32, i32, i32, i32
  }
}

</mosaic_0001>

<llo_original>
// kernel: tpu_custom_call.1
$region0: #{tpu_custom_call.1}
  #allocation0 [shape = 'u32[]', space=smem, size = 0x4, offset = 0x4, fixed_abs, tag = 'smem constant byte address 0x4 - core index']
  #allocation1 [shape = 'u32[144,128]{1,0:T(1,128)}', space=vmem, size = 0x12000, scoped, tag = 'internal scratch']
  #allocation2 [shape = 'f32[18,18,4]{2,1,0:T(8,128)}', space=vmem, size = 0x36000, scoped, tag = 'scratch operand']
  %s0 = inlined_call_operand.hbm [shape: f32[2,16,16,4], index: 0, kind: input, shape index: {}]
  %s1 = inlined_call_operand.hbm [shape: f32[36,4], index: 1, kind: input, shape index: {}]
  %s2 = inlined_call_operand.hbm [shape: f32[36,4], index: 2, kind: input, shape index: {}]
  %s3 = inlined_call_operand.hbm [shape: f32[2,16,16,4], index: 3, kind: output, shape index: {}]
  %s4 = sld [smem:[#allocation0]]
  $region57: #{tpu_custom_call.1} parent=0
    _
  %s6 = ssub.s32 1, %s4
  %s7 = scalar_select 0, %s6, %s4
  $region1: #{tpu_custom_call.1} parent=0
    #allocation3 [shape = 'u8[262144]{0}', space=vmem, size = 0x40000, scoped, tag = 'input window, operand 0']
    #allocation4 [shape = 's32[2]{0}', space=sflag, size = 0x8, scoped, tag = 'scoped memory for tpu_custom_call.1']
    #allocation5 [shape = 's32[2]{0}', space=sflag, size = 0x8, scoped, tag = 'scoped memory for tpu_custom_call.1']
    #allocation6 [shape = 'u8[20480]{0}', space=vmem, size = 0x5000, scoped, tag = 'input window, operand 1, single buffered']
    #allocation7 [shape = 's32[1]{0}', space=sflag, size = 0x4, scoped, tag = 'scoped memory for tpu_custom_call.1']
    #allocation8 [shape = 'u8[20480]{0}', space=vmem, size = 0x5000, scoped, tag = 'input window, operand 2, single buffered']
    #allocation9 [shape = 'u8[262144]{0}', space=vmem, size = 0x40000, scoped, tag = 'output window, operand 0']
    %8 = vsyncpa [#allocation4], 0
    %s9 = scalar_lea.sflag [#allocation4], 1
    %10 = vsyncpa %s9, 0
    %11 = vsyncpa [#allocation7], 0
    %12 = vsyncpa [#allocation5], 0
    %s13 = scalar_lea.sflag [#allocation5], 1
    %14 = vsyncpa %s13, 0
    loop: start=0, step=1, limit=4
    $region2: #{tpu_custom_call.1} parent=1 // loop_pre_header
      _
    $region3: #{tpu_custom_call.1} parent=1 // loop_header
      %s16 = sphi 0, %s20
      %p17 = scmp.ge.s32.totalorder %s16, 4
      %s26 = sphi 0, %s28
      %s29 = sphi 0, %s26
      %s30 = sphi 0, %s29
      %s46 = sphi 0, %s30
      %s50 = sphi 0, %s50
      %s52 = sphi 0, %s50
      %s53 = sphi 0, %s52
      %s67 = sphi 0, %s53
      %s71 = sphi 0, %s71
      %s73 = sphi 0, %s71
      %s74 = sphi 0, %s73
      %s88 = sphi 0, %s74
      %s94 = sphi 0, %s96
      %s97 = sphi 0, %s94
      %s98 = sphi 0, %s97
      %s114 = sphi 0, %s98
    $region4: #{tpu_custom_call.1} parent=1 // loop_header_branch
      %19 = sbr.rel (%p17) target = $region8
    $region5: #{tpu_custom_call.1} parent=1 // loop_body
      %s21 = ssub.s32 %s16, 1
      %s22 = ssub.s32 %s16, 2
      %s23 = sadd.s32 %s16, 1
      %s24 = ssub.s32 %s16, %s23
      %p25 = scmp.eq.s32.totalorder %s24, 0
      %s27 = sadd.s32 %s26, 1
      %s28 = scalar_select %p25, %s26, %s27
      %p31 = pneg %p25
      %p32 = scmp.eq.s32.totalorder %s16, 1
      %p33 = por %p31, %p32
      %p34 = scmp.ne.s32.totalorder %s26, %s29
      %p35 = scmp.eq.s32.totalorder %s16, 0
      %p36 = por %p34, %p35
      %p37 = scmp.ne.s32.totalorder %s26, %s29
      %p38 = scmp.eq.s32.totalorder %s21, 1
      %p39 = por %p37, %p38
      %p40 = scmp.ne.s32.totalorder %s29, %s30
      %p41 = scmp.eq.s32.totalorder %s21, 0
      %p42 = por %p40, %p41
      %p43 = scmp.ne.s32.totalorder %s29, %s30
      %p44 = scmp.eq.s32.totalorder %s22, 1
      %p45 = por %p43, %p44
      %p47 = scmp.ne.s32.totalorder %s30, %s46
      %p48 = scmp.eq.s32.totalorder %s22, 0
      %p49 = por %p47, %p48
      %s51 = sadd.s32 %s50, 1
      %p54 = scmp.eq.s32.totalorder %s16, 1
      %p55 = scmp.ne.s32.totalorder %s50, %s52
      %p56 = scmp.eq.s32.totalorder %s16, 0
      %p57 = por %p55, %p56
      %p58 = scmp.ne.s32.totalorder %s50, %s52
      %p59 = scmp.eq.s32.totalorder %s21, 1
      %p60 = por %p58, %p59
      %p61 = scmp.ne.s32.totalorder %s52, %s53
      %p62 = scmp.eq.s32.totalorder %s21, 0
      %p63 = por %p61, %p62
      %p64 = scmp.ne.s32.totalorder %s52, %s53
      %p65 = scmp.eq.s32.totalorder %s22, 1
      %p66 = por %p64, %p65
      %p68 = scmp.ne.s32.totalorder %s53, %s67
      %p69 = scmp.eq.s32.totalorder %s22, 0
      %p70 = por %p68, %p69
      %s72 = sadd.s32 %s71, 1
      %p75 = scmp.eq.s32.totalorder %s16, 1
      %p76 = scmp.ne.s32.totalorder %s71, %s73
      %p77 = scmp.eq.s32.totalorder %s16, 0
      %p78 = por %p76, %p77
      %p79 = scmp.ne.s32.totalorder %s71, %s73
      %p80 = scmp.eq.s32.totalorder %s21, 1
      %p81 = por %p79, %p80
      %p82 = scmp.ne.s32.totalorder %s73, %s74
      %p83 = scmp.eq.s32.totalorder %s21, 0
      %p84 = por %p82, %p83
      %p85 = scmp.ne.s32.totalorder %s73, %s74
      %p86 = scmp.eq.s32.totalorder %s22, 1
      %p87 = por %p85, %p86
      %p89 = scmp.ne.s32.totalorder %s74, %s88
      %p90 = scmp.eq.s32.totalorder %s22, 0
      %p91 = por %p89, %p90
      %s92 = ssub.s32 %s16, %s23
      %p93 = scmp.eq.s32.totalorder %s92, 0
      %s95 = sadd.s32 %s94, 1
      %s96 = scalar_select %p93, %s94, %s95
      %p99 = pneg %p93
      %p100 = scmp.eq.s32.totalorder %s16, 1
      %p101 = por %p99, %p100
      %p102 = scmp.ne.s32.totalorder %s94, %s97
      %p103 = scmp.eq.s32.totalorder %s16, 0
      %p104 = por %p102, %p103
      %p105 = scmp.ne.s32.totalorder %s94, %s97
      %p106 = scmp.eq.s32.totalorder %s21, 1
      %p107 = por %p105, %p106
      %p108 = scmp.ne.s32.totalorder %s97, %s98
      %p109 = scmp.eq.s32.totalorder %s21, 0
      %p110 = por %p108, %p109
      %p111 = scmp.ne.s32.totalorder %s97, %s98
      %p112 = scmp.eq.s32.totalorder %s22, 1
      %p113 = por %p111, %p112
      %p115 = scmp.ne.s32.totalorder %s98, %s114
      %p116 = scmp.eq.s32.totalorder %s22, 0
      %p117 = por %p115, %p116
      %p118 = scmp.le.s32.totalorder 1, %s16
      %p119 = scmp.lt.s32.totalorder %s16, 3
      %p120 = pnand %p118, %p119
      %p121 = pneg %p120
      // Predicated region
      $region9: #{tpu_custom_call.1} parent=5 // pred_check
        _
      $region10: #{tpu_custom_call.1} parent=5 // pred_check_branch
        %123 = sbr.rel (%p120) target = $region12
      $region11: #{tpu_custom_call.1} parent=5 // pred_region
        %s124 = ssub.s32 %s16, 1
        // Predicated region
        $region13: #{tpu_custom_call.1} parent=11 // pred_check
          %p125 = pneg %p63
        $region14: #{tpu_custom_call.1} parent=11 // pred_check_branch
          %127 = sbr.rel (%p125) target = $region16
        $region15: #{tpu_custom_call.1} parent=11 // pred_region
          %s129 = ssub.s32 640, 640
          %130 = vsyncadd [#allocation7], %s129
          %s131 = sshll.u32 [#allocation6], 4
          %s132 = int_to_ptr.vmem [resolvable:$true] %s131
          %137 = dma.hbm_to_vmem [thread:$0]  %s1, 640, %s132, [#allocation7], 128, 128, 8
        $region16: #{tpu_custom_call.1} parent=11 // pred_fallthru
          _
        // Predicated region
        $region17: #{tpu_custom_call.1} parent=11 // pred_check
          %p138 = pneg %p84
        $region18: #{tpu_custom_call.1} parent=11 // pred_check_branch
          %140 = sbr.rel (%p138) target = $region20
        $region19: #{tpu_custom_call.1} parent=11 // pred_region
          %s142 = ssub.s32 640, 640
          %143 = vsyncadd [#allocation7], %s142
          %s144 = sshll.u32 [#allocation8], 4
          %s145 = int_to_ptr.vmem [resolvable:$true] %s144
          %150 = dma.hbm_to_vmem [thread:$0]  %s2, 640, %s145, [#allocation7], 128, 128, 8
        $region20: #{tpu_custom_call.1} parent=11 // pred_fallthru
          _
      $region12: #{tpu_custom_call.1} parent=5 // pred_fallthru
        _
      %p151 = scmp.lt.s32.totalorder %s16, 2
      // Predicated region
      $region21: #{tpu_custom_call.1} parent=5 // pred_check
        %p152 = pneg %p151
      $region22: #{tpu_custom_call.1} parent=5 // pred_check_branch
        %154 = sbr.rel (%p152) target = $region24
      $region23: #{tpu_custom_call.1} parent=5 // pred_region
        // Predicated region
        $region25: #{tpu_custom_call.1} parent=23 // pred_check
          %p155 = pneg %p36
        $region26: #{tpu_custom_call.1} parent=23 // pred_check_branch
          %157 = sbr.rel (%p155) target = $region28
        $region27: #{tpu_custom_call.1} parent=23 // pred_region
          %s158 = sand.u32 %s26, 1
          %s159 = scalar_lea.sflag [#allocation4], %s158
          %s160 = sand.u32 %s26, 1
          %s161 = smul.addr %s160, 256
          %s162 = scalar_lea.vmem [#allocation3], %s161
          %s164 = ssub.s32 4096, 4096
          %165 = vsyncadd %s159, %s164
          %s166 = smul.addr %s16, 32
          %s167 = smul.addr %s166, 128
          %s168 = scalar_lea.hbm %s0, %s167
          %s169 = sshll.u32 %s162, 4
          %s170 = int_to_ptr.vmem [resolvable:$true] %s169
          %175 = dma.hbm_to_vmem [thread:$0]  %s168, 4096, %s170, %s159, 128, 128, 8
        $region28: #{tpu_custom_call.1} parent=23 // pred_fallthru
          _
      $region24: #{tpu_custom_call.1} parent=5 // pred_fallthru
        _
      %p176 = scmp.le.s32.totalorder 1, %s16
      %p177 = scmp.lt.s32.totalorder %s16, 3
      %p178 = pnand %p176, %p177
      %p179 = pneg %p178
      // Predicated region
      $region29: #{tpu_custom_call.1} parent=5 // pred_check
        _
      $region30: #{tpu_custom_call.1} parent=5 // pred_check_branch
        %181 = sbr.rel (%p178) target = $region32
      $region31: #{tpu_custom_call.1} parent=5 // pred_region
        %s182 = ssub.s32 %s16, 1
        %s183 = sand.u32 %s29, 1
        %s184 = scalar_lea.sflag [#allocation4], %s183
        %s185 = sand.u32 %s29, 1
        %s186 = smul.addr %s185, 256
        %s187 = scalar_lea.vmem [#allocation3], %s186
        // Predicated region
        $region33: #{tpu_custom_call.1} parent=31 // pred_check
          %p188 = pneg %p42
        $region34: #{tpu_custom_call.1} parent=31 // pred_check_branch
          %190 = sbr.rel (%p188) target = $region36
        $region35: #{tpu_custom_call.1} parent=31 // pred_region
          %191 = dma.done %s184, 4096
        $region36: #{tpu_custom_call.1} parent=31 // pred_fallthru
          _
        // Predicated region
        $region37: #{tpu_custom_call.1} parent=31 // pred_check
          %p192 = pneg %p63
        $region38: #{tpu_custom_call.1} parent=31 // pred_check_branch
          %194 = sbr.rel (%p192) target = $region40
        $region39: #{tpu_custom_call.1} parent=31 // pred_region
          %195 = dma.done [#allocation7], 640
        $region40: #{tpu_custom_call.1} parent=31 // pred_fallthru
          _
        // Predicated region
        $region41: #{tpu_custom_call.1} parent=31 // pred_check
          %p196 = pneg %p84
        $region42: #{tpu_custom_call.1} parent=31 // pred_check_branch
          %198 = sbr.rel (%p196) target = $region44
        $region43: #{tpu_custom_call.1} parent=31 // pred_region
          %199 = dma.done [#allocation7], 640
        $region44: #{tpu_custom_call.1} parent=31 // pred_fallthru
          _
        %s200 = sand.u32 %s29, 1
        %s201 = scalar_lea.sflag [#allocation4], %s200
        %s202 = sand.u32 %s29, 1
        %s203 = smul.addr %s202, 256
        %s204 = scalar_lea.vmem [#allocation3], %s203
        %p205 = pneg %p42
        %p206 = pneg %p39
        %p207 = pneg %p63
        %p208 = pneg %p60
        %p209 = pneg %p84
        %p210 = pneg %p81
        %p211 = pneg %p110
        %p212 = pneg %p107
        %s213 = sand.u32 %s97, 1
        %s214 = scalar_lea.sflag [#allocation5], %s213
        %s215 = sand.u32 %s97, 1
        %s216 = smul.addr %s215, 256
        %s217 = scalar_lea.vmem [#allocation9], %s216
        %v218 = vld [vmem:[%s187] sm:$0xff]
        %v219 = vld [vmem:[%s187 + $0x8] sm:$0xff]
        %v220 = vld [vmem:[%s187 + $0x10] sm:$0xff]
        %v221 = vld [vmem:[%s187 + $0x18] sm:$0xff]
        %v222 = vld [vmem:[%s187 + $0x20] sm:$0xff]
        %v223 = vld [vmem:[%s187 + $0x28] sm:$0xff]
        %v224 = vld [vmem:[%s187 + $0x30] sm:$0xff]
        %v225 = vld [vmem:[%s187 + $0x38] sm:$0xff]
        %v226 = vld [vmem:[%s187 + $0x40] sm:$0xff]
        %v227 = vld [vmem:[%s187 + $0x48] sm:$0xff]
        %v228 = vld [vmem:[%s187 + $0x50] sm:$0xff]
        %v229 = vld [vmem:[%s187 + $0x58] sm:$0xff]
        %v230 = vld [vmem:[%s187 + $0x60] sm:$0xff]
        %v231 = vld [vmem:[%s187 + $0x68] sm:$0xff]
        %v232 = vld [vmem:[%s187 + $0x70] sm:$0xff]
        %v233 = vld [vmem:[%s187 + $0x78] sm:$0xff]
        %v234 = vld [vmem:[%s187 + $0x80] sm:$0xff]
        %v235 = vld [vmem:[%s187 + $0x88] sm:$0xff]
        %v236 = vld [vmem:[%s187 + $0x90] sm:$0xff]
        %v237 = vld [vmem:[%s187 + $0x98] sm:$0xff]
        %v238 = vld [vmem:[%s187 + $0xa0] sm:$0xff]
        %v239 = vld [vmem:[%s187 + $0xa8] sm:$0xff]
        %v240 = vld [vmem:[%s187 + $0xb0] sm:$0xff]
        %v241 = vld [vmem:[%s187 + $0xb8] sm:$0xff]
        %v242 = vld [vmem:[%s187 + $0xc0] sm:$0xff]
        %v243 = vld [vmem:[%s187 + $0xc8] sm:$0xff]
        %v244 = vld [vmem:[%s187 + $0xd0] sm:$0xff]
        %v245 = vld [vmem:[%s187 + $0xd8] sm:$0xff]
        %v246 = vld [vmem:[%s187 + $0xe0] sm:$0xff]
        %v247 = vld [vmem:[%s187 + $0xe8] sm:$0xff]
        %v248 = vld [vmem:[%s187 + $0xf0] sm:$0xff]
        %v249 = vld [vmem:[%s187 + $0xf8] sm:$0xff]
        %v250 = vld [vmem:[#allocation6] sm:$0xff]
        %v251 = vld [vmem:[#allocation6 + $0x8] sm:$0xff]
        %v252 = vld [vmem:[#allocation6 + $0x10] sm:$0xff]
        %v253 = vld [vmem:[#allocation6 + $0x18] sm:$0xff]
        %v254 = vld [vmem:[#allocation6 + $0x20] sm:$0xf]
        %v255 = vld [vmem:[#allocation8] sm:$0xff]
        %v256 = vld [vmem:[#allocation8 + $0x8] sm:$0xff]
        %v257 = vld [vmem:[#allocation8 + $0x10] sm:$0xff]
        %v258 = vld [vmem:[#allocation8 + $0x18] sm:$0xff]
        %v259 = vld [vmem:[#allocation8 + $0x20] sm:$0xf]
        %s260 = scalar_lea.vmem [#allocation2], 24
        %vm261 = vcmask 31744
        %262 = vst.msk [vmem:[%s260 + $0x1] sm:$0xff] %vm261, %v218
        %263 = vst.msk [vmem:[%s260 + $0x9] sm:$0xff] %vm261, %v219
        %264 = vst.msk [vmem:[%s260 + $0x19] sm:$0xff] %vm261, %v220
        %265 = vst.msk [vmem:[%s260 + $0x21] sm:$0xff] %vm261, %v221
        %266 = vst.msk [vmem:[%s260 + $0x31] sm:$0xff] %vm261, %v222
        %267 = vst.msk [vmem:[%s260 + $0x39] sm:$0xff] %vm261, %v223
        %268 = vst.msk [vmem:[%s260 + $0x49] sm:$0xff] %vm261, %v224
        %269 = vst.msk [vmem:[%s260 + $0x51] sm:$0xff] %vm261, %v225
        %270 = vst.msk [vmem:[%s260 + $0x61] sm:$0xff] %vm261, %v226
        %271 = vst.msk [vmem:[%s260 + $0x69] sm:$0xff] %vm261, %v227
        %272 = vst.msk [vmem:[%s260 + $0x79] sm:$0xff] %vm261, %v228
        %273 = vst.msk [vmem:[%s260 + $0x81] sm:$0xff] %vm261, %v229
        %274 = vst.msk [vmem:[%s260 + $0x91] sm:$0xff] %vm261, %v230
        %275 = vst.msk [vmem:[%s260 + $0x99] sm:$0xff] %vm261, %v231
        %276 = vst.msk [vmem:[%s260 + $0xa9] sm:$0xff] %vm261, %v232
        %277 = vst.msk [vmem:[%s260 + $0xb1] sm:$0xff] %vm261, %v233
        %278 = vst.msk [vmem:[%s260 + $0xc1] sm:$0xff] %vm261, %v234
        %279 = vst.msk [vmem:[%s260 + $0xc9] sm:$0xff] %vm261, %v235
        %280 = vst.msk [vmem:[%s260 + $0xd9] sm:$0xff] %vm261, %v236
        %281 = vst.msk [vmem:[%s260 + $0xe1] sm:$0xff] %vm261, %v237
        %282 = vst.msk [vmem:[%s260 + $0xf1] sm:$0xff] %vm261, %v238
        %283 = vst.msk [vmem:[%s260 + $0xf9] sm:$0xff] %vm261, %v239
        %284 = vst.msk [vmem:[%s260 + $0x109] sm:$0xff] %vm261, %v240
        %285 = vst.msk [vmem:[%s260 + $0x111] sm:$0xff] %vm261, %v241
        %286 = vst.msk [vmem:[%s260 + $0x121] sm:$0xff] %vm261, %v242
        %287 = vst.msk [vmem:[%s260 + $0x129] sm:$0xff] %vm261, %v243
        %288 = vst.msk [vmem:[%s260 + $0x139] sm:$0xff] %vm261, %v244
        %289 = vst.msk [vmem:[%s260 + $0x141] sm:$0xff] %vm261, %v245
        %290 = vst.msk [vmem:[%s260 + $0x151] sm:$0xff] %vm261, %v246
        %291 = vst.msk [vmem:[%s260 + $0x159] sm:$0xff] %vm261, %v247
        %292 = vst.msk [vmem:[%s260 + $0x169] sm:$0xff] %vm261, %v248
        %293 = vst.msk [vmem:[%s260 + $0x171] sm:$0xff] %vm261, %v249
        %294 = vst.msk [vmem:[#allocation2 + $0x1] sm:$0xff] %vm261, %v220
        %295 = vst.msk [vmem:[#allocation2 + $0x9] sm:$0xff] %vm261, %v221
        %s296 = scalar_lea.vmem [#allocation2], 408
        %297 = vst.msk [vmem:[%s296 + $0x1] sm:$0xff] %vm261, %v246
        %298 = vst.msk [vmem:[%s296 + $0x9] sm:$0xff] %vm261, %v247
        %v299 = vld [vmem:[#allocation2 + $0x2] sm:$0x1]
        %v300 = vld [vmem:[#allocation2 + $0x1a] sm:$0x1]
        %v301 = vld [vmem:[#allocation2 + $0x32] sm:$0x1]
        %v302 = vld [vmem:[#allocation2 + $0x4a] sm:$0x1]
        %v303 = vld [vmem:[#allocation2 + $0x62] sm:$0x1]
        %v304 = vld [vmem:[#allocation2 + $0x7a] sm:$0x1]
        %v305 = vld [vmem:[#allocation2 + $0x92] sm:$0x1]
        %v306 = vld [vmem:[#allocation2 + $0xaa] sm:$0x1]
        %v307 = vld [vmem:[#allocation2 + $0xc2] sm:$0x1]
        %v308 = vld [vmem:[#allocation2 + $0xda] sm:$0x1]
        %v309 = vld [vmem:[#allocation2 + $0xf2] sm:$0x1]
        %v310 = vld [vmem:[#allocation2 + $0x10a] sm:$0x1]
        %v311 = vld [vmem:[#allocation2 + $0x122] sm:$0x1]
        %v312 = vld [vmem:[#allocation2 + $0x13a] sm:$0x1]
        %v313 = vld [vmem:[#allocation2 + $0x152] sm:$0x1]
        %v314 = vld [vmem:[#allocation2 + $0x16a] sm:$0x1]
        %v315 = vld [vmem:[#allocation2 + $0x182] sm:$0x1]
        %v316 = vld [vmem:[#allocation2 + $0x19a] sm:$0x1]
        %vm317 = vcmask 24576
        %318 = vst.msk [vmem:[#allocation2] sm:$0x1] %vm317, %v299
        %319 = vst.msk [vmem:[#allocation2 + $0x18] sm:$0x1] %vm317, %v300
        %320 = vst.msk [vmem:[#allocation2 + $0x30] sm:$0x1] %vm317, %v301
        %321 = vst.msk [vmem:[#allocation2 + $0x48] sm:$0x1] %vm317, %v302
        %322 = vst.msk [vmem:[#allocation2 + $0x60] sm:$0x1] %vm317, %v303
        %323 = vst.msk [vmem:[#allocation2 + $0x78] sm:$0x1] %vm317, %v304
        %324 = vst.msk [vmem:[#allocation2 + $0x90] sm:$0x1] %vm317, %v305
        %325 = vst.msk [vmem:[#allocation2 + $0xa8] sm:$0x1] %vm317, %v306
        %326 = vst.msk [vmem:[#allocation2 + $0xc0] sm:$0x1] %vm317, %v307
        %327 = vst.msk [vmem:[#allocation2 + $0xd8] sm:$0x1] %vm317, %v308
        %328 = vst.msk [vmem:[#allocation2 + $0xf0] sm:$0x1] %vm317, %v309
        %329 = vst.msk [vmem:[#allocation2 + $0x108] sm:$0x1] %vm317, %v310
        %330 = vst.msk [vmem:[#allocation2 + $0x120] sm:$0x1] %vm317, %v311
        %331 = vst.msk [vmem:[#allocation2 + $0x138] sm:$0x1] %vm317, %v312
        %332 = vst.msk [vmem:[#allocation2 + $0x150] sm:$0x1] %vm317, %v313
        %333 = vst.msk [vmem:[#allocation2 + $0x168] sm:$0x1] %vm317, %v314
        %334 = vst.msk [vmem:[#allocation2 + $0x180] sm:$0x1] %vm317, %v315
        %335 = vst.msk [vmem:[#allocation2 + $0x198] sm:$0x1] %vm317, %v316
        %v336 = vld [vmem:[#allocation2 + $0xf] sm:$0x1]
        %v337 = vld [vmem:[#allocation2 + $0x27] sm:$0x1]
        %v338 = vld [vmem:[#allocation2 + $0x3f] sm:$0x1]
        %v339 = vld [vmem:[#allocation2 + $0x57] sm:$0x1]
        %v340 = vld [vmem:[#allocation2 + $0x6f] sm:$0x1]
        %v341 = vld [vmem:[#allocation2 + $0x87] sm:$0x1]
        %v342 = vld [vmem:[#allocation2 + $0x9f] sm:$0x1]
        %v343 = vld [vmem:[#allocation2 + $0xb7] sm:$0x1]
        %v344 = vld [vmem:[#allocation2 + $0xcf] sm:$0x1]
        %v345 = vld [vmem:[#allocation2 + $0xe7] sm:$0x1]
        %v346 = vld [vmem:[#allocation2 + $0xff] sm:$0x1]
        %v347 = vld [vmem:[#allocation2 + $0x117] sm:$0x1]
        %v348 = vld [vmem:[#allocation2 + $0x12f] sm:$0x1]
        %v349 = vld [vmem:[#allocation2 + $0x147] sm:$0x1]
        %v350 = vld [vmem:[#allocation2 + $0x15f] sm:$0x1]
        %v351 = vld [vmem:[#allocation2 + $0x177] sm:$0x1]
        %v352 = vld [vmem:[#allocation2 + $0x18f] sm:$0x1]
        %v353 = vld [vmem:[#allocation2 + $0x1a7] sm:$0x1]
        %354 = vst.msk [vmem:[#allocation2 + $0x11] sm:$0x1] %vm317, %v336
        %355 = vst.msk [vmem:[#allocation2 + $0x29] sm:$0x1] %vm317, %v337
        %356 = vst.msk [vmem:[#allocation2 + $0x41] sm:$0x1] %vm317, %v338
        %357 = vst.msk [vmem:[#allocation2 + $0x59] sm:$0x1] %vm317, %v339
        %358 = vst.msk [vmem:[#allocation2 + $0x71] sm:$0x1] %vm317, %v340
        %359 = vst.msk [vmem:[#allocation2 + $0x89] sm:$0x1] %vm317, %v341
        %360 = vst.msk [vmem:[#allocation2 + $0xa1] sm:$0x1] %vm317, %v342
        %361 = vst.msk [vmem:[#allocation2 + $0xb9] sm:$0x1] %vm317, %v343
        %362 = vst.msk [vmem:[#allocation2 + $0xd1] sm:$0x1] %vm317, %v344
        %363 = vst.msk [vmem:[#allocation2 + $0xe9] sm:$0x1] %vm317, %v345
        %364 = vst.msk [vmem:[#allocation2 + $0x101] sm:$0x1] %vm317, %v346
        %365 = vst.msk [vmem:[#allocation2 + $0x119] sm:$0x1] %vm317, %v347
        %366 = vst.msk [vmem:[#allocation2 + $0x131] sm:$0x1] %vm317, %v348
        %367 = vst.msk [vmem:[#allocation2 + $0x149] sm:$0x1] %vm317, %v349
        %368 = vst.msk [vmem:[#allocation2 + $0x161] sm:$0x1] %vm317, %v350
        %369 = vst.msk [vmem:[#allocation2 + $0x179] sm:$0x1] %vm317, %v351
        %370 = vst.msk [vmem:[#allocation2 + $0x191] sm:$0x1] %vm317, %v352
        %371 = vst.msk [vmem:[#allocation2 + $0x1a9] sm:$0x1] %vm317, %v353
        %v372 = vld [vmem:[#allocation2] sm:$0xff]
        %v373 = vld [vmem:[#allocation2 + $0x8] sm:$0xff]
        %v374 = vld [vmem:[#allocation2 + $0x10] sm:$0x3]
        %v375 = vld [vmem:[#allocation2 + $0x18] sm:$0xff]
        %v376 = vld [vmem:[#allocation2 + $0x20] sm:$0xff]
        %v377 = vld [vmem:[#allocation2 + $0x28] sm:$0x3]
        %v378 = vld [vmem:[#allocation2 + $0x30] sm:$0xff]
        %v379 = vld [vmem:[#allocation2 + $0x38] sm:$0xff]
        %v380 = vld [vmem:[#allocation2 + $0x40] sm:$0x3]
        %v381 = vld [vmem:[#allocation2 + $0x48] sm:$0xff]
        %v382 = vld [vmem:[#allocation2 + $0x50] sm:$0xff]
        %v383 = vld [vmem:[#allocation2 + $0x58] sm:$0x3]
        %v384 = vld [vmem:[#allocation2 + $0x60] sm:$0xff]
        %v385 = vld [vmem:[#allocation2 + $0x68] sm:$0xff]
        %v386 = vld [vmem:[#allocation2 + $0x70] sm:$0x3]
        %v387 = vld [vmem:[#allocation2 + $0x78] sm:$0xff]
        %v388 = vld [vmem:[#allocation2 + $0x80] sm:$0xff]
        %v389 = vld [vmem:[#allocation2 + $0x88] sm:$0x3]
        %v390 = vld [vmem:[#allocation2 + $0x90] sm:$0xff]
        %v391 = vld [vmem:[#allocation2 + $0x98] sm:$0xff]
        %v392 = vld [vmem:[#allocation2 + $0xa0] sm:$0x3]
        %v393 = vld [vmem:[#allocation2 + $0xa8] sm:$0xff]
        %v394 = vld [vmem:[#allocation2 + $0xb0] sm:$0xff]
        %v395 = vld [vmem:[#allocation2 + $0xb8] sm:$0x3]
        %v396 = vld [vmem:[#allocation2 + $0xc0] sm:$0xff]
        %v397 = vld [vmem:[#allocation2 + $0xc8] sm:$0xff]
        %v398 = vld [vmem:[#allocation2 + $0xd0] sm:$0x3]
        %v399 = vld [vmem:[#allocation2 + $0xd8] sm:$0xff]
        %v400 = vld [vmem:[#allocation2 + $0xe0] sm:$0xff]
        %v401 = vld [vmem:[#allocation2 + $0xe8] sm:$0x3]
        %v402 = vld [vmem:[#allocation2 + $0xf0] sm:$0xff]
        %v403 = vld [vmem:[#allocation2 + $0xf8] sm:$0xff]
        %v404 = vld [vmem:[#allocation2 + $0x100] sm:$0x3]
        %v405 = vld [vmem:[#allocation2 + $0x108] sm:$0xff]
        %v406 = vld [vmem:[#allocation2 + $0x110] sm:$0xff]
        %v407 = vld [vmem:[#allocation2 + $0x118] sm:$0x3]
        %v408 = vld [vmem:[#allocation2 + $0x120] sm:$0xff]
        %v409 = vld [vmem:[#allocation2 + $0x128] sm:$0xff]
        %v410 = vld [vmem:[#allocation2 + $0x130] sm:$0x3]
        %v411 = vld [vmem:[#allocation2 + $0x138] sm:$0xff]
        %v412 = vld [vmem:[#allocation2 + $0x140] sm:$0xff]
        %v413 = vld [vmem:[#allocation2 + $0x148] sm:$0x3]
        %v414 = vld [vmem:[#allocation2 + $0x150] sm:$0xff]
        %v415 = vld [vmem:[#allocation2 + $0x158] sm:$0xff]
        %v416 = vld [vmem:[#allocation2 + $0x160] sm:$0x3]
        %v417 = vld [vmem:[#allocation2 + $0x168] sm:$0xff]
        %v418 = vld [vmem:[#allocation2 + $0x170] sm:$0xff]
        %v419 = vld [vmem:[#allocation2 + $0x178] sm:$0x3]
        %v420 = vld [vmem:[#allocation2 + $0x180] sm:$0xff]
        %v421 = vld [vmem:[#allocation2 + $0x188] sm:$0xff]
        %v422 = vld [vmem:[#allocation2 + $0x190] sm:$0x3]
        %v423 = vld [vmem:[#allocation2 + $0x198] sm:$0xff]
        %v424 = vld [vmem:[#allocation2 + $0x1a0] sm:$0xff]
        %v425 = vld [vmem:[#allocation2 + $0x1a8] sm:$0x3]
        %vm474 = vcmask 1046528
        %v475 = vrot.slane %v372, 1
        %v476 = vrot.slane %v373, 1
        %v477 = vsel %vm474, %v475, %v476
        %v478 = vrot.slane %v374, 1
        %v479 = vsel %vm474, %v476, %v478
        %v480 = vrot.slane %v375, 1
        %v481 = vrot.slane %v376, 1
        %v482 = vsel %vm474, %v480, %v481
        %v483 = vrot.slane %v377, 1
        %v484 = vsel %vm474, %v481, %v483
        %v485 = vrot.slane %v378, 1
        %v486 = vrot.slane %v379, 1
        %v487 = vsel %vm474, %v485, %v486
        %v488 = vrot.slane %v380, 1
        %v489 = vsel %vm474, %v486, %v488
        %v490 = vrot.slane %v381, 1
        %v491 = vrot.slane %v382, 1
        %v492 = vsel %vm474, %v490, %v491
        %v493 = vrot.slane %v383, 1
        %v494 = vsel %vm474, %v491, %v493
        %v495 = vrot.slane %v384, 1
        %v496 = vrot.slane %v385, 1
        %v497 = vsel %vm474, %v495, %v496
        %v498 = vrot.slane %v386, 1
        %v499 = vsel %vm474, %v496, %v498
        %v500 = vrot.slane %v387, 1
        %v501 = vrot.slane %v388, 1
        %v502 = vsel %vm474, %v500, %v501
        %v503 = vrot.slane %v389, 1
        %v504 = vsel %vm474, %v501, %v503
        %v505 = vrot.slane %v390, 1
        %v506 = vrot.slane %v391, 1
        %v507 = vsel %vm474, %v505, %v506
        %v508 = vrot.slane %v392, 1
        %v509 = vsel %vm474, %v506, %v508
        %v510 = vrot.slane %v393, 1
        %v511 = vrot.slane %v394, 1
        %v512 = vsel %vm474, %v510, %v511
        %v513 = vrot.slane %v395, 1
        %v514 = vsel %vm474, %v511, %v513
        %v515 = vrot.slane %v396, 1
        %v516 = vrot.slane %v397, 1
        %v517 = vsel %vm474, %v515, %v516
        %v518 = vrot.slane %v398, 1
        %v519 = vsel %vm474, %v516, %v518
        %v520 = vrot.slane %v399, 1
        %v521 = vrot.slane %v400, 1
        %v522 = vsel %vm474, %v520, %v521
        %v523 = vrot.slane %v401, 1
        %v524 = vsel %vm474, %v521, %v523
        %v525 = vrot.slane %v402, 1
        %v526 = vrot.slane %v403, 1
        %v527 = vsel %vm474, %v525, %v526
        %v528 = vrot.slane %v404, 1
        %v529 = vsel %vm474, %v526, %v528
        %v530 = vrot.slane %v405, 1
        %v531 = vrot.slane %v406, 1
        %v532 = vsel %vm474, %v530, %v531
        %v533 = vrot.slane %v407, 1
        %v534 = vsel %vm474, %v531, %v533
        %v535 = vrot.slane %v408, 1
        %v536 = vrot.slane %v409, 1
        %v537 = vsel %vm474, %v535, %v536
        %v538 = vrot.slane %v410, 1
        %v539 = vsel %vm474, %v536, %v538
        %v540 = vrot.slane %v411, 1
        %v541 = vrot.slane %v412, 1
        %v542 = vsel %vm474, %v540, %v541
        %v543 = vrot.slane %v413, 1
        %v544 = vsel %vm474, %v541, %v543
        %v545 = vrot.slane %v414, 1
        %v546 = vrot.slane %v415, 1
        %v547 = vsel %vm474, %v545, %v546
        %v548 = vrot.slane %v416, 1
        %v549 = vsel %vm474, %v546, %v548
        %v550 = vrot.slane %v417, 1
        %v551 = vrot.slane %v418, 1
        %v552 = vsel %vm474, %v550, %v551
        %v553 = vrot.slane %v419, 1
        %v554 = vsel %vm474, %v551, %v553
        %vm555 = vcmask 1045504
        %v556 = vrot.slane %v372, 2
        %v557 = vrot.slane %v373, 2
        %v558 = vsel %vm555, %v556, %v557
        %v559 = vrot.slane %v374, 2
        %v560 = vsel %vm555, %v557, %v559
        %v561 = vrot.slane %v375, 2
        %v562 = vrot.slane %v376, 2
        %v563 = vsel %vm555, %v561, %v562
        %v564 = vrot.slane %v377, 2
        %v565 = vsel %vm555, %v562, %v564
        %v566 = vrot.slane %v378, 2
        %v567 = vrot.slane %v379, 2
        %v568 = vsel %vm555, %v566, %v567
        %v569 = vrot.slane %v380, 2
        %v570 = vsel %vm555, %v567, %v569
        %v571 = vrot.slane %v381, 2
        %v572 = vrot.slane %v382, 2
        %v573 = vsel %vm555, %v571, %v572
        %v574 = vrot.slane %v383, 2
        %v575 = vsel %vm555, %v572, %v574
        %v576 = vrot.slane %v384, 2
        %v577 = vrot.slane %v385, 2
        %v578 = vsel %vm555, %v576, %v577
        %v579 = vrot.slane %v386, 2
        %v580 = vsel %vm555, %v577, %v579
        %v581 = vrot.slane %v387, 2
        %v582 = vrot.slane %v388, 2
        %v583 = vsel %vm555, %v581, %v582
        %v584 = vrot.slane %v389, 2
        %v585 = vsel %vm555, %v582, %v584
        %v586 = vrot.slane %v390, 2
        %v587 = vrot.slane %v391, 2
        %v588 = vsel %vm555, %v586, %v587
        %v589 = vrot.slane %v392, 2
        %v590 = vsel %vm555, %v587, %v589
        %v591 = vrot.slane %v393, 2
        %v592 = vrot.slane %v394, 2
        %v593 = vsel %vm555, %v591, %v592
        %v594 = vrot.slane %v395, 2
        %v595 = vsel %vm555, %v592, %v594
        %v596 = vrot.slane %v396, 2
        %v597 = vrot.slane %v397, 2
        %v598 = vsel %vm555, %v596, %v597
        %v599 = vrot.slane %v398, 2
        %v600 = vsel %vm555, %v597, %v599
        %v601 = vrot.slane %v399, 2
        %v602 = vrot.slane %v400, 2
        %v603 = vsel %vm555, %v601, %v602
        %v604 = vrot.slane %v401, 2
        %v605 = vsel %vm555, %v602, %v604
        %v606 = vrot.slane %v402, 2
        %v607 = vrot.slane %v403, 2
        %v608 = vsel %vm555, %v606, %v607
        %v609 = vrot.slane %v404, 2
        %v610 = vsel %vm555, %v607, %v609
        %v611 = vrot.slane %v405, 2
        %v612 = vrot.slane %v406, 2
        %v613 = vsel %vm555, %v611, %v612
        %v614 = vrot.slane %v407, 2
        %v615 = vsel %vm555, %v612, %v614
        %v616 = vrot.slane %v408, 2
        %v617 = vrot.slane %v409, 2
        %v618 = vsel %vm555, %v616, %v617
        %v619 = vrot.slane %v410, 2
        %v620 = vsel %vm555, %v617, %v619
        %v621 = vrot.slane %v411, 2
        %v622 = vrot.slane %v412, 2
        %v623 = vsel %vm555, %v621, %v622
        %v624 = vrot.slane %v413, 2
        %v625 = vsel %vm555, %v622, %v624
        %v626 = vrot.slane %v414, 2
        %v627 = vrot.slane %v415, 2
        %v628 = vsel %vm555, %v626, %v627
        %v629 = vrot.slane %v416, 2
        %v630 = vsel %vm555, %v627, %v629
        %v631 = vrot.slane %v417, 2
        %v632 = vrot.slane %v418, 2
        %v633 = vsel %vm555, %v631, %v632
        %v634 = vrot.slane %v419, 2
        %v635 = vsel %vm555, %v632, %v634
        %v639 = vrot.slane %v420, 1
        %v640 = vrot.slane %v421, 1
        %v641 = vsel %vm474, %v639, %v640
        %v642 = vrot.slane %v422, 1
        %v643 = vsel %vm474, %v640, %v642
        %v644 = vrot.slane %v420, 2
        %v645 = vrot.slane %v421, 2
        %v646 = vsel %vm555, %v644, %v645
        %v647 = vrot.slane %v422, 2
        %v648 = vsel %vm555, %v645, %v647
        %v652 = vrot.slane %v423, 1
        %v653 = vrot.slane %v424, 1
        %v654 = vsel %vm474, %v652, %v653
        %v655 = vrot.slane %v425, 1
        %v656 = vsel %vm474, %v653, %v655
        %v657 = vrot.slane %v423, 2
        %v658 = vrot.slane %v424, 2
        %v659 = vsel %vm555, %v657, %v658
        %v660 = vrot.slane %v425, 2
        %v661 = vsel %vm555, %v658, %v660
        %662 = vrot.lane.b32.xlu0 %v477, 4
        %v663 = vpop.permute.xlu0 %662
        %664 = vrot.lane.b32.xlu0 %v479, 4
        %v665 = vpop.permute.xlu0 %664
        %666 = vrot.lane.b32.xlu0 %v482, 4
        %v667 = vpop.permute.xlu0 %666
        %668 = vrot.lane.b32.xlu0 %v484, 4
        %v669 = vpop.permute.xlu0 %668
        %670 = vrot.lane.b32.xlu0 %v487, 4
        %v671 = vpop.permute.xlu0 %670
        %672 = vrot.lane.b32.xlu0 %v489, 4
        %v673 = vpop.permute.xlu0 %672
        %674 = vrot.lane.b32.xlu0 %v492, 4
        %v675 = vpop.permute.xlu0 %674
        %676 = vrot.lane.b32.xlu0 %v494, 4
        %v677 = vpop.permute.xlu0 %676
        %678 = vrot.lane.b32.xlu0 %v497, 4
        %v679 = vpop.permute.xlu0 %678
        %680 = vrot.lane.b32.xlu0 %v499, 4
        %v681 = vpop.permute.xlu0 %680
        %682 = vrot.lane.b32.xlu0 %v502, 4
        %v683 = vpop.permute.xlu0 %682
        %684 = vrot.lane.b32.xlu0 %v504, 4
        %v685 = vpop.permute.xlu0 %684
        %686 = vrot.lane.b32.xlu0 %v507, 4
        %v687 = vpop.permute.xlu0 %686
        %688 = vrot.lane.b32.xlu0 %v509, 4
        %v689 = vpop.permute.xlu0 %688
        %690 = vrot.lane.b32.xlu0 %v512, 4
        %v691 = vpop.permute.xlu0 %690
        %692 = vrot.lane.b32.xlu0 %v514, 4
        %v693 = vpop.permute.xlu0 %692
        %694 = vrot.lane.b32.xlu0 %v517, 4
        %v695 = vpop.permute.xlu0 %694
        %696 = vrot.lane.b32.xlu0 %v519, 4
        %v697 = vpop.permute.xlu0 %696
        %698 = vrot.lane.b32.xlu0 %v522, 4
        %v699 = vpop.permute.xlu0 %698
        %700 = vrot.lane.b32.xlu0 %v524, 4
        %v701 = vpop.permute.xlu0 %700
        %702 = vrot.lane.b32.xlu0 %v527, 4
        %v703 = vpop.permute.xlu0 %702
        %704 = vrot.lane.b32.xlu0 %v529, 4
        %v705 = vpop.permute.xlu0 %704
        %706 = vrot.lane.b32.xlu0 %v532, 4
        %v707 = vpop.permute.xlu0 %706
        %708 = vrot.lane.b32.xlu0 %v534, 4
        %v709 = vpop.permute.xlu0 %708
        %710 = vrot.lane.b32.xlu0 %v537, 4
        %v711 = vpop.permute.xlu0 %710
        %712 = vrot.lane.b32.xlu0 %v539, 4
        %v713 = vpop.permute.xlu0 %712
        %714 = vrot.lane.b32.xlu0 %v542, 4
        %v715 = vpop.permute.xlu0 %714
        %716 = vrot.lane.b32.xlu0 %v544, 4
        %v717 = vpop.permute.xlu0 %716
        %718 = vrot.lane.b32.xlu0 %v547, 4
        %v719 = vpop.permute.xlu0 %718
        %720 = vrot.lane.b32.xlu0 %v549, 4
        %v721 = vpop.permute.xlu0 %720
        %722 = vrot.lane.b32.xlu0 %v552, 4
        %v723 = vpop.permute.xlu0 %722
        %724 = vrot.lane.b32.xlu0 %v554, 4
        %v725 = vpop.permute.xlu0 %724
        %758 = vrot.lane.b32.xlu0 %v558, 8
        %v759 = vpop.permute.xlu0 %758
        %760 = vrot.lane.b32.xlu0 %v560, 8
        %v761 = vpop.permute.xlu0 %760
        %762 = vrot.lane.b32.xlu0 %v563, 8
        %v763 = vpop.permute.xlu0 %762
        %764 = vrot.lane.b32.xlu0 %v565, 8
        %v765 = vpop.permute.xlu0 %764
        %766 = vrot.lane.b32.xlu0 %v568, 8
        %v767 = vpop.permute.xlu0 %766
        %768 = vrot.lane.b32.xlu0 %v570, 8
        %v769 = vpop.permute.xlu0 %768
        %770 = vrot.lane.b32.xlu0 %v573, 8
        %v771 = vpop.permute.xlu0 %770
        %772 = vrot.lane.b32.xlu0 %v575, 8
        %v773 = vpop.permute.xlu0 %772
        %774 = vrot.lane.b32.xlu0 %v578, 8
        %v775 = vpop.permute.xlu0 %774
        %776 = vrot.lane.b32.xlu0 %v580, 8
        %v777 = vpop.permute.xlu0 %776
        %778 = vrot.lane.b32.xlu0 %v583, 8
        %v779 = vpop.permute.xlu0 %778
        %780 = vrot.lane.b32.xlu0 %v585, 8
        %v781 = vpop.permute.xlu0 %780
        %782 = vrot.lane.b32.xlu0 %v588, 8
        %v783 = vpop.permute.xlu0 %782
        %784 = vrot.lane.b32.xlu0 %v590, 8
        %v785 = vpop.permute.xlu0 %784
        %786 = vrot.lane.b32.xlu0 %v593, 8
        %v787 = vpop.permute.xlu0 %786
        %788 = vrot.lane.b32.xlu0 %v595, 8
        %v789 = vpop.permute.xlu0 %788
        %790 = vrot.lane.b32.xlu0 %v598, 8
        %v791 = vpop.permute.xlu0 %790
        %792 = vrot.lane.b32.xlu0 %v600, 8
        %v793 = vpop.permute.xlu0 %792
        %794 = vrot.lane.b32.xlu0 %v603, 8
        %v795 = vpop.permute.xlu0 %794
        %796 = vrot.lane.b32.xlu0 %v605, 8
        %v797 = vpop.permute.xlu0 %796
        %798 = vrot.lane.b32.xlu0 %v608, 8
        %v799 = vpop.permute.xlu0 %798
        %800 = vrot.lane.b32.xlu0 %v610, 8
        %v801 = vpop.permute.xlu0 %800
        %802 = vrot.lane.b32.xlu0 %v613, 8
        %v803 = vpop.permute.xlu0 %802
        %804 = vrot.lane.b32.xlu0 %v615, 8
        %v805 = vpop.permute.xlu0 %804
        %806 = vrot.lane.b32.xlu0 %v618, 8
        %v807 = vpop.permute.xlu0 %806
        %808 = vrot.lane.b32.xlu0 %v620, 8
        %v809 = vpop.permute.xlu0 %808
        %810 = vrot.lane.b32.xlu0 %v623, 8
        %v811 = vpop.permute.xlu0 %810
        %812 = vrot.lane.b32.xlu0 %v625, 8
        %v813 = vpop.permute.xlu0 %812
        %814 = vrot.lane.b32.xlu0 %v628, 8
        %v815 = vpop.permute.xlu0 %814
        %816 = vrot.lane.b32.xlu0 %v630, 8
        %v817 = vpop.permute.xlu0 %816
        %818 = vrot.lane.b32.xlu0 %v633, 8
        %v819 = vpop.permute.xlu0 %818
        %820 = vrot.lane.b32.xlu0 %v635, 8
        %v821 = vpop.permute.xlu0 %820
        %854 = vrot.lane.b32.xlu0 %v375, 12
        %v855 = vpop.permute.xlu0 %854
        %856 = vrot.lane.b32.xlu0 %v376, 12
        %v857 = vpop.permute.xlu0 %856
        %858 = vrot.lane.b32.xlu0 %v378, 12
        %v859 = vpop.permute.xlu0 %858
        %860 = vrot.lane.b32.xlu0 %v379, 12
        %v861 = vpop.permute.xlu0 %860
        %862 = vrot.lane.b32.xlu0 %v381, 12
        %v863 = vpop.permute.xlu0 %862
        %864 = vrot.lane.b32.xlu0 %v382, 12
        %v865 = vpop.permute.xlu0 %864
        %866 = vrot.lane.b32.xlu0 %v384, 12
        %v867 = vpop.permute.xlu0 %866
        %868 = vrot.lane.b32.xlu0 %v385, 12
        %v869 = vpop.permute.xlu0 %868
        %870 = vrot.lane.b32.xlu0 %v387, 12
        %v871 = vpop.permute.xlu0 %870
        %872 = vrot.lane.b32.xlu0 %v388, 12
        %v873 = vpop.permute.xlu0 %872
        %874 = vrot.lane.b32.xlu0 %v390, 12
        %v875 = vpop.permute.xlu0 %874
        %876 = vrot.lane.b32.xlu0 %v391, 12
        %v877 = vpop.permute.xlu0 %876
        %878 = vrot.lane.b32.xlu0 %v393, 12
        %v879 = vpop.permute.xlu0 %878
        %880 = vrot.lane.b32.xlu0 %v394, 12
        %v881 = vpop.permute.xlu0 %880
        %882 = vrot.lane.b32.xlu0 %v396, 12
        %v883 = vpop.permute.xlu0 %882
        %884 = vrot.lane.b32.xlu0 %v397, 12
        %v885 = vpop.permute.xlu0 %884
        %886 = vrot.lane.b32.xlu0 %v399, 12
        %v887 = vpop.permute.xlu0 %886
        %888 = vrot.lane.b32.xlu0 %v400, 12
        %v889 = vpop.permute.xlu0 %888
        %890 = vrot.lane.b32.xlu0 %v402, 12
        %v891 = vpop.permute.xlu0 %890
        %892 = vrot.lane.b32.xlu0 %v403, 12
        %v893 = vpop.permute.xlu0 %892
        %894 = vrot.lane.b32.xlu0 %v405, 12
        %v895 = vpop.permute.xlu0 %894
        %896 = vrot.lane.b32.xlu0 %v406, 12
        %v897 = vpop.permute.xlu0 %896
        %898 = vrot.lane.b32.xlu0 %v408, 12
        %v899 = vpop.permute.xlu0 %898
        %900 = vrot.lane.b32.xlu0 %v409, 12
        %v901 = vpop.permute.xlu0 %900
        %902 = vrot.lane.b32.xlu0 %v411, 12
        %v903 = vpop.permute.xlu0 %902
        %904 = vrot.lane.b32.xlu0 %v412, 12
        %v905 = vpop.permute.xlu0 %904
        %906 = vrot.lane.b32.xlu0 %v414, 12
        %v907 = vpop.permute.xlu0 %906
        %908 = vrot.lane.b32.xlu0 %v415, 12
        %v909 = vpop.permute.xlu0 %908
        %910 = vrot.lane.b32.xlu0 %v417, 12
        %v911 = vpop.permute.xlu0 %910
        %912 = vrot.lane.b32.xlu0 %v418, 12
        %v913 = vpop.permute.xlu0 %912
        %914 = vrot.lane.b32.xlu0 %v420, 12
        %v915 = vpop.permute.xlu0 %914
        %916 = vrot.lane.b32.xlu0 %v421, 12
        %v917 = vpop.permute.xlu0 %916
        %950 = vrot.lane.b32.xlu0 %v482, 16
        %v951 = vpop.permute.xlu0 %950
        %952 = vrot.lane.b32.xlu0 %v484, 16
        %v953 = vpop.permute.xlu0 %952
        %954 = vrot.lane.b32.xlu0 %v487, 16
        %v955 = vpop.permute.xlu0 %954
        %956 = vrot.lane.b32.xlu0 %v489, 16
        %v957 = vpop.permute.xlu0 %956
        %958 = vrot.lane.b32.xlu0 %v492, 16
        %v959 = vpop.permute.xlu0 %958
        %960 = vrot.lane.b32.xlu0 %v494, 16
        %v961 = vpop.permute.xlu0 %960
        %962 = vrot.lane.b32.xlu0 %v497, 16
        %v963 = vpop.permute.xlu0 %962
        %964 = vrot.lane.b32.xlu0 %v499, 16
        %v965 = vpop.permute.xlu0 %964
        %966 = vrot.lane.b32.xlu0 %v502, 16
        %v967 = vpop.permute.xlu0 %966
        %968 = vrot.lane.b32.xlu0 %v504, 16
        %v969 = vpop.permute.xlu0 %968
        %970 = vrot.lane.b32.xlu0 %v507, 16
        %v971 = vpop.permute.xlu0 %970
        %972 = vrot.lane.b32.xlu0 %v509, 16
        %v973 = vpop.permute.xlu0 %972
        %974 = vrot.lane.b32.xlu0 %v512, 16
        %v975 = vpop.permute.xlu0 %974
        %976 = vrot.lane.b32.xlu0 %v514, 16
        %v977 = vpop.permute.xlu0 %976
        %978 = vrot.lane.b32.xlu0 %v517, 16
        %v979 = vpop.permute.xlu0 %978
        %980 = vrot.lane.b32.xlu0 %v519, 16
        %v981 = vpop.permute.xlu0 %980
        %982 = vrot.lane.b32.xlu0 %v522, 16
        %v983 = vpop.permute.xlu0 %982
        %984 = vrot.lane.b32.xlu0 %v524, 16
        %v985 = vpop.permute.xlu0 %984
        %986 = vrot.lane.b32.xlu0 %v527, 16
        %v987 = vpop.permute.xlu0 %986
        %988 = vrot.lane.b32.xlu0 %v529, 16
        %v989 = vpop.permute.xlu0 %988
        %990 = vrot.lane.b32.xlu0 %v532, 16
        %v991 = vpop.permute.xlu0 %990
        %992 = vrot.lane.b32.xlu0 %v534, 16
        %v993 = vpop.permute.xlu0 %992
        %994 = vrot.lane.b32.xlu0 %v537, 16
        %v995 = vpop.permute.xlu0 %994
        %996 = vrot.lane.b32.xlu0 %v539, 16
        %v997 = vpop.permute.xlu0 %996
        %998 = vrot.lane.b32.xlu0 %v542, 16
        %v999 = vpop.permute.xlu0 %998
        %1000 = vrot.lane.b32.xlu0 %v544, 16
        %v1001 = vpop.permute.xlu0 %1000
        %1002 = vrot.lane.b32.xlu0 %v547, 16
        %v1003 = vpop.permute.xlu0 %1002
        %1004 = vrot.lane.b32.xlu0 %v549, 16
        %v1005 = vpop.permute.xlu0 %1004
        %1006 = vrot.lane.b32.xlu0 %v552, 16
        %v1007 = vpop.permute.xlu0 %1006
        %1008 = vrot.lane.b32.xlu0 %v554, 16
        %v1009 = vpop.permute.xlu0 %1008
        %1010 = vrot.lane.b32.xlu0 %v641, 16
        %v1011 = vpop.permute.xlu0 %1010
        %1012 = vrot.lane.b32.xlu0 %v643, 16
        %v1013 = vpop.permute.xlu0 %1012
        %1046 = vrot.lane.b32.xlu0 %v563, 20
        %v1047 = vpop.permute.xlu0 %1046
        %1048 = vrot.lane.b32.xlu0 %v565, 20
        %v1049 = vpop.permute.xlu0 %1048
        %1050 = vrot.lane.b32.xlu0 %v568, 20
        %v1051 = vpop.permute.xlu0 %1050
        %1052 = vrot.lane.b32.xlu0 %v570, 20
        %v1053 = vpop.permute.xlu0 %1052
        %1054 = vrot.lane.b32.xlu0 %v573, 20
        %v1055 = vpop.permute.xlu0 %1054
        %1056 = vrot.lane.b32.xlu0 %v575, 20
        %v1057 = vpop.permute.xlu0 %1056
        %1058 = vrot.lane.b32.xlu0 %v578, 20
        %v1059 = vpop.permute.xlu0 %1058
        %1060 = vrot.lane.b32.xlu0 %v580, 20
        %v1061 = vpop.permute.xlu0 %1060
        %1062 = vrot.lane.b32.xlu0 %v583, 20
        %v1063 = vpop.permute.xlu0 %1062
        %1064 = vrot.lane.b32.xlu0 %v585, 20
        %v1065 = vpop.permute.xlu0 %1064
        %1066 = vrot.lane.b32.xlu0 %v588, 20
        %v1067 = vpop.permute.xlu0 %1066
        %1068 = vrot.lane.b32.xlu0 %v590, 20
        %v1069 = vpop.permute.xlu0 %1068
        %1070 = vrot.lane.b32.xlu0 %v593, 20
        %v1071 = vpop.permute.xlu0 %1070
        %1072 = vrot.lane.b32.xlu0 %v595, 20
        %v1073 = vpop.permute.xlu0 %1072
        %1074 = vrot.lane.b32.xlu0 %v598, 20
        %v1075 = vpop.permute.xlu0 %1074
        %1076 = vrot.lane.b32.xlu0 %v600, 20
        %v1077 = vpop.permute.xlu0 %1076
        %1078 = vrot.lane.b32.xlu0 %v603, 20
        %v1079 = vpop.permute.xlu0 %1078
        %1080 = vrot.lane.b32.xlu0 %v605, 20
        %v1081 = vpop.permute.xlu0 %1080
        %1082 = vrot.lane.b32.xlu0 %v608, 20
        %v1083 = vpop.permute.xlu0 %1082
        %1084 = vrot.lane.b32.xlu0 %v610, 20
        %v1085 = vpop.permute.xlu0 %1084
        %1086 = vrot.lane.b32.xlu0 %v613, 20
        %v1087 = vpop.permute.xlu0 %1086
        %1088 = vrot.lane.b32.xlu0 %v615, 20
        %v1089 = vpop.permute.xlu0 %1088
        %1090 = vrot.lane.b32.xlu0 %v618, 20
        %v1091 = vpop.permute.xlu0 %1090
        %1092 = vrot.lane.b32.xlu0 %v620, 20
        %v1093 = vpop.permute.xlu0 %1092
        %1094 = vrot.lane.b32.xlu0 %v623, 20
        %v1095 = vpop.permute.xlu0 %1094
        %1096 = vrot.lane.b32.xlu0 %v625, 20
        %v1097 = vpop.permute.xlu0 %1096
        %1098 = vrot.lane.b32.xlu0 %v628, 20
        %v1099 = vpop.permute.xlu0 %1098
        %1100 = vrot.lane.b32.xlu0 %v630, 20
        %v1101 = vpop.permute.xlu0 %1100
        %1102 = vrot.lane.b32.xlu0 %v633, 20
        %v1103 = vpop.permute.xlu0 %1102
        %1104 = vrot.lane.b32.xlu0 %v635, 20
        %v1105 = vpop.permute.xlu0 %1104
        %1106 = vrot.lane.b32.xlu0 %v646, 20
        %v1107 = vpop.permute.xlu0 %1106
        %1108 = vrot.lane.b32.xlu0 %v648, 20
        %v1109 = vpop.permute.xlu0 %1108
        %1142 = vrot.lane.b32.xlu0 %v378, 24
        %v1143 = vpop.permute.xlu0 %1142
        %1144 = vrot.lane.b32.xlu0 %v379, 24
        %v1145 = vpop.permute.xlu0 %1144
        %1146 = vrot.lane.b32.xlu0 %v381, 24
        %v1147 = vpop.permute.xlu0 %1146
        %1148 = vrot.lane.b32.xlu0 %v382, 24
        %v1149 = vpop.permute.xlu0 %1148
        %1150 = vrot.lane.b32.xlu0 %v384, 24
        %v1151 = vpop.permute.xlu0 %1150
        %1152 = vrot.lane.b32.xlu0 %v385, 24
        %v1153 = vpop.permute.xlu0 %1152
        %1154 = vrot.lane.b32.xlu0 %v387, 24
        %v1155 = vpop.permute.xlu0 %1154
        %1156 = vrot.lane.b32.xlu0 %v388, 24
        %v1157 = vpop.permute.xlu0 %1156
        %1158 = vrot.lane.b32.xlu0 %v390, 24
        %v1159 = vpop.permute.xlu0 %1158
        %1160 = vrot.lane.b32.xlu0 %v391, 24
        %v1161 = vpop.permute.xlu0 %1160
        %1162 = vrot.lane.b32.xlu0 %v393, 24
        %v1163 = vpop.permute.xlu0 %1162
        %1164 = vrot.lane.b32.xlu0 %v394, 24
        %v1165 = vpop.permute.xlu0 %1164
        %1166 = vrot.lane.b32.xlu0 %v396, 24
        %v1167 = vpop.permute.xlu0 %1166
        %1168 = vrot.lane.b32.xlu0 %v397, 24
        %v1169 = vpop.permute.xlu0 %1168
        %1170 = vrot.lane.b32.xlu0 %v399, 24
        %v1171 = vpop.permute.xlu0 %1170
        %1172 = vrot.lane.b32.xlu0 %v400, 24
        %v1173 = vpop.permute.xlu0 %1172
        %1174 = vrot.lane.b32.xlu0 %v402, 24
        %v1175 = vpop.permute.xlu0 %1174
        %1176 = vrot.lane.b32.xlu0 %v403, 24
        %v1177 = vpop.permute.xlu0 %1176
        %1178 = vrot.lane.b32.xlu0 %v405, 24
        %v1179 = vpop.permute.xlu0 %1178
        %1180 = vrot.lane.b32.xlu0 %v406, 24
        %v1181 = vpop.permute.xlu0 %1180
        %1182 = vrot.lane.b32.xlu0 %v408, 24
        %v1183 = vpop.permute.xlu0 %1182
        %1184 = vrot.lane.b32.xlu0 %v409, 24
        %v1185 = vpop.permute.xlu0 %1184
        %1186 = vrot.lane.b32.xlu0 %v411, 24
        %v1187 = vpop.permute.xlu0 %1186
        %1188 = vrot.lane.b32.xlu0 %v412, 24
        %v1189 = vpop.permute.xlu0 %1188
        %1190 = vrot.lane.b32.xlu0 %v414, 24
        %v1191 = vpop.permute.xlu0 %1190
        %1192 = vrot.lane.b32.xlu0 %v415, 24
        %v1193 = vpop.permute.xlu0 %1192
        %1194 = vrot.lane.b32.xlu0 %v417, 24
        %v1195 = vpop.permute.xlu0 %1194
        %1196 = vrot.lane.b32.xlu0 %v418, 24
        %v1197 = vpop.permute.xlu0 %1196
        %1198 = vrot.lane.b32.xlu0 %v420, 24
        %v1199 = vpop.permute.xlu0 %1198
        %1200 = vrot.lane.b32.xlu0 %v421, 24
        %v1201 = vpop.permute.xlu0 %1200
        %1202 = vrot.lane.b32.xlu0 %v423, 24
        %v1203 = vpop.permute.xlu0 %1202
        %1204 = vrot.lane.b32.xlu0 %v424, 24
        %v1205 = vpop.permute.xlu0 %1204
        %1238 = vrot.lane.b32.xlu0 %v487, 28
        %v1239 = vpop.permute.xlu0 %1238
        %1240 = vrot.lane.b32.xlu0 %v489, 28
        %v1241 = vpop.permute.xlu0 %1240
        %1242 = vrot.lane.b32.xlu0 %v492, 28
        %v1243 = vpop.permute.xlu0 %1242
        %1244 = vrot.lane.b32.xlu0 %v494, 28
        %v1245 = vpop.permute.xlu0 %1244
        %1246 = vrot.lane.b32.xlu0 %v497, 28
        %v1247 = vpop.permute.xlu0 %1246
        %1248 = vrot.lane.b32.xlu0 %v499, 28
        %v1249 = vpop.permute.xlu0 %1248
        %1250 = vrot.lane.b32.xlu0 %v502, 28
        %v1251 = vpop.permute.xlu0 %1250
        %1252 = vrot.lane.b32.xlu0 %v504, 28
        %v1253 = vpop.permute.xlu0 %1252
        %1254 = vrot.lane.b32.xlu0 %v507, 28
        %v1255 = vpop.permute.xlu0 %1254
        %1256 = vrot.lane.b32.xlu0 %v509, 28
        %v1257 = vpop.permute.xlu0 %1256
        %1258 = vrot.lane.b32.xlu0 %v512, 28
        %v1259 = vpop.permute.xlu0 %1258
        %1260 = vrot.lane.b32.xlu0 %v514, 28
        %v1261 = vpop.permute.xlu0 %1260
        %1262 = vrot.lane.b32.xlu0 %v517, 28
        %v1263 = vpop.permute.xlu0 %1262
        %1264 = vrot.lane.b32.xlu0 %v519, 28
        %v1265 = vpop.permute.xlu0 %1264
        %1266 = vrot.lane.b32.xlu0 %v522, 28
        %v1267 = vpop.permute.xlu0 %1266
        %1268 = vrot.lane.b32.xlu0 %v524, 28
        %v1269 = vpop.permute.xlu0 %1268
        %1270 = vrot.lane.b32.xlu0 %v527, 28
        %v1271 = vpop.permute.xlu0 %1270
        %1272 = vrot.lane.b32.xlu0 %v529, 28
        %v1273 = vpop.permute.xlu0 %1272
        %1274 = vrot.lane.b32.xlu0 %v532, 28
        %v1275 = vpop.permute.xlu0 %1274
        %1276 = vrot.lane.b32.xlu0 %v534, 28
        %v1277 = vpop.permute.xlu0 %1276
        %1278 = vrot.lane.b32.xlu0 %v537, 28
        %v1279 = vpop.permute.xlu0 %1278
        %1280 = vrot.lane.b32.xlu0 %v539, 28
        %v1281 = vpop.permute.xlu0 %1280
        %1282 = vrot.lane.b32.xlu0 %v542, 28
        %v1283 = vpop.permute.xlu0 %1282
        %1284 = vrot.lane.b32.xlu0 %v544, 28
        %v1285 = vpop.permute.xlu0 %1284
        %1286 = vrot.lane.b32.xlu0 %v547, 28
        %v1287 = vpop.permute.xlu0 %1286
        %1288 = vrot.lane.b32.xlu0 %v549, 28
        %v1289 = vpop.permute.xlu0 %1288
        %1290 = vrot.lane.b32.xlu0 %v552, 28
        %v1291 = vpop.permute.xlu0 %1290
        %1292 = vrot.lane.b32.xlu0 %v554, 28
        %v1293 = vpop.permute.xlu0 %1292
        %1294 = vrot.lane.b32.xlu0 %v641, 28
        %v1295 = vpop.permute.xlu0 %1294
        %1296 = vrot.lane.b32.xlu0 %v643, 28
        %v1297 = vpop.permute.xlu0 %1296
        %1298 = vrot.lane.b32.xlu0 %v654, 28
        %v1299 = vpop.permute.xlu0 %1298
        %1300 = vrot.lane.b32.xlu0 %v656, 28
        %v1301 = vpop.permute.xlu0 %1300
        %1334 = vrot.lane.b32.xlu0 %v568, 32
        %v1335 = vpop.permute.xlu0 %1334
        %1336 = vrot.lane.b32.xlu0 %v570, 32
        %v1337 = vpop.permute.xlu0 %1336
        %1338 = vrot.lane.b32.xlu0 %v573, 32
        %v1339 = vpop.permute.xlu0 %1338
        %1340 = vrot.lane.b32.xlu0 %v575, 32
        %v1341 = vpop.permute.xlu0 %1340
        %1342 = vrot.lane.b32.xlu0 %v578, 32
        %v1343 = vpop.permute.xlu0 %1342
        %1344 = vrot.lane.b32.xlu0 %v580, 32
        %v1345 = vpop.permute.xlu0 %1344
        %1346 = vrot.lane.b32.xlu0 %v583, 32
        %v1347 = vpop.permute.xlu0 %1346
        %1348 = vrot.lane.b32.xlu0 %v585, 32
        %v1349 = vpop.permute.xlu0 %1348
        %1350 = vrot.lane.b32.xlu0 %v588, 32
        %v1351 = vpop.permute.xlu0 %1350
        %1352 = vrot.lane.b32.xlu0 %v590, 32
        %v1353 = vpop.permute.xlu0 %1352
        %1354 = vrot.lane.b32.xlu0 %v593, 32
        %v1355 = vpop.permute.xlu0 %1354
        %1356 = vrot.lane.b32.xlu0 %v595, 32
        %v1357 = vpop.permute.xlu0 %1356
        %1358 = vrot.lane.b32.xlu0 %v598, 32
        %v1359 = vpop.permute.xlu0 %1358
        %1360 = vrot.lane.b32.xlu0 %v600, 32
        %v1361 = vpop.permute.xlu0 %1360
        %1362 = vrot.lane.b32.xlu0 %v603, 32
        %v1363 = vpop.permute.xlu0 %1362
        %1364 = vrot.lane.b32.xlu0 %v605, 32
        %v1365 = vpop.permute.xlu0 %1364
        %1366 = vrot.lane.b32.xlu0 %v608, 32
        %v1367 = vpop.permute.xlu0 %1366
        %1368 = vrot.lane.b32.xlu0 %v610, 32
        %v1369 = vpop.permute.xlu0 %1368
        %1370 = vrot.lane.b32.xlu0 %v613, 32
        %v1371 = vpop.permute.xlu0 %1370
        %1372 = vrot.lane.b32.xlu0 %v615, 32
        %v1373 = vpop.permute.xlu0 %1372
        %1374 = vrot.lane.b32.xlu0 %v618, 32
        %v1375 = vpop.permute.xlu0 %1374
        %1376 = vrot.lane.b32.xlu0 %v620, 32
        %v1377 = vpop.permute.xlu0 %1376
        %1378 = vrot.lane.b32.xlu0 %v623, 32
        %v1379 = vpop.permute.xlu0 %1378
        %1380 = vrot.lane.b32.xlu0 %v625, 32
        %v1381 = vpop.permute.xlu0 %1380
        %1382 = vrot.lane.b32.xlu0 %v628, 32
        %v1383 = vpop.permute.xlu0 %1382
        %1384 = vrot.lane.b32.xlu0 %v630, 32
        %v1385 = vpop.permute.xlu0 %1384
        %1386 = vrot.lane.b32.xlu0 %v633, 32
        %v1387 = vpop.permute.xlu0 %1386
        %1388 = vrot.lane.b32.xlu0 %v635, 32
        %v1389 = vpop.permute.xlu0 %1388
        %1390 = vrot.lane.b32.xlu0 %v646, 32
        %v1391 = vpop.permute.xlu0 %1390
        %1392 = vrot.lane.b32.xlu0 %v648, 32
        %v1393 = vpop.permute.xlu0 %1392
        %1394 = vrot.lane.b32.xlu0 %v659, 32
        %v1395 = vpop.permute.xlu0 %1394
        %1396 = vrot.lane.b32.xlu0 %v661, 32
        %v1397 = vpop.permute.xlu0 %1396
        %v1430 = vsel %vm261, %v372, %v663
        %v1431 = vsel %vm261, %v373, %v665
        %v1432 = vsel %vm261, %v375, %v667
        %v1433 = vsel %vm261, %v376, %v669
        %v1434 = vsel %vm261, %v378, %v671
        %v1435 = vsel %vm261, %v379, %v673
        %v1436 = vsel %vm261, %v381, %v675
        %v1437 = vsel %vm261, %v382, %v677
        %v1438 = vsel %vm261, %v384, %v679
        %v1439 = vsel %vm261, %v385, %v681
        %v1440 = vsel %vm261, %v387, %v683
        %v1441 = vsel %vm261, %v388, %v685
        %v1442 = vsel %vm261, %v390, %v687
        %v1443 = vsel %vm261, %v391, %v689
        %v1444 = vsel %vm261, %v393, %v691
        %v1445 = vsel %vm261, %v394, %v693
        %v1446 = vsel %vm261, %v396, %v695
        %v1447 = vsel %vm261, %v397, %v697
        %v1448 = vsel %vm261, %v399, %v699
        %v1449 = vsel %vm261, %v400, %v701
        %v1450 = vsel %vm261, %v402, %v703
        %v1451 = vsel %vm261, %v403, %v705
        %v1452 = vsel %vm261, %v405, %v707
        %v1453 = vsel %vm261, %v406, %v709
        %v1454 = vsel %vm261, %v408, %v711
        %v1455 = vsel %vm261, %v409, %v713
        %v1456 = vsel %vm261, %v411, %v715
        %v1457 = vsel %vm261, %v412, %v717
        %v1458 = vsel %vm261, %v414, %v719
        %v1459 = vsel %vm261, %v415, %v721
        %v1460 = vsel %vm261, %v417, %v723
        %v1461 = vsel %vm261, %v418, %v725
        %vm1462 = vcmask 64512
        %v1463 = vsel %vm1462, %v1430, %v759
        %v1464 = vsel %vm1462, %v1431, %v761
        %v1465 = vsel %vm1462, %v1432, %v763
        %v1466 = vsel %vm1462, %v1433, %v765
        %v1467 = vsel %vm1462, %v1434, %v767
        %v1468 = vsel %vm1462, %v1435, %v769
        %v1469 = vsel %vm1462, %v1436, %v771
        %v1470 = vsel %vm1462, %v1437, %v773
        %v1471 = vsel %vm1462, %v1438, %v775
        %v1472 = vsel %vm1462, %v1439, %v777
        %v1473 = vsel %vm1462, %v1440, %v779
        %v1474 = vsel %vm1462, %v1441, %v781
        %v1475 = vsel %vm1462, %v1442, %v783
        %v1476 = vsel %vm1462, %v1443, %v785
        %v1477 = vsel %vm1462, %v1444, %v787
        %v1478 = vsel %vm1462, %v1445, %v789
        %v1479 = vsel %vm1462, %v1446, %v791
        %v1480 = vsel %vm1462, %v1447, %v793
        %v1481 = vsel %vm1462, %v1448, %v795
        %v1482 = vsel %vm1462, %v1449, %v797
        %v1483 = vsel %vm1462, %v1450, %v799
        %v1484 = vsel %vm1462, %v1451, %v801
        %v1485 = vsel %vm1462, %v1452, %v803
        %v1486 = vsel %vm1462, %v1453, %v805
        %v1487 = vsel %vm1462, %v1454, %v807
        %v1488 = vsel %vm1462, %v1455, %v809
        %v1489 = vsel %vm1462, %v1456, %v811
        %v1490 = vsel %vm1462, %v1457, %v813
        %v1491 = vsel %vm1462, %v1458, %v815
        %v1492 = vsel %vm1462, %v1459, %v817
        %v1493 = vsel %vm1462, %v1460, %v819
        %v1494 = vsel %vm1462, %v1461, %v821
        %vm1495 = vcmask 97280
        %v1496 = vsel %vm1495, %v1463, %v855
        %v1497 = vsel %vm1495, %v1464, %v857
        %v1498 = vsel %vm1495, %v1465, %v859
        %v1499 = vsel %vm1495, %v1466, %v861
        %v1500 = vsel %vm1495, %v1467, %v863
        %v1501 = vsel %vm1495, %v1468, %v865
        %v1502 = vsel %vm1495, %v1469, %v867
        %v1503 = vsel %vm1495, %v1470, %v869
        %v1504 = vsel %vm1495, %v1471, %v871
        %v1505 = vsel %vm1495, %v1472, %v873
        %v1506 = vsel %vm1495, %v1473, %v875
        %v1507 = vsel %vm1495, %v1474, %v877
        %v1508 = vsel %vm1495, %v1475, %v879
        %v1509 = vsel %vm1495, %v1476, %v881
        %v1510 = vsel %vm1495, %v1477, %v883
        %v1511 = vsel %vm1495, %v1478, %v885
        %v1512 = vsel %vm1495, %v1479, %v887
        %v1513 = vsel %vm1495, %v1480, %v889
        %v1514 = vsel %vm1495, %v1481, %v891
        %v1515 = vsel %vm1495, %v1482, %v893
        %v1516 = vsel %vm1495, %v1483, %v895
        %v1517 = vsel %vm1495, %v1484, %v897
        %v1518 = vsel %vm1495, %v1485, %v899
        %v1519 = vsel %vm1495, %v1486, %v901
        %v1520 = vsel %vm1495, %v1487, %v903
        %v1521 = vsel %vm1495, %v1488, %v905
        %v1522 = vsel %vm1495, %v1489, %v907
        %v1523 = vsel %vm1495, %v1490, %v909
        %v1524 = vsel %vm1495, %v1491, %v911
        %v1525 = vsel %vm1495, %v1492, %v913
        %v1526 = vsel %vm1495, %v1493, %v915
        %v1527 = vsel %vm1495, %v1494, %v917
        %vm1528 = vcmask 130048
        %v1529 = vsel %vm1528, %v1496, %v951
        %v1530 = vsel %vm1528, %v1497, %v953
        %v1531 = vsel %vm1528, %v1498, %v955
        %v1532 = vsel %vm1528, %v1499, %v957
        %v1533 = vsel %vm1528, %v1500, %v959
        %v1534 = vsel %vm1528, %v1501, %v961
        %v1535 = vsel %vm1528, %v1502, %v963
        %v1536 = vsel %vm1528, %v1503, %v965
        %v1537 = vsel %vm1528, %v1504, %v967
        %v1538 = vsel %vm1528, %v1505, %v969
        %v1539 = vsel %vm1528, %v1506, %v971
        %v1540 = vsel %vm1528, %v1507, %v973
        %v1541 = vsel %vm1528, %v1508, %v975
        %v1542 = vsel %vm1528, %v1509, %v977
        %v1543 = vsel %vm1528, %v1510, %v979
        %v1544 = vsel %vm1528, %v1511, %v981
        %v1545 = vsel %vm1528, %v1512, %v983
        %v1546 = vsel %vm1528, %v1513, %v985
        %v1547 = vsel %vm1528, %v1514, %v987
        %v1548 = vsel %vm1528, %v1515, %v989
        %v1549 = vsel %vm1528, %v1516, %v991
        %v1550 = vsel %vm1528, %v1517, %v993
        %v1551 = vsel %vm1528, %v1518, %v995
        %v1552 = vsel %vm1528, %v1519, %v997
        %v1553 = vsel %vm1528, %v1520, %v999
        %v1554 = vsel %vm1528, %v1521, %v1001
        %v1555 = vsel %vm1528, %v1522, %v1003
        %v1556 = vsel %vm1528, %v1523, %v1005
        %v1557 = vsel %vm1528, %v1524, %v1007
        %v1558 = vsel %vm1528, %v1525, %v1009
        %v1559 = vsel %vm1528, %v1526, %v1011
        %v1560 = vsel %vm1528, %v1527, %v1013
        %vm1561 = vcmask 162816
        %v1562 = vsel %vm1561, %v1529, %v1047
        %v1563 = vsel %vm1561, %v1530, %v1049
        %v1564 = vsel %vm1561, %v1531, %v1051
        %v1565 = vsel %vm1561, %v1532, %v1053
        %v1566 = vsel %vm1561, %v1533, %v1055
        %v1567 = vsel %vm1561, %v1534, %v1057
        %v1568 = vsel %vm1561, %v1535, %v1059
        %v1569 = vsel %vm1561, %v1536, %v1061
        %v1570 = vsel %vm1561, %v1537, %v1063
        %v1571 = vsel %vm1561, %v1538, %v1065
        %v1572 = vsel %vm1561, %v1539, %v1067
        %v1573 = vsel %vm1561, %v1540, %v1069
        %v1574 = vsel %vm1561, %v1541, %v1071
        %v1575 = vsel %vm1561, %v1542, %v1073
        %v1576 = vsel %vm1561, %v1543, %v1075
        %v1577 = vsel %vm1561, %v1544, %v1077
        %v1578 = vsel %vm1561, %v1545, %v1079
        %v1579 = vsel %vm1561, %v1546, %v1081
        %v1580 = vsel %vm1561, %v1547, %v1083
        %v1581 = vsel %vm1561, %v1548, %v1085
        %v1582 = vsel %vm1561, %v1549, %v1087
        %v1583 = vsel %vm1561, %v1550, %v1089
        %v1584 = vsel %vm1561, %v1551, %v1091
        %v1585 = vsel %vm1561, %v1552, %v1093
        %v1586 = vsel %vm1561, %v1553, %v1095
        %v1587 = vsel %vm1561, %v1554, %v1097
        %v1588 = vsel %vm1561, %v1555, %v1099
        %v1589 = vsel %vm1561, %v1556, %v1101
        %v1590 = vsel %vm1561, %v1557, %v1103
        %v1591 = vsel %vm1561, %v1558, %v1105
        %v1592 = vsel %vm1561, %v1559, %v1107
        %v1593 = vsel %vm1561, %v1560, %v1109
        %vm1594 = vcmask 195584
        %v1595 = vsel %vm1594, %v1562, %v1143
        %v1596 = vsel %vm1594, %v1563, %v1145
        %v1597 = vsel %vm1594, %v1564, %v1147
        %v1598 = vsel %vm1594, %v1565, %v1149
        %v1599 = vsel %vm1594, %v1566, %v1151
        %v1600 = vsel %vm1594, %v1567, %v1153
        %v1601 = vsel %vm1594, %v1568, %v1155
        %v1602 = vsel %vm1594, %v1569, %v1157
        %v1603 = vsel %vm1594, %v1570, %v1159
        %v1604 = vsel %vm1594, %v1571, %v1161
        %v1605 = vsel %vm1594, %v1572, %v1163
        %v1606 = vsel %vm1594, %v1573, %v1165
        %v1607 = vsel %vm1594, %v1574, %v1167
        %v1608 = vsel %vm1594, %v1575, %v1169
        %v1609 = vsel %vm1594, %v1576, %v1171
        %v1610 = vsel %vm1594, %v1577, %v1173
        %v1611 = vsel %vm1594, %v1578, %v1175
        %v1612 = vsel %vm1594, %v1579, %v1177
        %v1613 = vsel %vm1594, %v1580, %v1179
        %v1614 = vsel %vm1594, %v1581, %v1181
        %v1615 = vsel %vm1594, %v1582, %v1183
        %v1616 = vsel %vm1594, %v1583, %v1185
        %v1617 = vsel %vm1594, %v1584, %v1187
        %v1618 = vsel %vm1594, %v1585, %v1189
        %v1619 = vsel %vm1594, %v1586, %v1191
        %v1620 = vsel %vm1594, %v1587, %v1193
        %v1621 = vsel %vm1594, %v1588, %v1195
        %v1622 = vsel %vm1594, %v1589, %v1197
        %v1623 = vsel %vm1594, %v1590, %v1199
        %v1624 = vsel %vm1594, %v1591, %v1201
        %v1625 = vsel %vm1594, %v1592, %v1203
        %v1626 = vsel %vm1594, %v1593, %v1205
        %vm1627 = vcmask 228352
        %v1628 = vsel %vm1627, %v1595, %v1239
        %v1629 = vsel %vm1627, %v1596, %v1241
        %v1630 = vsel %vm1627, %v1597, %v1243
        %v1631 = vsel %vm1627, %v1598, %v1245
        %v1632 = vsel %vm1627, %v1599, %v1247
        %v1633 = vsel %vm1627, %v1600, %v1249
        %v1634 = vsel %vm1627, %v1601, %v1251
        %v1635 = vsel %vm1627, %v1602, %v1253
        %v1636 = vsel %vm1627, %v1603, %v1255
        %v1637 = vsel %vm1627, %v1604, %v1257
        %v1638 = vsel %vm1627, %v1605, %v1259
        %v1639 = vsel %vm1627, %v1606, %v1261
        %v1640 = vsel %vm1627, %v1607, %v1263
        %v1641 = vsel %vm1627, %v1608, %v1265
        %v1642 = vsel %vm1627, %v1609, %v1267
        %v1643 = vsel %vm1627, %v1610, %v1269
        %v1644 = vsel %vm1627, %v1611, %v1271
        %v1645 = vsel %vm1627, %v1612, %v1273
        %v1646 = vsel %vm1627, %v1613, %v1275
        %v1647 = vsel %vm1627, %v1614, %v1277
        %v1648 = vsel %vm1627, %v1615, %v1279
        %v1649 = vsel %vm1627, %v1616, %v1281
        %v1650 = vsel %vm1627, %v1617, %v1283
        %v1651 = vsel %vm1627, %v1618, %v1285
        %v1652 = vsel %vm1627, %v1619, %v1287
        %v1653 = vsel %vm1627, %v1620, %v1289
        %v1654 = vsel %vm1627, %v1621, %v1291
        %v1655 = vsel %vm1627, %v1622, %v1293
        %v1656 = vsel %vm1627, %v1623, %v1295
        %v1657 = vsel %vm1627, %v1624, %v1297
        %v1658 = vsel %vm1627, %v1625, %v1299
        %v1659 = vsel %vm1627, %v1626, %v1301
        %vm1660 = vcmask 261120
        %v1661 = vsel %vm1660, %v1628, %v1335
        %v1662 = vsel %vm1660, %v1629, %v1337
        %v1663 = vsel %vm1660, %v1630, %v1339
        %v1664 = vsel %vm1660, %v1631, %v1341
        %v1665 = vsel %vm1660, %v1632, %v1343
        %v1666 = vsel %vm1660, %v1633, %v1345
        %v1667 = vsel %vm1660, %v1634, %v1347
        %v1668 = vsel %vm1660, %v1635, %v1349
        %v1669 = vsel %vm1660, %v1636, %v1351
        %v1670 = vsel %vm1660, %v1637, %v1353
        %v1671 = vsel %vm1660, %v1638, %v1355
        %v1672 = vsel %vm1660, %v1639, %v1357
        %v1673 = vsel %vm1660, %v1640, %v1359
        %v1674 = vsel %vm1660, %v1641, %v1361
        %v1675 = vsel %vm1660, %v1642, %v1363
        %v1676 = vsel %vm1660, %v1643, %v1365
        %v1677 = vsel %vm1660, %v1644, %v1367
        %v1678 = vsel %vm1660, %v1645, %v1369
        %v1679 = vsel %vm1660, %v1646, %v1371
        %v1680 = vsel %vm1660, %v1647, %v1373
        %v1681 = vsel %vm1660, %v1648, %v1375
        %v1682 = vsel %vm1660, %v1649, %v1377
        %v1683 = vsel %vm1660, %v1650, %v1379
        %v1684 = vsel %vm1660, %v1651, %v1381
        %v1685 = vsel %vm1660, %v1652, %v1383
        %v1686 = vsel %vm1660, %v1653, %v1385
        %v1687 = vsel %vm1660, %v1654, %v1387
        %v1688 = vsel %vm1660, %v1655, %v1389
        %v1689 = vsel %vm1660, %v1656, %v1391
        %v1690 = vsel %vm1660, %v1657, %v1393
        %v1691 = vsel %vm1660, %v1658, %v1395
        %v1692 = vsel %vm1660, %v1659, %v1397
        %vm1693 = vcmask 293888
        %v1695 = vsel %vm1693, %v1661, 0
        %v1698 = vsel %vm1693, %v1662, 0
        %v1701 = vsel %vm1693, %v1663, 0
        %v1704 = vsel %vm1693, %v1664, 0
        %v1707 = vsel %vm1693, %v1665, 0
        %v1710 = vsel %vm1693, %v1666, 0
        %v1713 = vsel %vm1693, %v1667, 0
        %v1716 = vsel %vm1693, %v1668, 0
        %v1719 = vsel %vm1693, %v1669, 0
        %v1722 = vsel %vm1693, %v1670, 0
        %v1725 = vsel %vm1693, %v1671, 0
        %v1728 = vsel %vm1693, %v1672, 0
        %v1731 = vsel %vm1693, %v1673, 0
        %v1734 = vsel %vm1693, %v1674, 0
        %v1737 = vsel %vm1693, %v1675, 0
        %v1740 = vsel %vm1693, %v1676, 0
        %v1743 = vsel %vm1693, %v1677, 0
        %v1746 = vsel %vm1693, %v1678, 0
        %v1749 = vsel %vm1693, %v1679, 0
        %v1752 = vsel %vm1693, %v1680, 0
        %v1755 = vsel %vm1693, %v1681, 0
        %v1758 = vsel %vm1693, %v1682, 0
        %v1761 = vsel %vm1693, %v1683, 0
        %v1764 = vsel %vm1693, %v1684, 0
        %v1767 = vsel %vm1693, %v1685, 0
        %v1770 = vsel %vm1693, %v1686, 0
        %v1773 = vsel %vm1693, %v1687, 0
        %v1776 = vsel %vm1693, %v1688, 0
        %v1779 = vsel %vm1693, %v1689, 0
        %v1782 = vsel %vm1693, %v1690, 0
        %v1785 = vsel %vm1693, %v1691, 0
        %v1788 = vsel %vm1693, %v1692, 0
        %vm1790 = vcmask 1043456
        %v1792 = vsel %vm1790, %v254, 0
        %1794 = vmatprep.subr.mxu0 0.0
        %1795 = vmatpush1.msra.mxu0 %v250
        %1796 = vmatprep.subr.mxu0 0.0
        %1797 = vmatpush1.msra.mxu0 %v251
        %1798 = vmatprep.subr.mxu0 0.0
        %1799 = vmatpush1.msra.mxu0 %v252
        %1800 = vmatprep.subr.mxu0 0.0
        %1801 = vmatpush1.msra.mxu0 %v253
        %1802 = vmatprep.subr.mxu0 0.0
        %1803 = vmatpush1.msra.mxu0 %v1792
        %1804 = vmatprep.subr.mxu0 0.0
        %1805 = vmatpush1.msra.mxu0 0.0
        %1806 = vmatprep.subr.mxu0 0.0
        %1807 = vmatpush1.msra.mxu0 0.0
        %1808 = vmatprep.subr.mxu0 0.0
        %1809 = vmatpush1.msra.mxu0 0.0
        %1810 = vmatprep.subr.mxu0 0.0
        %1811 = vmatpush1.msra.mxu0 0.0
        %1812 = vmatprep.subr.mxu0 0.0
        %1813 = vmatpush1.msra.mxu0 0.0
        %1814 = vmatprep.subr.mxu0 0.0
        %1815 = vmatpush1.msra.mxu0 0.0
        %1816 = vmatprep.subr.mxu0 0.0
        %1817 = vmatpush1.msra.mxu0 0.0
        %1818 = vmatprep.subr.mxu0 0.0
        %1819 = vmatpush1.msra.mxu0 0.0
        %1820 = vmatprep.subr.mxu0 0.0
        %1821 = vmatpush1.msra.mxu0 0.0
        %1822 = vmatprep.subr.mxu0 0.0
        %1823 = vmatpush1.msra.mxu0 0.0
        %1824 = vmatprep.subr.mxu0 0.0
        %1825 = vmatpush1.msra.mxu0 0.0
        %1826 = vmatprep.subr.mxu0 0.0
        %1827 = vmatpush1.msra.mxu0 0.0
        %1828 = vmatprep.subr.mxu0 0.0
        %1829 = vmatpush1.msra.mxu0 0.0
        %1830 = vmatprep.subr.mxu0 0.0
        %1831 = vmatpush1.msra.mxu0 0.0
        %1832 = vmatprep.subr.mxu0 0.0
        %1833 = vmatpush1.msra.mxu0 0.0
        %1834 = vmatprep.subr.mxu0 0.0
        %1835 = vmatpush1.msra.mxu0 0.0
        %1836 = vmatprep.subr.mxu0 0.0
        %1837 = vmatpush1.msra.mxu0 0.0
        %1838 = vmatprep.subr.mxu0 0.0
        %1839 = vmatpush1.msra.mxu0 0.0
        %1840 = vmatprep.subr.mxu0 0.0
        %1841 = vmatpush1.msra.mxu0 0.0
        %1842 = vmatprep.subr.mxu0 0.0
        %1843 = vmatpush1.msra.mxu0 0.0
        %1844 = vmatprep.subr.mxu0 0.0
        %1845 = vmatpush1.msra.mxu0 0.0
        %1846 = vmatprep.subr.mxu0 0.0
        %1847 = vmatpush1.msra.mxu0 0.0
        %1848 = vmatprep.subr.mxu0 0.0
        %1849 = vmatpush1.msra.mxu0 0.0
        %1850 = vmatprep.subr.mxu0 0.0
        %1851 = vmatpush1.msra.mxu0 0.0
        %1852 = vmatprep.subr.mxu0 0.0
        %1853 = vmatpush1.msra.mxu0 0.0
        %1854 = vmatprep.subr.mxu0 0.0
        %1855 = vmatpush1.msra.mxu0 0.0
        %1856 = vmatprep.subr.mxu0 0.0
        %1857 = vmatpush1.msra.mxu0 0.0
        %1858 = vmatprep.mubr.f32.mxu0 0.0
        %1859 = vmatmul.mubr.f32.gmra.mrb[0].mxu0 %v1695
        %v1860 = vpop.f32.mrb[0].mxu0
        %v1861 = vadd.f32 0.0, %v1860
        %v1862 = vpop.f32.mrb[0].mxu0
        %1863 = vmatprep.mubr.f32.mxu0 0.0
        %1864 = vmatmul.mubr.f32.gmra.mrb[0].mxu0 %v1698
        %v1865 = vpop.f32.mrb[0].mxu0
        %v1866 = vadd.f32 0.0, %v1865
        %v1867 = vpop.f32.mrb[0].mxu0
        %1868 = vmatprep.mubr.f32.mxu0 0.0
        %1869 = vmatmul.mubr.f32.gmra.mrb[0].mxu0 %v1701
        %v1870 = vpop.f32.mrb[0].mxu0
        %v1871 = vadd.f32 0.0, %v1870
        %v1872 = vpop.f32.mrb[0].mxu0
        %1873 = vmatprep.mubr.f32.mxu0 0.0
        %1874 = vmatmul.mubr.f32.gmra.mrb[0].mxu0 %v1704
        %v1875 = vpop.f32.mrb[0].mxu0
        %v1876 = vadd.f32 0.0, %v1875
        %v1877 = vpop.f32.mrb[0].mxu0
        %1878 = vmatprep.mubr.f32.mxu0 0.0
        %1879 = vmatmul.mubr.f32.gmra.mrb[0].mxu0 %v1707
        %v1880 = vpop.f32.mrb[0].mxu0
        %v1881 = vadd.f32 0.0, %v1880
        %v1882 = vpop.f32.mrb[0].mxu0
        %1883 = vmatprep.mubr.f32.mxu0 0.0
        %1884 = vmatmul.mubr.f32.gmra.mrb[0].mxu0 %v1710
        %v1885 = vpop.f32.mrb[0].mxu0
        %v1886 = vadd.f32 0.0, %v1885
        %v1887 = vpop.f32.mrb[0].mxu0
        %1888 = vmatprep.mubr.f32.mxu0 0.0
        %1889 = vmatmul.mubr.f32.gmra.mrb[0].mxu0 %v1713
        %v1890 = vpop.f32.mrb[0].mxu0
        %v1891 = vadd.f32 0.0, %v1890
        %v1892 = vpop.f32.mrb[0].mxu0
        %1893 = vmatprep.mubr.f32.mxu0 0.0
        %1894 = vmatmul.mubr.f32.gmra.mrb[0].mxu0 %v1716
        %v1895 = vpop.f32.mrb[0].mxu0
        %v1896 = vadd.f32 0.0, %v1895
        %v1897 = vpop.f32.mrb[0].mxu0
        %1898 = vmatprep.mubr.f32.mxu0 0.0
        %1899 = vmatmul.mubr.f32.gmra.mrb[0].mxu0 %v1719
        %v1900 = vpop.f32.mrb[0].mxu0
        %v1901 = vadd.f32 0.0, %v1900
        %v1902 = vpop.f32.mrb[0].mxu0
        %1903 = vmatprep.mubr.f32.mxu0 0.0
        %1904 = vmatmul.mubr.f32.gmra.mrb[0].mxu0 %v1722
        %v1905 = vpop.f32.mrb[0].mxu0
        %v1906 = vadd.f32 0.0, %v1905
        %v1907 = vpop.f32.mrb[0].mxu0
        %1908 = vmatprep.mubr.f32.mxu0 0.0
        %1909 = vmatmul.mubr.f32.gmra.mrb[0].mxu0 %v1725
        %v1910 = vpop.f32.mrb[0].mxu0
        %v1911 = vadd.f32 0.0, %v1910
        %v1912 = vpop.f32.mrb[0].mxu0
        %1913 = vmatprep.mubr.f32.mxu0 0.0
        %1914 = vmatmul.mubr.f32.gmra.mrb[0].mxu0 %v1728
        %v1915 = vpop.f32.mrb[0].mxu0
        %v1916 = vadd.f32 0.0, %v1915
        %v1917 = vpop.f32.mrb[0].mxu0
        %1918 = vmatprep.mubr.f32.mxu0 0.0
        %1919 = vmatmul.mubr.f32.gmra.mrb[0].mxu0 %v1731
        %v1920 = vpop.f32.mrb[0].mxu0
        %v1921 = vadd.f32 0.0, %v1920
        %v1922 = vpop.f32.mrb[0].mxu0
        %1923 = vmatprep.mubr.f32.mxu0 0.0
        %1924 = vmatmul.mubr.f32.gmra.mrb[0].mxu0 %v1734
        %v1925 = vpop.f32.mrb[0].mxu0
        %v1926 = vadd.f32 0.0, %v1925
        %v1927 = vpop.f32.mrb[0].mxu0
        %1928 = vmatprep.mubr.f32.mxu0 0.0
        %1929 = vmatmul.mubr.f32.gmra.mrb[0].mxu0 %v1737
        %v1930 = vpop.f32.mrb[0].mxu0
        %v1931 = vadd.f32 0.0, %v1930
        %v1932 = vpop.f32.mrb[0].mxu0
        %1933 = vmatprep.mubr.f32.mxu0 0.0
        %1934 = vmatmul.mubr.f32.gmra.mrb[0].mxu0 %v1740
        %v1935 = vpop.f32.mrb[0].mxu0
        %v1936 = vadd.f32 0.0, %v1935
        %v1937 = vpop.f32.mrb[0].mxu0
        %1938 = vmatprep.mubr.f32.mxu0 0.0
        %1939 = vmatmul.mubr.f32.gmra.mrb[0].mxu0 %v1743
        %v1940 = vpop.f32.mrb[0].mxu0
        %v1941 = vadd.f32 0.0, %v1940
        %v1942 = vpop.f32.mrb[0].mxu0
        %1943 = vmatprep.mubr.f32.mxu0 0.0
        %1944 = vmatmul.mubr.f32.gmra.mrb[0].mxu0 %v1746
        %v1945 = vpop.f32.mrb[0].mxu0
        %v1946 = vadd.f32 0.0, %v1945
        %v1947 = vpop.f32.mrb[0].mxu0
        %1948 = vmatprep.mubr.f32.mxu0 0.0
        %1949 = vmatmul.mubr.f32.gmra.mrb[0].mxu0 %v1749
        %v1950 = vpop.f32.mrb[0].mxu0
        %v1951 = vadd.f32 0.0, %v1950
        %v1952 = vpop.f32.mrb[0].mxu0
        %1953 = vmatprep.mubr.f32.mxu0 0.0
        %1954 = vmatmul.mubr.f32.gmra.mrb[0].mxu0 %v1752
        %v1955 = vpop.f32.mrb[0].mxu0
        %v1956 = vadd.f32 0.0, %v1955
        %v1957 = vpop.f32.mrb[0].mxu0
        %1958 = vmatprep.mubr.f32.mxu0 0.0
        %1959 = vmatmul.mubr.f32.gmra.mrb[0].mxu0 %v1755
        %v1960 = vpop.f32.mrb[0].mxu0
        %v1961 = vadd.f32 0.0, %v1960
        %v1962 = vpop.f32.mrb[0].mxu0
        %1963 = vmatprep.mubr.f32.mxu0 0.0
        %1964 = vmatmul.mubr.f32.gmra.mrb[0].mxu0 %v1758
        %v1965 = vpop.f32.mrb[0].mxu0
        %v1966 = vadd.f32 0.0, %v1965
        %v1967 = vpop.f32.mrb[0].mxu0
        %1968 = vmatprep.mubr.f32.mxu0 0.0
        %1969 = vmatmul.mubr.f32.gmra.mrb[0].mxu0 %v1761
        %v1970 = vpop.f32.mrb[0].mxu0
        %v1971 = vadd.f32 0.0, %v1970
        %v1972 = vpop.f32.mrb[0].mxu0
        %1973 = vmatprep.mubr.f32.mxu0 0.0
        %1974 = vmatmul.mubr.f32.gmra.mrb[0].mxu0 %v1764
        %v1975 = vpop.f32.mrb[0].mxu0
        %v1976 = vadd.f32 0.0, %v1975
        %v1977 = vpop.f32.mrb[0].mxu0
        %1978 = vmatprep.mubr.f32.mxu0 0.0
        %1979 = vmatmul.mubr.f32.gmra.mrb[0].mxu0 %v1767
        %v1980 = vpop.f32.mrb[0].mxu0
        %v1981 = vadd.f32 0.0, %v1980
        %v1982 = vpop.f32.mrb[0].mxu0
        %1983 = vmatprep.mubr.f32.mxu0 0.0
        %1984 = vmatmul.mubr.f32.gmra.mrb[0].mxu0 %v1770
        %v1985 = vpop.f32.mrb[0].mxu0
        %v1986 = vadd.f32 0.0, %v1985
        %v1987 = vpop.f32.mrb[0].mxu0
        %1988 = vmatprep.mubr.f32.mxu0 0.0
        %1989 = vmatmul.mubr.f32.gmra.mrb[0].mxu0 %v1773
        %v1990 = vpop.f32.mrb[0].mxu0
        %v1991 = vadd.f32 0.0, %v1990
        %v1992 = vpop.f32.mrb[0].mxu0
        %1993 = vmatprep.mubr.f32.mxu0 0.0
        %1994 = vmatmul.mubr.f32.gmra.mrb[0].mxu0 %v1776
        %v1995 = vpop.f32.mrb[0].mxu0
        %v1996 = vadd.f32 0.0, %v1995
        %v1997 = vpop.f32.mrb[0].mxu0
        %1998 = vmatprep.mubr.f32.mxu0 0.0
        %1999 = vmatmul.mubr.f32.gmra.mrb[0].mxu0 %v1779
        %v2000 = vpop.f32.mrb[0].mxu0
        %v2001 = vadd.f32 0.0, %v2000
        %v2002 = vpop.f32.mrb[0].mxu0
        %2003 = vmatprep.mubr.f32.mxu0 0.0
        %2004 = vmatmul.mubr.f32.gmra.mrb[0].mxu0 %v1782
        %v2005 = vpop.f32.mrb[0].mxu0
        %v2006 = vadd.f32 0.0, %v2005
        %v2007 = vpop.f32.mrb[0].mxu0
        %2008 = vmatprep.mubr.f32.mxu0 0.0
        %2009 = vmatmul.mubr.f32.gmra.mrb[0].mxu0 %v1785
        %v2010 = vpop.f32.mrb[0].mxu0
        %v2011 = vadd.f32 0.0, %v2010
        %v2012 = vpop.f32.mrb[0].mxu0
        %2013 = vmatprep.mubr.f32.mxu0 0.0
        %2014 = vmatmul.mubr.f32.gmra.mrb[0].mxu0 %v1788
        %v2015 = vpop.f32.mrb[0].mxu0
        %v2016 = vadd.f32 0.0, %v2015
        %v2017 = vpop.f32.mrb[0].mxu0
        %2018 = vdwg.mxu0
        %v2019 = vsel %vm261, %v1861, 0.0
        %v2020 = vsel %vm261, %v1866, 0.0
        %v2021 = vadd.f32 %v2019, %v2020
        %v2022 = vsel %vm261, %v1871, 0.0
        %v2023 = vadd.f32 %v2021, %v2022
        %v2024 = vsel %vm261, %v1876, 0.0
        %v2025 = vadd.f32 %v2023, %v2024
        %v2026 = vsel %vm261, %v1881, 0.0
        %v2027 = vadd.f32 %v2025, %v2026
        %v2028 = vsel %vm261, %v1886, 0.0
        %v2029 = vadd.f32 %v2027, %v2028
        %v2030 = vsel %vm261, %v1891, 0.0
        %v2031 = vadd.f32 %v2029, %v2030
        %v2032 = vsel %vm261, %v1896, 0.0
        %v2033 = vadd.f32 %v2031, %v2032
        %v2034 = vsel %vm261, %v1901, 0.0
        %v2035 = vadd.f32 %v2033, %v2034
        %v2036 = vsel %vm261, %v1906, 0.0
        %v2037 = vadd.f32 %v2035, %v2036
        %v2038 = vsel %vm261, %v1911, 0.0
        %v2039 = vadd.f32 %v2037, %v2038
        %v2040 = vsel %vm261, %v1916, 0.0
        %v2041 = vadd.f32 %v2039, %v2040
        %v2042 = vsel %vm261, %v1921, 0.0
        %v2043 = vadd.f32 %v2041, %v2042
        %v2044 = vsel %vm261, %v1926, 0.0
        %v2045 = vadd.f32 %v2043, %v2044
        %v2046 = vsel %vm261, %v1931, 0.0
        %v2047 = vadd.f32 %v2045, %v2046
        %v2048 = vsel %vm261, %v1936, 0.0
        %v2049 = vadd.f32 %v2047, %v2048
        %v2050 = vsel %vm261, %v1941, 0.0
        %v2051 = vadd.f32 %v2049, %v2050
        %v2052 = vsel %vm261, %v1946, 0.0
        %v2053 = vadd.f32 %v2051, %v2052
        %v2054 = vsel %vm261, %v1951, 0.0
        %v2055 = vadd.f32 %v2053, %v2054
        %v2056 = vsel %vm261, %v1956, 0.0
        %v2057 = vadd.f32 %v2055, %v2056
        %v2058 = vsel %vm261, %v1961, 0.0
        %v2059 = vadd.f32 %v2057, %v2058
        %v2060 = vsel %vm261, %v1966, 0.0
        %v2061 = vadd.f32 %v2059, %v2060
        %v2062 = vsel %vm261, %v1971, 0.0
        %v2063 = vadd.f32 %v2061, %v2062
        %v2064 = vsel %vm261, %v1976, 0.0
        %v2065 = vadd.f32 %v2063, %v2064
        %v2066 = vsel %vm261, %v1981, 0.0
        %v2067 = vadd.f32 %v2065, %v2066
        %v2068 = vsel %vm261, %v1986, 0.0
        %v2069 = vadd.f32 %v2067, %v2068
        %v2070 = vsel %vm261, %v1991, 0.0
        %v2071 = vadd.f32 %v2069, %v2070
        %v2072 = vsel %vm261, %v1996, 0.0
        %v2073 = vadd.f32 %v2071, %v2072
        %v2074 = vsel %vm261, %v2001, 0.0
        %v2075 = vadd.f32 %v2073, %v2074
        %v2076 = vsel %vm261, %v2006, 0.0
        %v2077 = vadd.f32 %v2075, %v2076
        %v2078 = vsel %vm261, %v2011, 0.0
        %v2079 = vadd.f32 %v2077, %v2078
        %v2080 = vsel %vm261, %v2016, 0.0
        %v2081 = vadd.f32 %v2079, %v2080
        %v2082 = vrot.slane %v2081, 4
        %v2083 = vadd.f32 %v2081, %v2082
        %v2084 = vrot.slane %v2083, 2
        %v2085 = vadd.f32 %v2083, %v2084
        %v2086 = vrot.slane %v2085, 1
        %v2087 = vadd.f32 %v2085, %v2086
        %v2088 = vmul.f32 %v2087, 0.00390625
        %v2089 = vmul.f32 %v1861, %v1861
        %v2090 = vmul.f32 %v1866, %v1866
        %v2091 = vmul.f32 %v1871, %v1871
        %v2092 = vmul.f32 %v1876, %v1876
        %v2093 = vmul.f32 %v1881, %v1881
        %v2094 = vmul.f32 %v1886, %v1886
        %v2095 = vmul.f32 %v1891, %v1891
        %v2096 = vmul.f32 %v1896, %v1896
        %v2097 = vmul.f32 %v1901, %v1901
        %v2098 = vmul.f32 %v1906, %v1906
        %v2099 = vmul.f32 %v1911, %v1911
        %v2100 = vmul.f32 %v1916, %v1916
        %v2101 = vmul.f32 %v1921, %v1921
        %v2102 = vmul.f32 %v1926, %v1926
        %v2103 = vmul.f32 %v1931, %v1931
        %v2104 = vmul.f32 %v1936, %v1936
        %v2105 = vmul.f32 %v1941, %v1941
        %v2106 = vmul.f32 %v1946, %v1946
        %v2107 = vmul.f32 %v1951, %v1951
        %v2108 = vmul.f32 %v1956, %v1956
        %v2109 = vmul.f32 %v1961, %v1961
        %v2110 = vmul.f32 %v1966, %v1966
        %v2111 = vmul.f32 %v1971, %v1971
        %v2112 = vmul.f32 %v1976, %v1976
        %v2113 = vmul.f32 %v1981, %v1981
        %v2114 = vmul.f32 %v1986, %v1986
        %v2115 = vmul.f32 %v1991, %v1991
        %v2116 = vmul.f32 %v1996, %v1996
        %v2117 = vmul.f32 %v2001, %v2001
        %v2118 = vmul.f32 %v2006, %v2006
        %v2119 = vmul.f32 %v2011, %v2011
        %v2120 = vmul.f32 %v2016, %v2016
        %v2121 = vsel %vm261, %v2089, 0.0
        %v2122 = vsel %vm261, %v2090, 0.0
        %v2123 = vadd.f32 %v2121, %v2122
        %v2124 = vsel %vm261, %v2091, 0.0
        %v2125 = vadd.f32 %v2123, %v2124
        %v2126 = vsel %vm261, %v2092, 0.0
        %v2127 = vadd.f32 %v2125, %v2126
        %v2128 = vsel %vm261, %v2093, 0.0
        %v2129 = vadd.f32 %v2127, %v2128
        %v2130 = vsel %vm261, %v2094, 0.0
        %v2131 = vadd.f32 %v2129, %v2130
        %v2132 = vsel %vm261, %v2095, 0.0
        %v2133 = vadd.f32 %v2131, %v2132
        %v2134 = vsel %vm261, %v2096, 0.0
        %v2135 = vadd.f32 %v2133, %v2134
        %v2136 = vsel %vm261, %v2097, 0.0
        %v2137 = vadd.f32 %v2135, %v2136
        %v2138 = vsel %vm261, %v2098, 0.0
        %v2139 = vadd.f32 %v2137, %v2138
        %v2140 = vsel %vm261, %v2099, 0.0
        %v2141 = vadd.f32 %v2139, %v2140
        %v2142 = vsel %vm261, %v2100, 0.0
        %v2143 = vadd.f32 %v2141, %v2142
        %v2144 = vsel %vm261, %v2101, 0.0
        %v2145 = vadd.f32 %v2143, %v2144
        %v2146 = vsel %vm261, %v2102, 0.0
        %v2147 = vadd.f32 %v2145, %v2146
        %v2148 = vsel %vm261, %v2103, 0.0
        %v2149 = vadd.f32 %v2147, %v2148
        %v2150 = vsel %vm261, %v2104, 0.0
        %v2151 = vadd.f32 %v2149, %v2150
        %v2152 = vsel %vm261, %v2105, 0.0
        %v2153 = vadd.f32 %v2151, %v2152
        %v2154 = vsel %vm261, %v2106, 0.0
        %v2155 = vadd.f32 %v2153, %v2154
        %v2156 = vsel %vm261, %v2107, 0.0
        %v2157 = vadd.f32 %v2155, %v2156
        %v2158 = vsel %vm261, %v2108, 0.0
        %v2159 = vadd.f32 %v2157, %v2158
        %v2160 = vsel %vm261, %v2109, 0.0
        %v2161 = vadd.f32 %v2159, %v2160
        %v2162 = vsel %vm261, %v2110, 0.0
        %v2163 = vadd.f32 %v2161, %v2162
        %v2164 = vsel %vm261, %v2111, 0.0
        %v2165 = vadd.f32 %v2163, %v2164
        %v2166 = vsel %vm261, %v2112, 0.0
        %v2167 = vadd.f32 %v2165, %v2166
        %v2168 = vsel %vm261, %v2113, 0.0
        %v2169 = vadd.f32 %v2167, %v2168
        %v2170 = vsel %vm261, %v2114, 0.0
        %v2171 = vadd.f32 %v2169, %v2170
        %v2172 = vsel %vm261, %v2115, 0.0
        %v2173 = vadd.f32 %v2171, %v2172
        %v2174 = vsel %vm261, %v2116, 0.0
        %v2175 = vadd.f32 %v2173, %v2174
        %v2176 = vsel %vm261, %v2117, 0.0
        %v2177 = vadd.f32 %v2175, %v2176
        %v2178 = vsel %vm261, %v2118, 0.0
        %v2179 = vadd.f32 %v2177, %v2178
        %v2180 = vsel %vm261, %v2119, 0.0
        %v2181 = vadd.f32 %v2179, %v2180
        %v2182 = vsel %vm261, %v2120, 0.0
        %v2183 = vadd.f32 %v2181, %v2182
        %v2184 = vrot.slane %v2183, 4
        %v2185 = vadd.f32 %v2183, %v2184
        %v2186 = vrot.slane %v2185, 2
        %v2187 = vadd.f32 %v2185, %v2186
        %v2188 = vrot.slane %v2187, 1
        %v2189 = vadd.f32 %v2187, %v2188
        %v2190 = vmul.f32 %v2189, 0.00390625
        %v2191 = vmul.f32 %v2088, %v2088
        %v2192 = vsub.f32 %v2190, %v2191
        %v2193 = vsub.f32 %v1861, %v2088
        %v2194 = vsub.f32 %v1866, %v2088
        %v2195 = vsub.f32 %v1871, %v2088
        %v2196 = vsub.f32 %v1876, %v2088
        %v2197 = vsub.f32 %v1881, %v2088
        %v2198 = vsub.f32 %v1886, %v2088
        %v2199 = vsub.f32 %v1891, %v2088
        %v2200 = vsub.f32 %v1896, %v2088
        %v2201 = vsub.f32 %v1901, %v2088
        %v2202 = vsub.f32 %v1906, %v2088
        %v2203 = vsub.f32 %v1911, %v2088
        %v2204 = vsub.f32 %v1916, %v2088
        %v2205 = vsub.f32 %v1921, %v2088
        %v2206 = vsub.f32 %v1926, %v2088
        %v2207 = vsub.f32 %v1931, %v2088
        %v2208 = vsub.f32 %v1936, %v2088
        %v2209 = vsub.f32 %v1941, %v2088
        %v2210 = vsub.f32 %v1946, %v2088
        %v2211 = vsub.f32 %v1951, %v2088
        %v2212 = vsub.f32 %v1956, %v2088
        %v2213 = vsub.f32 %v1961, %v2088
        %v2214 = vsub.f32 %v1966, %v2088
        %v2215 = vsub.f32 %v1971, %v2088
        %v2216 = vsub.f32 %v1976, %v2088
        %v2217 = vsub.f32 %v1981, %v2088
        %v2218 = vsub.f32 %v1986, %v2088
        %v2219 = vsub.f32 %v1991, %v2088
        %v2220 = vsub.f32 %v1996, %v2088
        %v2221 = vsub.f32 %v2001, %v2088
        %v2222 = vsub.f32 %v2006, %v2088
        %v2223 = vsub.f32 %v2011, %v2088
        %v2224 = vsub.f32 %v2016, %v2088
        %v2225 = vadd.f32 %v2192, 1e-05
        %v2226 = vrsqrt.pop %v2225
        %v2227 = vmul.f32 %v2193, %v2226
        %v2228 = vmul.f32 %v2194, %v2226
        %v2229 = vmul.f32 %v2195, %v2226
        %v2230 = vmul.f32 %v2196, %v2226
        %v2231 = vmul.f32 %v2197, %v2226
        %v2232 = vmul.f32 %v2198, %v2226
        %v2233 = vmul.f32 %v2199, %v2226
        %v2234 = vmul.f32 %v2200, %v2226
        %v2235 = vmul.f32 %v2201, %v2226
        %v2236 = vmul.f32 %v2202, %v2226
        %v2237 = vmul.f32 %v2203, %v2226
        %v2238 = vmul.f32 %v2204, %v2226
        %v2239 = vmul.f32 %v2205, %v2226
        %v2240 = vmul.f32 %v2206, %v2226
        %v2241 = vmul.f32 %v2207, %v2226
        %v2242 = vmul.f32 %v2208, %v2226
        %v2243 = vmul.f32 %v2209, %v2226
        %v2244 = vmul.f32 %v2210, %v2226
        %v2245 = vmul.f32 %v2211, %v2226
        %v2246 = vmul.f32 %v2212, %v2226
        %v2247 = vmul.f32 %v2213, %v2226
        %v2248 = vmul.f32 %v2214, %v2226
        %v2249 = vmul.f32 %v2215, %v2226
        %v2250 = vmul.f32 %v2216, %v2226
        %v2251 = vmul.f32 %v2217, %v2226
        %v2252 = vmul.f32 %v2218, %v2226
        %v2253 = vmul.f32 %v2219, %v2226
        %v2254 = vmul.f32 %v2220, %v2226
        %v2255 = vmul.f32 %v2221, %v2226
        %v2256 = vmul.f32 %v2222, %v2226
        %v2257 = vmul.f32 %v2223, %v2226
        %v2258 = vmul.f32 %v2224, %v2226
        %v2259 = vmax.f32 %v2227, 0.0
        %v2260 = vmax.f32 %v2228, 0.0
        %v2261 = vmax.f32 %v2229, 0.0
        %v2262 = vmax.f32 %v2230, 0.0
        %v2263 = vmax.f32 %v2231, 0.0
        %v2264 = vmax.f32 %v2232, 0.0
        %v2265 = vmax.f32 %v2233, 0.0
        %v2266 = vmax.f32 %v2234, 0.0
        %v2267 = vmax.f32 %v2235, 0.0
        %v2268 = vmax.f32 %v2236, 0.0
        %v2269 = vmax.f32 %v2237, 0.0
        %v2270 = vmax.f32 %v2238, 0.0
        %v2271 = vmax.f32 %v2239, 0.0
        %v2272 = vmax.f32 %v2240, 0.0
        %v2273 = vmax.f32 %v2241, 0.0
        %v2274 = vmax.f32 %v2242, 0.0
        %v2275 = vmax.f32 %v2243, 0.0
        %v2276 = vmax.f32 %v2244, 0.0
        %v2277 = vmax.f32 %v2245, 0.0
        %v2278 = vmax.f32 %v2246, 0.0
        %v2279 = vmax.f32 %v2247, 0.0
        %v2280 = vmax.f32 %v2248, 0.0
        %v2281 = vmax.f32 %v2249, 0.0
        %v2282 = vmax.f32 %v2250, 0.0
        %v2283 = vmax.f32 %v2251, 0.0
        %v2284 = vmax.f32 %v2252, 0.0
        %v2285 = vmax.f32 %v2253, 0.0
        %v2286 = vmax.f32 %v2254, 0.0
        %v2287 = vmax.f32 %v2255, 0.0
        %v2288 = vmax.f32 %v2256, 0.0
        %v2289 = vmax.f32 %v2257, 0.0
        %v2290 = vmax.f32 %v2258, 0.0
        %2291 = vst.msk [vmem:[%s260 + $0x1] sm:$0xff] %vm261, %v2259
        %2292 = vst.msk [vmem:[%s260 + $0x9] sm:$0xff] %vm261, %v2260
        %2293 = vst.msk [vmem:[%s260 + $0x19] sm:$0xff] %vm261, %v2261
        %2294 = vst.msk [vmem:[%s260 + $0x21] sm:$0xff] %vm261, %v2262
        %2295 = vst.msk [vmem:[%s260 + $0x31] sm:$0xff] %vm261, %v2263
        %2296 = vst.msk [vmem:[%s260 + $0x39] sm:$0xff] %vm261, %v2264
        %2297 = vst.msk [vmem:[%s260 + $0x49] sm:$0xff] %vm261, %v2265
        %2298 = vst.msk [vmem:[%s260 + $0x51] sm:$0xff] %vm261, %v2266
        %2299 = vst.msk [vmem:[%s260 + $0x61] sm:$0xff] %vm261, %v2267
        %2300 = vst.msk [vmem:[%s260 + $0x69] sm:$0xff] %vm261, %v2268
        %2301 = vst.msk [vmem:[%s260 + $0x79] sm:$0xff] %vm261, %v2269
        %2302 = vst.msk [vmem:[%s260 + $0x81] sm:$0xff] %vm261, %v2270
        %2303 = vst.msk [vmem:[%s260 + $0x91] sm:$0xff] %vm261, %v2271
        %2304 = vst.msk [vmem:[%s260 + $0x99] sm:$0xff] %vm261, %v2272
        %2305 = vst.msk [vmem:[%s260 + $0xa9] sm:$0xff] %vm261, %v2273
        %2306 = vst.msk [vmem:[%s260 + $0xb1] sm:$0xff] %vm261, %v2274
        %2307 = vst.msk [vmem:[%s260 + $0xc1] sm:$0xff] %vm261, %v2275
        %2308 = vst.msk [vmem:[%s260 + $0xc9] sm:$0xff] %vm261, %v2276
        %2309 = vst.msk [vmem:[%s260 + $0xd9] sm:$0xff] %vm261, %v2277
        %2310 = vst.msk [vmem:[%s260 + $0xe1] sm:$0xff] %vm261, %v2278
        %2311 = vst.msk [vmem:[%s260 + $0xf1] sm:$0xff] %vm261, %v2279
        %2312 = vst.msk [vmem:[%s260 + $0xf9] sm:$0xff] %vm261, %v2280
        %2313 = vst.msk [vmem:[%s260 + $0x109] sm:$0xff] %vm261, %v2281
        %2314 = vst.msk [vmem:[%s260 + $0x111] sm:$0xff] %vm261, %v2282
        %2315 = vst.msk [vmem:[%s260 + $0x121] sm:$0xff] %vm261, %v2283
        %2316 = vst.msk [vmem:[%s260 + $0x129] sm:$0xff] %vm261, %v2284
        %2317 = vst.msk [vmem:[%s260 + $0x139] sm:$0xff] %vm261, %v2285
        %2318 = vst.msk [vmem:[%s260 + $0x141] sm:$0xff] %vm261, %v2286
        %2319 = vst.msk [vmem:[%s260 + $0x151] sm:$0xff] %vm261, %v2287
        %2320 = vst.msk [vmem:[%s260 + $0x159] sm:$0xff] %vm261, %v2288
        %2321 = vst.msk [vmem:[%s260 + $0x169] sm:$0xff] %vm261, %v2289
        %2322 = vst.msk [vmem:[%s260 + $0x171] sm:$0xff] %vm261, %v2290
        %2323 = vst.msk [vmem:[#allocation2 + $0x1] sm:$0xff] %vm261, %v2261
        %2324 = vst.msk [vmem:[#allocation2 + $0x9] sm:$0xff] %vm261, %v2262
        %2325 = vst.msk [vmem:[%s296 + $0x1] sm:$0xff] %vm261, %v2287
        %2326 = vst.msk [vmem:[%s296 + $0x9] sm:$0xff] %vm261, %v2288
        %v2327 = vld [vmem:[#allocation2 + $0x2] sm:$0x1]
        %v2328 = vld [vmem:[#allocation2 + $0x1a] sm:$0x1]
        %v2329 = vld [vmem:[#allocation2 + $0x32] sm:$0x1]
        %v2330 = vld [vmem:[#allocation2 + $0x4a] sm:$0x1]
        %v2331 = vld [vmem:[#allocation2 + $0x62] sm:$0x1]
        %v2332 = vld [vmem:[#allocation2 + $0x7a] sm:$0x1]
        %v2333 = vld [vmem:[#allocation2 + $0x92] sm:$0x1]
        %v2334 = vld [vmem:[#allocation2 + $0xaa] sm:$0x1]
        %v2335 = vld [vmem:[#allocation2 + $0xc2] sm:$0x1]
        %v2336 = vld [vmem:[#allocation2 + $0xda] sm:$0x1]
        %v2337 = vld [vmem:[#allocation2 + $0xf2] sm:$0x1]
        %v2338 = vld [vmem:[#allocation2 + $0x10a] sm:$0x1]
        %v2339 = vld [vmem:[#allocation2 + $0x122] sm:$0x1]
        %v2340 = vld [vmem:[#allocation2 + $0x13a] sm:$0x1]
        %v2341 = vld [vmem:[#allocation2 + $0x152] sm:$0x1]
        %v2342 = vld [vmem:[#allocation2 + $0x16a] sm:$0x1]
        %v2343 = vld [vmem:[#allocation2 + $0x182] sm:$0x1]
        %v2344 = vld [vmem:[#allocation2 + $0x19a] sm:$0x1]
        %2345 = vst.msk [vmem:[#allocation2] sm:$0x1] %vm317, %v2327
        %2346 = vst.msk [vmem:[#allocation2 + $0x18] sm:$0x1] %vm317, %v2328
        %2347 = vst.msk [vmem:[#allocation2 + $0x30] sm:$0x1] %vm317, %v2329
        %2348 = vst.msk [vmem:[#allocation2 + $0x48] sm:$0x1] %vm317, %v2330
        %2349 = vst.msk [vmem:[#allocation2 + $0x60] sm:$0x1] %vm317, %v2331
        %2350 = vst.msk [vmem:[#allocation2 + $0x78] sm:$0x1] %vm317, %v2332
        %2351 = vst.msk [vmem:[#allocation2 + $0x90] sm:$0x1] %vm317, %v2333
        %2352 = vst.msk [vmem:[#allocation2 + $0xa8] sm:$0x1] %vm317, %v2334
        %2353 = vst.msk [vmem:[#allocation2 + $0xc0] sm:$0x1] %vm317, %v2335
        %2354 = vst.msk [vmem:[#allocation2 + $0xd8] sm:$0x1] %vm317, %v2336
        %2355 = vst.msk [vmem:[#allocation2 + $0xf0] sm:$0x1] %vm317, %v2337
        %2356 = vst.msk [vmem:[#allocation2 + $0x108] sm:$0x1] %vm317, %v2338
        %2357 = vst.msk [vmem:[#allocation2 + $0x120] sm:$0x1] %vm317, %v2339
        %2358 = vst.msk [vmem:[#allocation2 + $0x138] sm:$0x1] %vm317, %v2340
        %2359 = vst.msk [vmem:[#allocation2 + $0x150] sm:$0x1] %vm317, %v2341
        %2360 = vst.msk [vmem:[#allocation2 + $0x168] sm:$0x1] %vm317, %v2342
        %2361 = vst.msk [vmem:[#allocation2 + $0x180] sm:$0x1] %vm317, %v2343
        %2362 = vst.msk [vmem:[#allocation2 + $0x198] sm:$0x1] %vm317, %v2344
        %v2363 = vld [vmem:[#allocation2 + $0xf] sm:$0x1]
        %v2364 = vld [vmem:[#allocation2 + $0x27] sm:$0x1]
        %v2365 = vld [vmem:[#allocation2 + $0x3f] sm:$0x1]
        %v2366 = vld [vmem:[#allocation2 + $0x57] sm:$0x1]
        %v2367 = vld [vmem:[#allocation2 + $0x6f] sm:$0x1]
        %v2368 = vld [vmem:[#allocation2 + $0x87] sm:$0x1]
        %v2369 = vld [vmem:[#allocation2 + $0x9f] sm:$0x1]
        %v2370 = vld [vmem:[#allocation2 + $0xb7] sm:$0x1]
        %v2371 = vld [vmem:[#allocation2 + $0xcf] sm:$0x1]
        %v2372 = vld [vmem:[#allocation2 + $0xe7] sm:$0x1]
        %v2373 = vld [vmem:[#allocation2 + $0xff] sm:$0x1]
        %v2374 = vld [vmem:[#allocation2 + $0x117] sm:$0x1]
        %v2375 = vld [vmem:[#allocation2 + $0x12f] sm:$0x1]
        %v2376 = vld [vmem:[#allocation2 + $0x147] sm:$0x1]
        %v2377 = vld [vmem:[#allocation2 + $0x15f] sm:$0x1]
        %v2378 = vld [vmem:[#allocation2 + $0x177] sm:$0x1]
        %v2379 = vld [vmem:[#allocation2 + $0x18f] sm:$0x1]
        %v2380 = vld [vmem:[#allocation2 + $0x1a7] sm:$0x1]
        %2381 = vst.msk [vmem:[#allocation2 + $0x11] sm:$0x1] %vm317, %v2363
        %2382 = vst.msk [vmem:[#allocation2 + $0x29] sm:$0x1] %vm317, %v2364
        %2383 = vst.msk [vmem:[#allocation2 + $0x41] sm:$0x1] %vm317, %v2365
        %2384 = vst.msk [vmem:[#allocation2 + $0x59] sm:$0x1] %vm317, %v2366
        %2385 = vst.msk [vmem:[#allocation2 + $0x71] sm:$0x1] %vm317, %v2367
        %2386 = vst.msk [vmem:[#allocation2 + $0x89] sm:$0x1] %vm317, %v2368
        %2387 = vst.msk [vmem:[#allocation2 + $0xa1] sm:$0x1] %vm317, %v2369
        %2388 = vst.msk [vmem:[#allocation2 + $0xb9] sm:$0x1] %vm317, %v2370
        %2389 = vst.msk [vmem:[#allocation2 + $0xd1] sm:$0x1] %vm317, %v2371
        %2390 = vst.msk [vmem:[#allocation2 + $0xe9] sm:$0x1] %vm317, %v2372
        %2391 = vst.msk [vmem:[#allocation2 + $0x101] sm:$0x1] %vm317, %v2373
        %2392 = vst.msk [vmem:[#allocation2 + $0x119] sm:$0x1] %vm317, %v2374
        %2393 = vst.msk [vmem:[#allocation2 + $0x131] sm:$0x1] %vm317, %v2375
        %2394 = vst.msk [vmem:[#allocation2 + $0x149] sm:$0x1] %vm317, %v2376
        %2395 = vst.msk [vmem:[#allocation2 + $0x161] sm:$0x1] %vm317, %v2377
        %2396 = vst.msk [vmem:[#allocation2 + $0x179] sm:$0x1] %vm317, %v2378
        %2397 = vst.msk [vmem:[#allocation2 + $0x191] sm:$0x1] %vm317, %v2379
        %2398 = vst.msk [vmem:[#allocation2 + $0x1a9] sm:$0x1] %vm317, %v2380
        %v2399 = vld [vmem:[#allocation2] sm:$0xff]
        %v2400 = vld [vmem:[#allocation2 + $0x8] sm:$0xff]
        %v2401 = vld [vmem:[#allocation2 + $0x10] sm:$0x3]
        %v2402 = vld [vmem:[#allocation2 + $0x18] sm:$0xff]
        %v2403 = vld [vmem:[#allocation2 + $0x20] sm:$0xff]
        %v2404 = vld [vmem:[#allocation2 + $0x28] sm:$0x3]
        %v2405 = vld [vmem:[#allocation2 + $0x30] sm:$0xff]
        %v2406 = vld [vmem:[#allocation2 + $0x38] sm:$0xff]
        %v2407 = vld [vmem:[#allocation2 + $0x40] sm:$0x3]
        %v2408 = vld [vmem:[#allocation2 + $0x48] sm:$0xff]
        %v2409 = vld [vmem:[#allocation2 + $0x50] sm:$0xff]
        %v2410 = vld [vmem:[#allocation2 + $0x58] sm:$0x3]
        %v2411 = vld [vmem:[#allocation2 + $0x60] sm:$0xff]
        %v2412 = vld [vmem:[#allocation2 + $0x68] sm:$0xff]
        %v2413 = vld [vmem:[#allocation2 + $0x70] sm:$0x3]
        %v2414 = vld [vmem:[#allocation2 + $0x78] sm:$0xff]
        %v2415 = vld [vmem:[#allocation2 + $0x80] sm:$0xff]
        %v2416 = vld [vmem:[#allocation2 + $0x88] sm:$0x3]
        %v2417 = vld [vmem:[#allocation2 + $0x90] sm:$0xff]
        %v2418 = vld [vmem:[#allocation2 + $0x98] sm:$0xff]
        %v2419 = vld [vmem:[#allocation2 + $0xa0] sm:$0x3]
        %v2420 = vld [vmem:[#allocation2 + $0xa8] sm:$0xff]
        %v2421 = vld [vmem:[#allocation2 + $0xb0] sm:$0xff]
        %v2422 = vld [vmem:[#allocation2 + $0xb8] sm:$0x3]
        %v2423 = vld [vmem:[#allocation2 + $0xc0] sm:$0xff]
        %v2424 = vld [vmem:[#allocation2 + $0xc8] sm:$0xff]
        %v2425 = vld [vmem:[#allocation2 + $0xd0] sm:$0x3]
        %v2426 = vld [vmem:[#allocation2 + $0xd8] sm:$0xff]
        %v2427 = vld [vmem:[#allocation2 + $0xe0] sm:$0xff]
        %v2428 = vld [vmem:[#allocation2 + $0xe8] sm:$0x3]
        %v2429 = vld [vmem:[#allocation2 + $0xf0] sm:$0xff]
        %v2430 = vld [vmem:[#allocation2 + $0xf8] sm:$0xff]
        %v2431 = vld [vmem:[#allocation2 + $0x100] sm:$0x3]
        %v2432 = vld [vmem:[#allocation2 + $0x108] sm:$0xff]
        %v2433 = vld [vmem:[#allocation2 + $0x110] sm:$0xff]
        %v2434 = vld [vmem:[#allocation2 + $0x118] sm:$0x3]
        %v2435 = vld [vmem:[#allocation2 + $0x120] sm:$0xff]
        %v2436 = vld [vmem:[#allocation2 + $0x128] sm:$0xff]
        %v2437 = vld [vmem:[#allocation2 + $0x130] sm:$0x3]
        %v2438 = vld [vmem:[#allocation2 + $0x138] sm:$0xff]
        %v2439 = vld [vmem:[#allocation2 + $0x140] sm:$0xff]
        %v2440 = vld [vmem:[#allocation2 + $0x148] sm:$0x3]
        %v2441 = vld [vmem:[#allocation2 + $0x150] sm:$0xff]
        %v2442 = vld [vmem:[#allocation2 + $0x158] sm:$0xff]
        %v2443 = vld [vmem:[#allocation2 + $0x160] sm:$0x3]
        %v2444 = vld [vmem:[#allocation2 + $0x168] sm:$0xff]
        %v2445 = vld [vmem:[#allocation2 + $0x170] sm:$0xff]
        %v2446 = vld [vmem:[#allocation2 + $0x178] sm:$0x3]
        %v2447 = vld [vmem:[#allocation2 + $0x180] sm:$0xff]
        %v2448 = vld [vmem:[#allocation2 + $0x188] sm:$0xff]
        %v2449 = vld [vmem:[#allocation2 + $0x190] sm:$0x3]
        %v2450 = vld [vmem:[#allocation2 + $0x198] sm:$0xff]
        %v2451 = vld [vmem:[#allocation2 + $0x1a0] sm:$0xff]
        %v2452 = vld [vmem:[#allocation2 + $0x1a8] sm:$0x3]
        %v2501 = vrot.slane %v2399, 1
        %v2502 = vrot.slane %v2400, 1
        %v2503 = vsel %vm474, %v2501, %v2502
        %v2504 = vrot.slane %v2401, 1
        %v2505 = vsel %vm474, %v2502, %v2504
        %v2506 = vrot.slane %v2402, 1
        %v2507 = vrot.slane %v2403, 1
        %v2508 = vsel %vm474, %v2506, %v2507
        %v2509 = vrot.slane %v2404, 1
        %v2510 = vsel %vm474, %v2507, %v2509
        %v2511 = vrot.slane %v2405, 1
        %v2512 = vrot.slane %v2406, 1
        %v2513 = vsel %vm474, %v2511, %v2512
        %v2514 = vrot.slane %v2407, 1
        %v2515 = vsel %vm474, %v2512, %v2514
        %v2516 = vrot.slane %v2408, 1
        %v2517 = vrot.slane %v2409, 1
        %v2518 = vsel %vm474, %v2516, %v2517
        %v2519 = vrot.slane %v2410, 1
        %v2520 = vsel %vm474, %v2517, %v2519
        %v2521 = vrot.slane %v2411, 1
        %v2522 = vrot.slane %v2412, 1
        %v2523 = vsel %vm474, %v2521, %v2522
        %v2524 = vrot.slane %v2413, 1
        %v2525 = vsel %vm474, %v2522, %v2524
        %v2526 = vrot.slane %v2414, 1
        %v2527 = vrot.slane %v2415, 1
        %v2528 = vsel %vm474, %v2526, %v2527
        %v2529 = vrot.slane %v2416, 1
        %v2530 = vsel %vm474, %v2527, %v2529
        %v2531 = vrot.slane %v2417, 1
        %v2532 = vrot.slane %v2418, 1
        %v2533 = vsel %vm474, %v2531, %v2532
        %v2534 = vrot.slane %v2419, 1
        %v2535 = vsel %vm474, %v2532, %v2534
        %v2536 = vrot.slane %v2420, 1
        %v2537 = vrot.slane %v2421, 1
        %v2538 = vsel %vm474, %v2536, %v2537
        %v2539 = vrot.slane %v2422, 1
        %v2540 = vsel %vm474, %v2537, %v2539
        %v2541 = vrot.slane %v2423, 1
        %v2542 = vrot.slane %v2424, 1
        %v2543 = vsel %vm474, %v2541, %v2542
        %v2544 = vrot.slane %v2425, 1
        %v2545 = vsel %vm474, %v2542, %v2544
        %v2546 = vrot.slane %v2426, 1
        %v2547 = vrot.slane %v2427, 1
        %v2548 = vsel %vm474, %v2546, %v2547
        %v2549 = vrot.slane %v2428, 1
        %v2550 = vsel %vm474, %v2547, %v2549
        %v2551 = vrot.slane %v2429, 1
        %v2552 = vrot.slane %v2430, 1
        %v2553 = vsel %vm474, %v2551, %v2552
        %v2554 = vrot.slane %v2431, 1
        %v2555 = vsel %vm474, %v2552, %v2554
        %v2556 = vrot.slane %v2432, 1
        %v2557 = vrot.slane %v2433, 1
        %v2558 = vsel %vm474, %v2556, %v2557
        %v2559 = vrot.slane %v2434, 1
        %v2560 = vsel %vm474, %v2557, %v2559
        %v2561 = vrot.slane %v2435, 1
        %v2562 = vrot.slane %v2436, 1
        %v2563 = vsel %vm474, %v2561, %v2562
        %v2564 = vrot.slane %v2437, 1
        %v2565 = vsel %vm474, %v2562, %v2564
        %v2566 = vrot.slane %v2438, 1
        %v2567 = vrot.slane %v2439, 1
        %v2568 = vsel %vm474, %v2566, %v2567
        %v2569 = vrot.slane %v2440, 1
        %v2570 = vsel %vm474, %v2567, %v2569
        %v2571 = vrot.slane %v2441, 1
        %v2572 = vrot.slane %v2442, 1
        %v2573 = vsel %vm474, %v2571, %v2572
        %v2574 = vrot.slane %v2443, 1
        %v2575 = vsel %vm474, %v2572, %v2574
        %v2576 = vrot.slane %v2444, 1
        %v2577 = vrot.slane %v2445, 1
        %v2578 = vsel %vm474, %v2576, %v2577
        %v2579 = vrot.slane %v2446, 1
        %v2580 = vsel %vm474, %v2577, %v2579
        %v2581 = vrot.slane %v2399, 2
        %v2582 = vrot.slane %v2400, 2
        %v2583 = vsel %vm555, %v2581, %v2582
        %v2584 = vrot.slane %v2401, 2
        %v2585 = vsel %vm555, %v2582, %v2584
        %v2586 = vrot.slane %v2402, 2
        %v2587 = vrot.slane %v2403, 2
        %v2588 = vsel %vm555, %v2586, %v2587
        %v2589 = vrot.slane %v2404, 2
        %v2590 = vsel %vm555, %v2587, %v2589
        %v2591 = vrot.slane %v2405, 2
        %v2592 = vrot.slane %v2406, 2
        %v2593 = vsel %vm555, %v2591, %v2592
        %v2594 = vrot.slane %v2407, 2
        %v2595 = vsel %vm555, %v2592, %v2594
        %v2596 = vrot.slane %v2408, 2
        %v2597 = vrot.slane %v2409, 2
        %v2598 = vsel %vm555, %v2596, %v2597
        %v2599 = vrot.slane %v2410, 2
        %v2600 = vsel %vm555, %v2597, %v2599
        %v2601 = vrot.slane %v2411, 2
        %v2602 = vrot.slane %v2412, 2
        %v2603 = vsel %vm555, %v2601, %v2602
        %v2604 = vrot.slane %v2413, 2
        %v2605 = vsel %vm555, %v2602, %v2604
        %v2606 = vrot.slane %v2414, 2
        %v2607 = vrot.slane %v2415, 2
        %v2608 = vsel %vm555, %v2606, %v2607
        %v2609 = vrot.slane %v2416, 2
        %v2610 = vsel %vm555, %v2607, %v2609
        %v2611 = vrot.slane %v2417, 2
        %v2612 = vrot.slane %v2418, 2
        %v2613 = vsel %vm555, %v2611, %v2612
        %v2614 = vrot.slane %v2419, 2
        %v2615 = vsel %vm555, %v2612, %v2614
        %v2616 = vrot.slane %v2420, 2
        %v2617 = vrot.slane %v2421, 2
        %v2618 = vsel %vm555, %v2616, %v2617
        %v2619 = vrot.slane %v2422, 2
        %v2620 = vsel %vm555, %v2617, %v2619
        %v2621 = vrot.slane %v2423, 2
        %v2622 = vrot.slane %v2424, 2
        %v2623 = vsel %vm555, %v2621, %v2622
        %v2624 = vrot.slane %v2425, 2
        %v2625 = vsel %vm555, %v2622, %v2624
        %v2626 = vrot.slane %v2426, 2
        %v2627 = vrot.slane %v2427, 2
        %v2628 = vsel %vm555, %v2626, %v2627
        %v2629 = vrot.slane %v2428, 2
        %v2630 = vsel %vm555, %v2627, %v2629
        %v2631 = vrot.slane %v2429, 2
        %v2632 = vrot.slane %v2430, 2
        %v2633 = vsel %vm555, %v2631, %v2632
        %v2634 = vrot.slane %v2431, 2
        %v2635 = vsel %vm555, %v2632, %v2634
        %v2636 = vrot.slane %v2432, 2
        %v2637 = vrot.slane %v2433, 2
        %v2638 = vsel %vm555, %v2636, %v2637
        %v2639 = vrot.slane %v2434, 2
        %v2640 = vsel %vm555, %v2637, %v2639
        %v2641 = vrot.slane %v2435, 2
        %v2642 = vrot.slane %v2436, 2
        %v2643 = vsel %vm555, %v2641, %v2642
        %v2644 = vrot.slane %v2437, 2
        %v2645 = vsel %vm555, %v2642, %v2644
        %v2646 = vrot.slane %v2438, 2
        %v2647 = vrot.slane %v2439, 2
        %v2648 = vsel %vm555, %v2646, %v2647
        %v2649 = vrot.slane %v2440, 2
        %v2650 = vsel %vm555, %v2647, %v2649
        %v2651 = vrot.slane %v2441, 2
        %v2652 = vrot.slane %v2442, 2
        %v2653 = vsel %vm555, %v2651, %v2652
        %v2654 = vrot.slane %v2443, 2
        %v2655 = vsel %vm555, %v2652, %v2654
        %v2656 = vrot.slane %v2444, 2
        %v2657 = vrot.slane %v2445, 2
        %v2658 = vsel %vm555, %v2656, %v2657
        %v2659 = vrot.slane %v2446, 2
        %v2660 = vsel %vm555, %v2657, %v2659
        %v2664 = vrot.slane %v2447, 1
        %v2665 = vrot.slane %v2448, 1
        %v2666 = vsel %vm474, %v2664, %v2665
        %v2667 = vrot.slane %v2449, 1
        %v2668 = vsel %vm474, %v2665, %v2667
        %v2669 = vrot.slane %v2447, 2
        %v2670 = vrot.slane %v2448, 2
        %v2671 = vsel %vm555, %v2669, %v2670
        %v2672 = vrot.slane %v2449, 2
        %v2673 = vsel %vm555, %v2670, %v2672
        %v2677 = vrot.slane %v2450, 1
        %v2678 = vrot.slane %v2451, 1
        %v2679 = vsel %vm474, %v2677, %v2678
        %v2680 = vrot.slane %v2452, 1
        %v2681 = vsel %vm474, %v2678, %v2680
        %v2682 = vrot.slane %v2450, 2
        %v2683 = vrot.slane %v2451, 2
        %v2684 = vsel %vm555, %v2682, %v2683
        %v2685 = vrot.slane %v2452, 2
        %v2686 = vsel %vm555, %v2683, %v2685
        %2687 = vrot.lane.b32.xlu0 %v2503, 4
        %v2688 = vpop.permute.xlu0 %2687
        %2689 = vrot.lane.b32.xlu0 %v2505, 4
        %v2690 = vpop.permute.xlu0 %2689
        %2691 = vrot.lane.b32.xlu0 %v2508, 4
        %v2692 = vpop.permute.xlu0 %2691
        %2693 = vrot.lane.b32.xlu0 %v2510, 4
        %v2694 = vpop.permute.xlu0 %2693
        %2695 = vrot.lane.b32.xlu0 %v2513, 4
        %v2696 = vpop.permute.xlu0 %2695
        %2697 = vrot.lane.b32.xlu0 %v2515, 4
        %v2698 = vpop.permute.xlu0 %2697
        %2699 = vrot.lane.b32.xlu0 %v2518, 4
        %v2700 = vpop.permute.xlu0 %2699
        %2701 = vrot.lane.b32.xlu0 %v2520, 4
        %v2702 = vpop.permute.xlu0 %2701
        %2703 = vrot.lane.b32.xlu0 %v2523, 4
        %v2704 = vpop.permute.xlu0 %2703
        %2705 = vrot.lane.b32.xlu0 %v2525, 4
        %v2706 = vpop.permute.xlu0 %2705
        %2707 = vrot.lane.b32.xlu0 %v2528, 4
        %v2708 = vpop.permute.xlu0 %2707
        %2709 = vrot.lane.b32.xlu0 %v2530, 4
        %v2710 = vpop.permute.xlu0 %2709
        %2711 = vrot.lane.b32.xlu0 %v2533, 4
        %v2712 = vpop.permute.xlu0 %2711
        %2713 = vrot.lane.b32.xlu0 %v2535, 4
        %v2714 = vpop.permute.xlu0 %2713
        %2715 = vrot.lane.b32.xlu0 %v2538, 4
        %v2716 = vpop.permute.xlu0 %2715
        %2717 = vrot.lane.b32.xlu0 %v2540, 4
        %v2718 = vpop.permute.xlu0 %2717
        %2719 = vrot.lane.b32.xlu0 %v2543, 4
        %v2720 = vpop.permute.xlu0 %2719
        %2721 = vrot.lane.b32.xlu0 %v2545, 4
        %v2722 = vpop.permute.xlu0 %2721
        %2723 = vrot.lane.b32.xlu0 %v2548, 4
        %v2724 = vpop.permute.xlu0 %2723
        %2725 = vrot.lane.b32.xlu0 %v2550, 4
        %v2726 = vpop.permute.xlu0 %2725
        %2727 = vrot.lane.b32.xlu0 %v2553, 4
        %v2728 = vpop.permute.xlu0 %2727
        %2729 = vrot.lane.b32.xlu0 %v2555, 4
        %v2730 = vpop.permute.xlu0 %2729
        %2731 = vrot.lane.b32.xlu0 %v2558, 4
        %v2732 = vpop.permute.xlu0 %2731
        %2733 = vrot.lane.b32.xlu0 %v2560, 4
        %v2734 = vpop.permute.xlu0 %2733
        %2735 = vrot.lane.b32.xlu0 %v2563, 4
        %v2736 = vpop.permute.xlu0 %2735
        %2737 = vrot.lane.b32.xlu0 %v2565, 4
        %v2738 = vpop.permute.xlu0 %2737
        %2739 = vrot.lane.b32.xlu0 %v2568, 4
        %v2740 = vpop.permute.xlu0 %2739
        %2741 = vrot.lane.b32.xlu0 %v2570, 4
        %v2742 = vpop.permute.xlu0 %2741
        %2743 = vrot.lane.b32.xlu0 %v2573, 4
        %v2744 = vpop.permute.xlu0 %2743
        %2745 = vrot.lane.b32.xlu0 %v2575, 4
        %v2746 = vpop.permute.xlu0 %2745
        %2747 = vrot.lane.b32.xlu0 %v2578, 4
        %v2748 = vpop.permute.xlu0 %2747
        %2749 = vrot.lane.b32.xlu0 %v2580, 4
        %v2750 = vpop.permute.xlu0 %2749
        %2783 = vrot.lane.b32.xlu0 %v2583, 8
        %v2784 = vpop.permute.xlu0 %2783
        %2785 = vrot.lane.b32.xlu0 %v2585, 8
        %v2786 = vpop.permute.xlu0 %2785
        %2787 = vrot.lane.b32.xlu0 %v2588, 8
        %v2788 = vpop.permute.xlu0 %2787
        %2789 = vrot.lane.b32.xlu0 %v2590, 8
        %v2790 = vpop.permute.xlu0 %2789
        %2791 = vrot.lane.b32.xlu0 %v2593, 8
        %v2792 = vpop.permute.xlu0 %2791
        %2793 = vrot.lane.b32.xlu0 %v2595, 8
        %v2794 = vpop.permute.xlu0 %2793
        %2795 = vrot.lane.b32.xlu0 %v2598, 8
        %v2796 = vpop.permute.xlu0 %2795
        %2797 = vrot.lane.b32.xlu0 %v2600, 8
        %v2798 = vpop.permute.xlu0 %2797
        %2799 = vrot.lane.b32.xlu0 %v2603, 8
        %v2800 = vpop.permute.xlu0 %2799
        %2801 = vrot.lane.b32.xlu0 %v2605, 8
        %v2802 = vpop.permute.xlu0 %2801
        %2803 = vrot.lane.b32.xlu0 %v2608, 8
        %v2804 = vpop.permute.xlu0 %2803
        %2805 = vrot.lane.b32.xlu0 %v2610, 8
        %v2806 = vpop.permute.xlu0 %2805
        %2807 = vrot.lane.b32.xlu0 %v2613, 8
        %v2808 = vpop.permute.xlu0 %2807
        %2809 = vrot.lane.b32.xlu0 %v2615, 8
        %v2810 = vpop.permute.xlu0 %2809
        %2811 = vrot.lane.b32.xlu0 %v2618, 8
        %v2812 = vpop.permute.xlu0 %2811
        %2813 = vrot.lane.b32.xlu0 %v2620, 8
        %v2814 = vpop.permute.xlu0 %2813
        %2815 = vrot.lane.b32.xlu0 %v2623, 8
        %v2816 = vpop.permute.xlu0 %2815
        %2817 = vrot.lane.b32.xlu0 %v2625, 8
        %v2818 = vpop.permute.xlu0 %2817
        %2819 = vrot.lane.b32.xlu0 %v2628, 8
        %v2820 = vpop.permute.xlu0 %2819
        %2821 = vrot.lane.b32.xlu0 %v2630, 8
        %v2822 = vpop.permute.xlu0 %2821
        %2823 = vrot.lane.b32.xlu0 %v2633, 8
        %v2824 = vpop.permute.xlu0 %2823
        %2825 = vrot.lane.b32.xlu0 %v2635, 8
        %v2826 = vpop.permute.xlu0 %2825
        %2827 = vrot.lane.b32.xlu0 %v2638, 8
        %v2828 = vpop.permute.xlu0 %2827
        %2829 = vrot.lane.b32.xlu0 %v2640, 8
        %v2830 = vpop.permute.xlu0 %2829
        %2831 = vrot.lane.b32.xlu0 %v2643, 8
        %v2832 = vpop.permute.xlu0 %2831
        %2833 = vrot.lane.b32.xlu0 %v2645, 8
        %v2834 = vpop.permute.xlu0 %2833
        %2835 = vrot.lane.b32.xlu0 %v2648, 8
        %v2836 = vpop.permute.xlu0 %2835
        %2837 = vrot.lane.b32.xlu0 %v2650, 8
        %v2838 = vpop.permute.xlu0 %2837
        %2839 = vrot.lane.b32.xlu0 %v2653, 8
        %v2840 = vpop.permute.xlu0 %2839
        %2841 = vrot.lane.b32.xlu0 %v2655, 8
        %v2842 = vpop.permute.xlu0 %2841
        %2843 = vrot.lane.b32.xlu0 %v2658, 8
        %v2844 = vpop.permute.xlu0 %2843
        %2845 = vrot.lane.b32.xlu0 %v2660, 8
        %v2846 = vpop.permute.xlu0 %2845
        %2879 = vrot.lane.b32.xlu0 %v2402, 12
        %v2880 = vpop.permute.xlu0 %2879
        %2881 = vrot.lane.b32.xlu0 %v2403, 12
        %v2882 = vpop.permute.xlu0 %2881
        %2883 = vrot.lane.b32.xlu0 %v2405, 12
        %v2884 = vpop.permute.xlu0 %2883
        %2885 = vrot.lane.b32.xlu0 %v2406, 12
        %v2886 = vpop.permute.xlu0 %2885
        %2887 = vrot.lane.b32.xlu0 %v2408, 12
        %v2888 = vpop.permute.xlu0 %2887
        %2889 = vrot.lane.b32.xlu0 %v2409, 12
        %v2890 = vpop.permute.xlu0 %2889
        %2891 = vrot.lane.b32.xlu0 %v2411, 12
        %v2892 = vpop.permute.xlu0 %2891
        %2893 = vrot.lane.b32.xlu0 %v2412, 12
        %v2894 = vpop.permute.xlu0 %2893
        %2895 = vrot.lane.b32.xlu0 %v2414, 12
        %v2896 = vpop.permute.xlu0 %2895
        %2897 = vrot.lane.b32.xlu0 %v2415, 12
        %v2898 = vpop.permute.xlu0 %2897
        %2899 = vrot.lane.b32.xlu0 %v2417, 12
        %v2900 = vpop.permute.xlu0 %2899
        %2901 = vrot.lane.b32.xlu0 %v2418, 12
        %v2902 = vpop.permute.xlu0 %2901
        %2903 = vrot.lane.b32.xlu0 %v2420, 12
        %v2904 = vpop.permute.xlu0 %2903
        %2905 = vrot.lane.b32.xlu0 %v2421, 12
        %v2906 = vpop.permute.xlu0 %2905
        %2907 = vrot.lane.b32.xlu0 %v2423, 12
        %v2908 = vpop.permute.xlu0 %2907
        %2909 = vrot.lane.b32.xlu0 %v2424, 12
        %v2910 = vpop.permute.xlu0 %2909
        %2911 = vrot.lane.b32.xlu0 %v2426, 12
        %v2912 = vpop.permute.xlu0 %2911
        %2913 = vrot.lane.b32.xlu0 %v2427, 12
        %v2914 = vpop.permute.xlu0 %2913
        %2915 = vrot.lane.b32.xlu0 %v2429, 12
        %v2916 = vpop.permute.xlu0 %2915
        %2917 = vrot.lane.b32.xlu0 %v2430, 12
        %v2918 = vpop.permute.xlu0 %2917
        %2919 = vrot.lane.b32.xlu0 %v2432, 12
        %v2920 = vpop.permute.xlu0 %2919
        %2921 = vrot.lane.b32.xlu0 %v2433, 12
        %v2922 = vpop.permute.xlu0 %2921
        %2923 = vrot.lane.b32.xlu0 %v2435, 12
        %v2924 = vpop.permute.xlu0 %2923
        %2925 = vrot.lane.b32.xlu0 %v2436, 12
        %v2926 = vpop.permute.xlu0 %2925
        %2927 = vrot.lane.b32.xlu0 %v2438, 12
        %v2928 = vpop.permute.xlu0 %2927
        %2929 = vrot.lane.b32.xlu0 %v2439, 12
        %v2930 = vpop.permute.xlu0 %2929
        %2931 = vrot.lane.b32.xlu0 %v2441, 12
        %v2932 = vpop.permute.xlu0 %2931
        %2933 = vrot.lane.b32.xlu0 %v2442, 12
        %v2934 = vpop.permute.xlu0 %2933
        %2935 = vrot.lane.b32.xlu0 %v2444, 12
        %v2936 = vpop.permute.xlu0 %2935
        %2937 = vrot.lane.b32.xlu0 %v2445, 12
        %v2938 = vpop.permute.xlu0 %2937
        %2939 = vrot.lane.b32.xlu0 %v2447, 12
        %v2940 = vpop.permute.xlu0 %2939
        %2941 = vrot.lane.b32.xlu0 %v2448, 12
        %v2942 = vpop.permute.xlu0 %2941
        %2975 = vrot.lane.b32.xlu0 %v2508, 16
        %v2976 = vpop.permute.xlu0 %2975
        %2977 = vrot.lane.b32.xlu0 %v2510, 16
        %v2978 = vpop.permute.xlu0 %2977
        %2979 = vrot.lane.b32.xlu0 %v2513, 16
        %v2980 = vpop.permute.xlu0 %2979
        %2981 = vrot.lane.b32.xlu0 %v2515, 16
        %v2982 = vpop.permute.xlu0 %2981
        %2983 = vrot.lane.b32.xlu0 %v2518, 16
        %v2984 = vpop.permute.xlu0 %2983
        %2985 = vrot.lane.b32.xlu0 %v2520, 16
        %v2986 = vpop.permute.xlu0 %2985
        %2987 = vrot.lane.b32.xlu0 %v2523, 16
        %v2988 = vpop.permute.xlu0 %2987
        %2989 = vrot.lane.b32.xlu0 %v2525, 16
        %v2990 = vpop.permute.xlu0 %2989
        %2991 = vrot.lane.b32.xlu0 %v2528, 16
        %v2992 = vpop.permute.xlu0 %2991
        %2993 = vrot.lane.b32.xlu0 %v2530, 16
        %v2994 = vpop.permute.xlu0 %2993
        %2995 = vrot.lane.b32.xlu0 %v2533, 16
        %v2996 = vpop.permute.xlu0 %2995
        %2997 = vrot.lane.b32.xlu0 %v2535, 16
        %v2998 = vpop.permute.xlu0 %2997
        %2999 = vrot.lane.b32.xlu0 %v2538, 16
        %v3000 = vpop.permute.xlu0 %2999
        %3001 = vrot.lane.b32.xlu0 %v2540, 16
        %v3002 = vpop.permute.xlu0 %3001
        %3003 = vrot.lane.b32.xlu0 %v2543, 16
        %v3004 = vpop.permute.xlu0 %3003
        %3005 = vrot.lane.b32.xlu0 %v2545, 16
        %v3006 = vpop.permute.xlu0 %3005
        %3007 = vrot.lane.b32.xlu0 %v2548, 16
        %v3008 = vpop.permute.xlu0 %3007
        %3009 = vrot.lane.b32.xlu0 %v2550, 16
        %v3010 = vpop.permute.xlu0 %3009
        %3011 = vrot.lane.b32.xlu0 %v2553, 16
        %v3012 = vpop.permute.xlu0 %3011
        %3013 = vrot.lane.b32.xlu0 %v2555, 16
        %v3014 = vpop.permute.xlu0 %3013
        %3015 = vrot.lane.b32.xlu0 %v2558, 16
        %v3016 = vpop.permute.xlu0 %3015
        %3017 = vrot.lane.b32.xlu0 %v2560, 16
        %v3018 = vpop.permute.xlu0 %3017
        %3019 = vrot.lane.b32.xlu0 %v2563, 16
        %v3020 = vpop.permute.xlu0 %3019
        %3021 = vrot.lane.b32.xlu0 %v2565, 16
        %v3022 = vpop.permute.xlu0 %3021
        %3023 = vrot.lane.b32.xlu0 %v2568, 16
        %v3024 = vpop.permute.xlu0 %3023
        %3025 = vrot.lane.b32.xlu0 %v2570, 16
        %v3026 = vpop.permute.xlu0 %3025
        %3027 = vrot.lane.b32.xlu0 %v2573, 16
        %v3028 = vpop.permute.xlu0 %3027
        %3029 = vrot.lane.b32.xlu0 %v2575, 16
        %v3030 = vpop.permute.xlu0 %3029
        %3031 = vrot.lane.b32.xlu0 %v2578, 16
        %v3032 = vpop.permute.xlu0 %3031
        %3033 = vrot.lane.b32.xlu0 %v2580, 16
        %v3034 = vpop.permute.xlu0 %3033
        %3035 = vrot.lane.b32.xlu0 %v2666, 16
        %v3036 = vpop.permute.xlu0 %3035
        %3037 = vrot.lane.b32.xlu0 %v2668, 16
        %v3038 = vpop.permute.xlu0 %3037
        %3071 = vrot.lane.b32.xlu0 %v2588, 20
        %v3072 = vpop.permute.xlu0 %3071
        %3073 = vrot.lane.b32.xlu0 %v2590, 20
        %v3074 = vpop.permute.xlu0 %3073
        %3075 = vrot.lane.b32.xlu0 %v2593, 20
        %v3076 = vpop.permute.xlu0 %3075
        %3077 = vrot.lane.b32.xlu0 %v2595, 20
        %v3078 = vpop.permute.xlu0 %3077
        %3079 = vrot.lane.b32.xlu0 %v2598, 20
        %v3080 = vpop.permute.xlu0 %3079
        %3081 = vrot.lane.b32.xlu0 %v2600, 20
        %v3082 = vpop.permute.xlu0 %3081
        %3083 = vrot.lane.b32.xlu0 %v2603, 20
        %v3084 = vpop.permute.xlu0 %3083
        %3085 = vrot.lane.b32.xlu0 %v2605, 20
        %v3086 = vpop.permute.xlu0 %3085
        %3087 = vrot.lane.b32.xlu0 %v2608, 20
        %v3088 = vpop.permute.xlu0 %3087
        %3089 = vrot.lane.b32.xlu0 %v2610, 20
        %v3090 = vpop.permute.xlu0 %3089
        %3091 = vrot.lane.b32.xlu0 %v2613, 20
        %v3092 = vpop.permute.xlu0 %3091
        %3093 = vrot.lane.b32.xlu0 %v2615, 20
        %v3094 = vpop.permute.xlu0 %3093
        %3095 = vrot.lane.b32.xlu0 %v2618, 20
        %v3096 = vpop.permute.xlu0 %3095
        %3097 = vrot.lane.b32.xlu0 %v2620, 20
        %v3098 = vpop.permute.xlu0 %3097
        %3099 = vrot.lane.b32.xlu0 %v2623, 20
        %v3100 = vpop.permute.xlu0 %3099
        %3101 = vrot.lane.b32.xlu0 %v2625, 20
        %v3102 = vpop.permute.xlu0 %3101
        %3103 = vrot.lane.b32.xlu0 %v2628, 20
        %v3104 = vpop.permute.xlu0 %3103
        %3105 = vrot.lane.b32.xlu0 %v2630, 20
        %v3106 = vpop.permute.xlu0 %3105
        %3107 = vrot.lane.b32.xlu0 %v2633, 20
        %v3108 = vpop.permute.xlu0 %3107
        %3109 = vrot.lane.b32.xlu0 %v2635, 20
        %v3110 = vpop.permute.xlu0 %3109
        %3111 = vrot.lane.b32.xlu0 %v2638, 20
        %v3112 = vpop.permute.xlu0 %3111
        %3113 = vrot.lane.b32.xlu0 %v2640, 20
        %v3114 = vpop.permute.xlu0 %3113
        %3115 = vrot.lane.b32.xlu0 %v2643, 20
        %v3116 = vpop.permute.xlu0 %3115
        %3117 = vrot.lane.b32.xlu0 %v2645, 20
        %v3118 = vpop.permute.xlu0 %3117
        %3119 = vrot.lane.b32.xlu0 %v2648, 20
        %v3120 = vpop.permute.xlu0 %3119
        %3121 = vrot.lane.b32.xlu0 %v2650, 20
        %v3122 = vpop.permute.xlu0 %3121
        %3123 = vrot.lane.b32.xlu0 %v2653, 20
        %v3124 = vpop.permute.xlu0 %3123
        %3125 = vrot.lane.b32.xlu0 %v2655, 20
        %v3126 = vpop.permute.xlu0 %3125
        %3127 = vrot.lane.b32.xlu0 %v2658, 20
        %v3128 = vpop.permute.xlu0 %3127
        %3129 = vrot.lane.b32.xlu0 %v2660, 20
        %v3130 = vpop.permute.xlu0 %3129
        %3131 = vrot.lane.b32.xlu0 %v2671, 20
        %v3132 = vpop.permute.xlu0 %3131
        %3133 = vrot.lane.b32.xlu0 %v2673, 20
        %v3134 = vpop.permute.xlu0 %3133
        %3167 = vrot.lane.b32.xlu0 %v2405, 24
        %v3168 = vpop.permute.xlu0 %3167
        %3169 = vrot.lane.b32.xlu0 %v2406, 24
        %v3170 = vpop.permute.xlu0 %3169
        %3171 = vrot.lane.b32.xlu0 %v2408, 24
        %v3172 = vpop.permute.xlu0 %3171
        %3173 = vrot.lane.b32.xlu0 %v2409, 24
        %v3174 = vpop.permute.xlu0 %3173
        %3175 = vrot.lane.b32.xlu0 %v2411, 24
        %v3176 = vpop.permute.xlu0 %3175
        %3177 = vrot.lane.b32.xlu0 %v2412, 24
        %v3178 = vpop.permute.xlu0 %3177
        %3179 = vrot.lane.b32.xlu0 %v2414, 24
        %v3180 = vpop.permute.xlu0 %3179
        %3181 = vrot.lane.b32.xlu0 %v2415, 24
        %v3182 = vpop.permute.xlu0 %3181
        %3183 = vrot.lane.b32.xlu0 %v2417, 24
        %v3184 = vpop.permute.xlu0 %3183
        %3185 = vrot.lane.b32.xlu0 %v2418, 24
        %v3186 = vpop.permute.xlu0 %3185
        %3187 = vrot.lane.b32.xlu0 %v2420, 24
        %v3188 = vpop.permute.xlu0 %3187
        %3189 = vrot.lane.b32.xlu0 %v2421, 24
        %v3190 = vpop.permute.xlu0 %3189
        %3191 = vrot.lane.b32.xlu0 %v2423, 24
        %v3192 = vpop.permute.xlu0 %3191
        %3193 = vrot.lane.b32.xlu0 %v2424, 24
        %v3194 = vpop.permute.xlu0 %3193
        %3195 = vrot.lane.b32.xlu0 %v2426, 24
        %v3196 = vpop.permute.xlu0 %3195
        %3197 = vrot.lane.b32.xlu0 %v2427, 24
        %v3198 = vpop.permute.xlu0 %3197
        %3199 = vrot.lane.b32.xlu0 %v2429, 24
        %v3200 = vpop.permute.xlu0 %3199
        %3201 = vrot.lane.b32.xlu0 %v2430, 24
        %v3202 = vpop.permute.xlu0 %3201
        %3203 = vrot.lane.b32.xlu0 %v2432, 24
        %v3204 = vpop.permute.xlu0 %3203
        %3205 = vrot.lane.b32.xlu0 %v2433, 24
        %v3206 = vpop.permute.xlu0 %3205
        %3207 = vrot.lane.b32.xlu0 %v2435, 24
        %v3208 = vpop.permute.xlu0 %3207
        %3209 = vrot.lane.b32.xlu0 %v2436, 24
        %v3210 = vpop.permute.xlu0 %3209
        %3211 = vrot.lane.b32.xlu0 %v2438, 24
        %v3212 = vpop.permute.xlu0 %3211
        %3213 = vrot.lane.b32.xlu0 %v2439, 24
        %v3214 = vpop.permute.xlu0 %3213
        %3215 = vrot.lane.b32.xlu0 %v2441, 24
        %v3216 = vpop.permute.xlu0 %3215
        %3217 = vrot.lane.b32.xlu0 %v2442, 24
        %v3218 = vpop.permute.xlu0 %3217
        %3219 = vrot.lane.b32.xlu0 %v2444, 24
        %v3220 = vpop.permute.xlu0 %3219
        %3221 = vrot.lane.b32.xlu0 %v2445, 24
        %v3222 = vpop.permute.xlu0 %3221
        %3223 = vrot.lane.b32.xlu0 %v2447, 24
        %v3224 = vpop.permute.xlu0 %3223
        %3225 = vrot.lane.b32.xlu0 %v2448, 24
        %v3226 = vpop.permute.xlu0 %3225
        %3227 = vrot.lane.b32.xlu0 %v2450, 24
        %v3228 = vpop.permute.xlu0 %3227
        %3229 = vrot.lane.b32.xlu0 %v2451, 24
        %v3230 = vpop.permute.xlu0 %3229
        %3263 = vrot.lane.b32.xlu0 %v2513, 28
        %v3264 = vpop.permute.xlu0 %3263
        %3265 = vrot.lane.b32.xlu0 %v2515, 28
        %v3266 = vpop.permute.xlu0 %3265
        %3267 = vrot.lane.b32.xlu0 %v2518, 28
        %v3268 = vpop.permute.xlu0 %3267
        %3269 = vrot.lane.b32.xlu0 %v2520, 28
        %v3270 = vpop.permute.xlu0 %3269
        %3271 = vrot.lane.b32.xlu0 %v2523, 28
        %v3272 = vpop.permute.xlu0 %3271
        %3273 = vrot.lane.b32.xlu0 %v2525, 28
        %v3274 = vpop.permute.xlu0 %3273
        %3275 = vrot.lane.b32.xlu0 %v2528, 28
        %v3276 = vpop.permute.xlu0 %3275
        %3277 = vrot.lane.b32.xlu0 %v2530, 28
        %v3278 = vpop.permute.xlu0 %3277
        %3279 = vrot.lane.b32.xlu0 %v2533, 28
        %v3280 = vpop.permute.xlu0 %3279
        %3281 = vrot.lane.b32.xlu0 %v2535, 28
        %v3282 = vpop.permute.xlu0 %3281
        %3283 = vrot.lane.b32.xlu0 %v2538, 28
        %v3284 = vpop.permute.xlu0 %3283
        %3285 = vrot.lane.b32.xlu0 %v2540, 28
        %v3286 = vpop.permute.xlu0 %3285
        %3287 = vrot.lane.b32.xlu0 %v2543, 28
        %v3288 = vpop.permute.xlu0 %3287
        %3289 = vrot.lane.b32.xlu0 %v2545, 28
        %v3290 = vpop.permute.xlu0 %3289
        %3291 = vrot.lane.b32.xlu0 %v2548, 28
        %v3292 = vpop.permute.xlu0 %3291
        %3293 = vrot.lane.b32.xlu0 %v2550, 28
        %v3294 = vpop.permute.xlu0 %3293
        %3295 = vrot.lane.b32.xlu0 %v2553, 28
        %v3296 = vpop.permute.xlu0 %3295
        %3297 = vrot.lane.b32.xlu0 %v2555, 28
        %v3298 = vpop.permute.xlu0 %3297
        %3299 = vrot.lane.b32.xlu0 %v2558, 28
        %v3300 = vpop.permute.xlu0 %3299
        %3301 = vrot.lane.b32.xlu0 %v2560, 28
        %v3302 = vpop.permute.xlu0 %3301
        %3303 = vrot.lane.b32.xlu0 %v2563, 28
        %v3304 = vpop.permute.xlu0 %3303
        %3305 = vrot.lane.b32.xlu0 %v2565, 28
        %v3306 = vpop.permute.xlu0 %3305
        %3307 = vrot.lane.b32.xlu0 %v2568, 28
        %v3308 = vpop.permute.xlu0 %3307
        %3309 = vrot.lane.b32.xlu0 %v2570, 28
        %v3310 = vpop.permute.xlu0 %3309
        %3311 = vrot.lane.b32.xlu0 %v2573, 28
        %v3312 = vpop.permute.xlu0 %3311
        %3313 = vrot.lane.b32.xlu0 %v2575, 28
        %v3314 = vpop.permute.xlu0 %3313
        %3315 = vrot.lane.b32.xlu0 %v2578, 28
        %v3316 = vpop.permute.xlu0 %3315
        %3317 = vrot.lane.b32.xlu0 %v2580, 28
        %v3318 = vpop.permute.xlu0 %3317
        %3319 = vrot.lane.b32.xlu0 %v2666, 28
        %v3320 = vpop.permute.xlu0 %3319
        %3321 = vrot.lane.b32.xlu0 %v2668, 28
        %v3322 = vpop.permute.xlu0 %3321
        %3323 = vrot.lane.b32.xlu0 %v2679, 28
        %v3324 = vpop.permute.xlu0 %3323
        %3325 = vrot.lane.b32.xlu0 %v2681, 28
        %v3326 = vpop.permute.xlu0 %3325
        %3359 = vrot.lane.b32.xlu0 %v2593, 32
        %v3360 = vpop.permute.xlu0 %3359
        %3361 = vrot.lane.b32.xlu0 %v2595, 32
        %v3362 = vpop.permute.xlu0 %3361
        %3363 = vrot.lane.b32.xlu0 %v2598, 32
        %v3364 = vpop.permute.xlu0 %3363
        %3365 = vrot.lane.b32.xlu0 %v2600, 32
        %v3366 = vpop.permute.xlu0 %3365
        %3367 = vrot.lane.b32.xlu0 %v2603, 32
        %v3368 = vpop.permute.xlu0 %3367
        %3369 = vrot.lane.b32.xlu0 %v2605, 32
        %v3370 = vpop.permute.xlu0 %3369
        %3371 = vrot.lane.b32.xlu0 %v2608, 32
        %v3372 = vpop.permute.xlu0 %3371
        %3373 = vrot.lane.b32.xlu0 %v2610, 32
        %v3374 = vpop.permute.xlu0 %3373
        %3375 = vrot.lane.b32.xlu0 %v2613, 32
        %v3376 = vpop.permute.xlu0 %3375
        %3377 = vrot.lane.b32.xlu0 %v2615, 32
        %v3378 = vpop.permute.xlu0 %3377
        %3379 = vrot.lane.b32.xlu0 %v2618, 32
        %v3380 = vpop.permute.xlu0 %3379
        %3381 = vrot.lane.b32.xlu0 %v2620, 32
        %v3382 = vpop.permute.xlu0 %3381
        %3383 = vrot.lane.b32.xlu0 %v2623, 32
        %v3384 = vpop.permute.xlu0 %3383
        %3385 = vrot.lane.b32.xlu0 %v2625, 32
        %v3386 = vpop.permute.xlu0 %3385
        %3387 = vrot.lane.b32.xlu0 %v2628, 32
        %v3388 = vpop.permute.xlu0 %3387
        %3389 = vrot.lane.b32.xlu0 %v2630, 32
        %v3390 = vpop.permute.xlu0 %3389
        %3391 = vrot.lane.b32.xlu0 %v2633, 32
        %v3392 = vpop.permute.xlu0 %3391
        %3393 = vrot.lane.b32.xlu0 %v2635, 32
        %v3394 = vpop.permute.xlu0 %3393
        %3395 = vrot.lane.b32.xlu0 %v2638, 32
        %v3396 = vpop.permute.xlu0 %3395
        %3397 = vrot.lane.b32.xlu0 %v2640, 32
        %v3398 = vpop.permute.xlu0 %3397
        %3399 = vrot.lane.b32.xlu0 %v2643, 32
        %v3400 = vpop.permute.xlu0 %3399
        %3401 = vrot.lane.b32.xlu0 %v2645, 32
        %v3402 = vpop.permute.xlu0 %3401
        %3403 = vrot.lane.b32.xlu0 %v2648, 32
        %v3404 = vpop.permute.xlu0 %3403
        %3405 = vrot.lane.b32.xlu0 %v2650, 32
        %v3406 = vpop.permute.xlu0 %3405
        %3407 = vrot.lane.b32.xlu0 %v2653, 32
        %v3408 = vpop.permute.xlu0 %3407
        %3409 = vrot.lane.b32.xlu0 %v2655, 32
        %v3410 = vpop.permute.xlu0 %3409
        %3411 = vrot.lane.b32.xlu0 %v2658, 32
        %v3412 = vpop.permute.xlu0 %3411
        %3413 = vrot.lane.b32.xlu0 %v2660, 32
        %v3414 = vpop.permute.xlu0 %3413
        %3415 = vrot.lane.b32.xlu0 %v2671, 32
        %v3416 = vpop.permute.xlu0 %3415
        %3417 = vrot.lane.b32.xlu0 %v2673, 32
        %v3418 = vpop.permute.xlu0 %3417
        %3419 = vrot.lane.b32.xlu0 %v2684, 32
        %v3420 = vpop.permute.xlu0 %3419
        %3421 = vrot.lane.b32.xlu0 %v2686, 32
        %v3422 = vpop.permute.xlu0 %3421
        %v3455 = vsel %vm261, %v2399, %v2688
        %v3456 = vsel %vm261, %v2400, %v2690
        %v3457 = vsel %vm261, %v2402, %v2692
        %v3458 = vsel %vm261, %v2403, %v2694
        %v3459 = vsel %vm261, %v2405, %v2696
        %v3460 = vsel %vm261, %v2406, %v2698
        %v3461 = vsel %vm261, %v2408, %v2700
        %v3462 = vsel %vm261, %v2409, %v2702
        %v3463 = vsel %vm261, %v2411, %v2704
        %v3464 = vsel %vm261, %v2412, %v2706
        %v3465 = vsel %vm261, %v2414, %v2708
        %v3466 = vsel %vm261, %v2415, %v2710
        %v3467 = vsel %vm261, %v2417, %v2712
        %v3468 = vsel %vm261, %v2418, %v2714
        %v3469 = vsel %vm261, %v2420, %v2716
        %v3470 = vsel %vm261, %v2421, %v2718
        %v3471 = vsel %vm261, %v2423, %v2720
        %v3472 = vsel %vm261, %v2424, %v2722
        %v3473 = vsel %vm261, %v2426, %v2724
        %v3474 = vsel %vm261, %v2427, %v2726
        %v3475 = vsel %vm261, %v2429, %v2728
        %v3476 = vsel %vm261, %v2430, %v2730
        %v3477 = vsel %vm261, %v2432, %v2732
        %v3478 = vsel %vm261, %v2433, %v2734
        %v3479 = vsel %vm261, %v2435, %v2736
        %v3480 = vsel %vm261, %v2436, %v2738
        %v3481 = vsel %vm261, %v2438, %v2740
        %v3482 = vsel %vm261, %v2439, %v2742
        %v3483 = vsel %vm261, %v2441, %v2744
        %v3484 = vsel %vm261, %v2442, %v2746
        %v3485 = vsel %vm261, %v2444, %v2748
        %v3486 = vsel %vm261, %v2445, %v2750
        %v3487 = vsel %vm1462, %v3455, %v2784
        %v3488 = vsel %vm1462, %v3456, %v2786
        %v3489 = vsel %vm1462, %v3457, %v2788
        %v3490 = vsel %vm1462, %v3458, %v2790
        %v3491 = vsel %vm1462, %v3459, %v2792
        %v3492 = vsel %vm1462, %v3460, %v2794
        %v3493 = vsel %vm1462, %v3461, %v2796
        %v3494 = vsel %vm1462, %v3462, %v2798
        %v3495 = vsel %vm1462, %v3463, %v2800
        %v3496 = vsel %vm1462, %v3464, %v2802
        %v3497 = vsel %vm1462, %v3465, %v2804
        %v3498 = vsel %vm1462, %v3466, %v2806
        %v3499 = vsel %vm1462, %v3467, %v2808
        %v3500 = vsel %vm1462, %v3468, %v2810
        %v3501 = vsel %vm1462, %v3469, %v2812
        %v3502 = vsel %vm1462, %v3470, %v2814
        %v3503 = vsel %vm1462, %v3471, %v2816
        %v3504 = vsel %vm1462, %v3472, %v2818
        %v3505 = vsel %vm1462, %v3473, %v2820
        %v3506 = vsel %vm1462, %v3474, %v2822
        %v3507 = vsel %vm1462, %v3475, %v2824
        %v3508 = vsel %vm1462, %v3476, %v2826
        %v3509 = vsel %vm1462, %v3477, %v2828
        %v3510 = vsel %vm1462, %v3478, %v2830
        %v3511 = vsel %vm1462, %v3479, %v2832
        %v3512 = vsel %vm1462, %v3480, %v2834
        %v3513 = vsel %vm1462, %v3481, %v2836
        %v3514 = vsel %vm1462, %v3482, %v2838
        %v3515 = vsel %vm1462, %v3483, %v2840
        %v3516 = vsel %vm1462, %v3484, %v2842
        %v3517 = vsel %vm1462, %v3485, %v2844
        %v3518 = vsel %vm1462, %v3486, %v2846
        %v3519 = vsel %vm1495, %v3487, %v2880
        %v3520 = vsel %vm1495, %v3488, %v2882
        %v3521 = vsel %vm1495, %v3489, %v2884
        %v3522 = vsel %vm1495, %v3490, %v2886
        %v3523 = vsel %vm1495, %v3491, %v2888
        %v3524 = vsel %vm1495, %v3492, %v2890
        %v3525 = vsel %vm1495, %v3493, %v2892
        %v3526 = vsel %vm1495, %v3494, %v2894
        %v3527 = vsel %vm1495, %v3495, %v2896
        %v3528 = vsel %vm1495, %v3496, %v2898
        %v3529 = vsel %vm1495, %v3497, %v2900
        %v3530 = vsel %vm1495, %v3498, %v2902
        %v3531 = vsel %vm1495, %v3499, %v2904
        %v3532 = vsel %vm1495, %v3500, %v2906
        %v3533 = vsel %vm1495, %v3501, %v2908
        %v3534 = vsel %vm1495, %v3502, %v2910
        %v3535 = vsel %vm1495, %v3503, %v2912
        %v3536 = vsel %vm1495, %v3504, %v2914
        %v3537 = vsel %vm1495, %v3505, %v2916
        %v3538 = vsel %vm1495, %v3506, %v2918
        %v3539 = vsel %vm1495, %v3507, %v2920
        %v3540 = vsel %vm1495, %v3508, %v2922
        %v3541 = vsel %vm1495, %v3509, %v2924
        %v3542 = vsel %vm1495, %v3510, %v2926
        %v3543 = vsel %vm1495, %v3511, %v2928
        %v3544 = vsel %vm1495, %v3512, %v2930
        %v3545 = vsel %vm1495, %v3513, %v2932
        %v3546 = vsel %vm1495, %v3514, %v2934
        %v3547 = vsel %vm1495, %v3515, %v2936
        %v3548 = vsel %vm1495, %v3516, %v2938
        %v3549 = vsel %vm1495, %v3517, %v2940
        %v3550 = vsel %vm1495, %v3518, %v2942
        %v3551 = vsel %vm1528, %v3519, %v2976
        %v3552 = vsel %vm1528, %v3520, %v2978
        %v3553 = vsel %vm1528, %v3521, %v2980
        %v3554 = vsel %vm1528, %v3522, %v2982
        %v3555 = vsel %vm1528, %v3523, %v2984
        %v3556 = vsel %vm1528, %v3524, %v2986
        %v3557 = vsel %vm1528, %v3525, %v2988
        %v3558 = vsel %vm1528, %v3526, %v2990
        %v3559 = vsel %vm1528, %v3527, %v2992
        %v3560 = vsel %vm1528, %v3528, %v2994
        %v3561 = vsel %vm1528, %v3529, %v2996
        %v3562 = vsel %vm1528, %v3530, %v2998
        %v3563 = vsel %vm1528, %v3531, %v3000
        %v3564 = vsel %vm1528, %v3532, %v3002
        %v3565 = vsel %vm1528, %v3533, %v3004
        %v3566 = vsel %vm1528, %v3534, %v3006
        %v3567 = vsel %vm1528, %v3535, %v3008
        %v3568 = vsel %vm1528, %v3536, %v3010
        %v3569 = vsel %vm1528, %v3537, %v3012
        %v3570 = vsel %vm1528, %v3538, %v3014
        %v3571 = vsel %vm1528, %v3539, %v3016
        %v3572 = vsel %vm1528, %v3540, %v3018
        %v3573 = vsel %vm1528, %v3541, %v3020
        %v3574 = vsel %vm1528, %v3542, %v3022
        %v3575 = vsel %vm1528, %v3543, %v3024
        %v3576 = vsel %vm1528, %v3544, %v3026
        %v3577 = vsel %vm1528, %v3545, %v3028
        %v3578 = vsel %vm1528, %v3546, %v3030
        %v3579 = vsel %vm1528, %v3547, %v3032
        %v3580 = vsel %vm1528, %v3548, %v3034
        %v3581 = vsel %vm1528, %v3549, %v3036
        %v3582 = vsel %vm1528, %v3550, %v3038
        %v3583 = vsel %vm1561, %v3551, %v3072
        %v3584 = vsel %vm1561, %v3552, %v3074
        %v3585 = vsel %vm1561, %v3553, %v3076
        %v3586 = vsel %vm1561, %v3554, %v3078
        %v3587 = vsel %vm1561, %v3555, %v3080
        %v3588 = vsel %vm1561, %v3556, %v3082
        %v3589 = vsel %vm1561, %v3557, %v3084
        %v3590 = vsel %vm1561, %v3558, %v3086
        %v3591 = vsel %vm1561, %v3559, %v3088
        %v3592 = vsel %vm1561, %v3560, %v3090
        %v3593 = vsel %vm1561, %v3561, %v3092
        %v3594 = vsel %vm1561, %v3562, %v3094
        %v3595 = vsel %vm1561, %v3563, %v3096
        %v3596 = vsel %vm1561, %v3564, %v3098
        %v3597 = vsel %vm1561, %v3565, %v3100
        %v3598 = vsel %vm1561, %v3566, %v3102
        %v3599 = vsel %vm1561, %v3567, %v3104
        %v3600 = vsel %vm1561, %v3568, %v3106
        %v3601 = vsel %vm1561, %v3569, %v3108
        %v3602 = vsel %vm1561, %v3570, %v3110
        %v3603 = vsel %vm1561, %v3571, %v3112
        %v3604 = vsel %vm1561, %v3572, %v3114
        %v3605 = vsel %vm1561, %v3573, %v3116
        %v3606 = vsel %vm1561, %v3574, %v3118
        %v3607 = vsel %vm1561, %v3575, %v3120
        %v3608 = vsel %vm1561, %v3576, %v3122
        %v3609 = vsel %vm1561, %v3577, %v3124
        %v3610 = vsel %vm1561, %v3578, %v3126
        %v3611 = vsel %vm1561, %v3579, %v3128
        %v3612 = vsel %vm1561, %v3580, %v3130
        %v3613 = vsel %vm1561, %v3581, %v3132
        %v3614 = vsel %vm1561, %v3582, %v3134
        %v3615 = vsel %vm1594, %v3583, %v3168
        %v3616 = vsel %vm1594, %v3584, %v3170
        %v3617 = vsel %vm1594, %v3585, %v3172
        %v3618 = vsel %vm1594, %v3586, %v3174
        %v3619 = vsel %vm1594, %v3587, %v3176
        %v3620 = vsel %vm1594, %v3588, %v3178
        %v3621 = vsel %vm1594, %v3589, %v3180
        %v3622 = vsel %vm1594, %v3590, %v3182
        %v3623 = vsel %vm1594, %v3591, %v3184
        %v3624 = vsel %vm1594, %v3592, %v3186
        %v3625 = vsel %vm1594, %v3593, %v3188
        %v3626 = vsel %vm1594, %v3594, %v3190
        %v3627 = vsel %vm1594, %v3595, %v3192
        %v3628 = vsel %vm1594, %v3596, %v3194
        %v3629 = vsel %vm1594, %v3597, %v3196
        %v3630 = vsel %vm1594, %v3598, %v3198
        %v3631 = vsel %vm1594, %v3599, %v3200
        %v3632 = vsel %vm1594, %v3600, %v3202
        %v3633 = vsel %vm1594, %v3601, %v3204
        %v3634 = vsel %vm1594, %v3602, %v3206
        %v3635 = vsel %vm1594, %v3603, %v3208
        %v3636 = vsel %vm1594, %v3604, %v3210
        %v3637 = vsel %vm1594, %v3605, %v3212
        %v3638 = vsel %vm1594, %v3606, %v3214
        %v3639 = vsel %vm1594, %v3607, %v3216
        %v3640 = vsel %vm1594, %v3608, %v3218
        %v3641 = vsel %vm1594, %v3609, %v3220
        %v3642 = vsel %vm1594, %v3610, %v3222
        %v3643 = vsel %vm1594, %v3611, %v3224
        %v3644 = vsel %vm1594, %v3612, %v3226
        %v3645 = vsel %vm1594, %v3613, %v3228
        %v3646 = vsel %vm1594, %v3614, %v3230
        %v3647 = vsel %vm1627, %v3615, %v3264
        %v3648 = vsel %vm1627, %v3616, %v3266
        %v3649 = vsel %vm1627, %v3617, %v3268
        %v3650 = vsel %vm1627, %v3618, %v3270
        %v3651 = vsel %vm1627, %v3619, %v3272
        %v3652 = vsel %vm1627, %v3620, %v3274
        %v3653 = vsel %vm1627, %v3621, %v3276
        %v3654 = vsel %vm1627, %v3622, %v3278
        %v3655 = vsel %vm1627, %v3623, %v3280
        %v3656 = vsel %vm1627, %v3624, %v3282
        %v3657 = vsel %vm1627, %v3625, %v3284
        %v3658 = vsel %vm1627, %v3626, %v3286
        %v3659 = vsel %vm1627, %v3627, %v3288
        %v3660 = vsel %vm1627, %v3628, %v3290
        %v3661 = vsel %vm1627, %v3629, %v3292
        %v3662 = vsel %vm1627, %v3630, %v3294
        %v3663 = vsel %vm1627, %v3631, %v3296
        %v3664 = vsel %vm1627, %v3632, %v3298
        %v3665 = vsel %vm1627, %v3633, %v3300
        %v3666 = vsel %vm1627, %v3634, %v3302
        %v3667 = vsel %vm1627, %v3635, %v3304
        %v3668 = vsel %vm1627, %v3636, %v3306
        %v3669 = vsel %vm1627, %v3637, %v3308
        %v3670 = vsel %vm1627, %v3638, %v3310
        %v3671 = vsel %vm1627, %v3639, %v3312
        %v3672 = vsel %vm1627, %v3640, %v3314
        %v3673 = vsel %vm1627, %v3641, %v3316
        %v3674 = vsel %vm1627, %v3642, %v3318
        %v3675 = vsel %vm1627, %v3643, %v3320
        %v3676 = vsel %vm1627, %v3644, %v3322
        %v3677 = vsel %vm1627, %v3645, %v3324
        %v3678 = vsel %vm1627, %v3646, %v3326
        %v3679 = vsel %vm1660, %v3647, %v3360
        %v3680 = vsel %vm1660, %v3648, %v3362
        %v3681 = vsel %vm1660, %v3649, %v3364
        %v3682 = vsel %vm1660, %v3650, %v3366
        %v3683 = vsel %vm1660, %v3651, %v3368
        %v3684 = vsel %vm1660, %v3652, %v3370
        %v3685 = vsel %vm1660, %v3653, %v3372
        %v3686 = vsel %vm1660, %v3654, %v3374
        %v3687 = vsel %vm1660, %v3655, %v3376
        %v3688 = vsel %vm1660, %v3656, %v3378
        %v3689 = vsel %vm1660, %v3657, %v3380
        %v3690 = vsel %vm1660, %v3658, %v3382
        %v3691 = vsel %vm1660, %v3659, %v3384
        %v3692 = vsel %vm1660, %v3660, %v3386
        %v3693 = vsel %vm1660, %v3661, %v3388
        %v3694 = vsel %vm1660, %v3662, %v3390
        %v3695 = vsel %vm1660, %v3663, %v3392
        %v3696 = vsel %vm1660, %v3664, %v3394
        %v3697 = vsel %vm1660, %v3665, %v3396
        %v3698 = vsel %vm1660, %v3666, %v3398
        %v3699 = vsel %vm1660, %v3667, %v3400
        %v3700 = vsel %vm1660, %v3668, %v3402
        %v3701 = vsel %vm1660, %v3669, %v3404
        %v3702 = vsel %vm1660, %v3670, %v3406
        %v3703 = vsel %vm1660, %v3671, %v3408
        %v3704 = vsel %vm1660, %v3672, %v3410
        %v3705 = vsel %vm1660, %v3673, %v3412
        %v3706 = vsel %vm1660, %v3674, %v3414
        %v3707 = vsel %vm1660, %v3675, %v3416
        %v3708 = vsel %vm1660, %v3676, %v3418
        %v3709 = vsel %vm1660, %v3677, %v3420
        %v3710 = vsel %vm1660, %v3678, %v3422
        %v3712 = vsel %vm1693, %v3679, 0
        %v3715 = vsel %vm1693, %v3680, 0
        %v3718 = vsel %vm1693, %v3681, 0
        %v3721 = vsel %vm1693, %v3682, 0
        %v3724 = vsel %vm1693, %v3683, 0
        %v3727 = vsel %vm1693, %v3684, 0
        %v3730 = vsel %vm1693, %v3685, 0
        %v3733 = vsel %vm1693, %v3686, 0
        %v3736 = vsel %vm1693, %v3687, 0
        %v3739 = vsel %vm1693, %v3688, 0
        %v3742 = vsel %vm1693, %v3689, 0
        %v3745 = vsel %vm1693, %v3690, 0
        %v3748 = vsel %vm1693, %v3691, 0
        %v3751 = vsel %vm1693, %v3692, 0
        %v3754 = vsel %vm1693, %v3693, 0
        %v3757 = vsel %vm1693, %v3694, 0
        %v3760 = vsel %vm1693, %v3695, 0
        %v3763 = vsel %vm1693, %v3696, 0
        %v3766 = vsel %vm1693, %v3697, 0
        %v3769 = vsel %vm1693, %v3698, 0
        %v3772 = vsel %vm1693, %v3699, 0
        %v3775 = vsel %vm1693, %v3700, 0
        %v3778 = vsel %vm1693, %v3701, 0
        %v3781 = vsel %vm1693, %v3702, 0
        %v3784 = vsel %vm1693, %v3703, 0
        %v3787 = vsel %vm1693, %v3704, 0
        %v3790 = vsel %vm1693, %v3705, 0
        %v3793 = vsel %vm1693, %v3706, 0
        %v3796 = vsel %vm1693, %v3707, 0
        %v3799 = vsel %vm1693, %v3708, 0
        %v3802 = vsel %vm1693, %v3709, 0
        %v3805 = vsel %vm1693, %v3710, 0
        %v3808 = vsel %vm1790, %v259, 0
        %3810 = vmatprep.subr.mxu0 0.0
        %3811 = vmatpush1.msra.mxu0 %v255
        %3812 = vmatprep.subr.mxu0 0.0
        %3813 = vmatpush1.msra.mxu0 %v256
        %3814 = vmatprep.subr.mxu0 0.0
        %3815 = vmatpush1.msra.mxu0 %v257
        %3816 = vmatprep.subr.mxu0 0.0
        %3817 = vmatpush1.msra.mxu0 %v258
        %3818 = vmatprep.subr.mxu0 0.0
        %3819 = vmatpush1.msra.mxu0 %v3808
        %3820 = vmatprep.subr.mxu0 0.0
        %3821 = vmatpush1.msra.mxu0 0.0
        %3822 = vmatprep.subr.mxu0 0.0
        %3823 = vmatpush1.msra.mxu0 0.0
        %3824 = vmatprep.subr.mxu0 0.0
        %3825 = vmatpush1.msra.mxu0 0.0
        %3826 = vmatprep.subr.mxu0 0.0
        %3827 = vmatpush1.msra.mxu0 0.0
        %3828 = vmatprep.subr.mxu0 0.0
        %3829 = vmatpush1.msra.mxu0 0.0
        %3830 = vmatprep.subr.mxu0 0.0
        %3831 = vmatpush1.msra.mxu0 0.0
        %3832 = vmatprep.subr.mxu0 0.0
        %3833 = vmatpush1.msra.mxu0 0.0
        %3834 = vmatprep.subr.mxu0 0.0
        %3835 = vmatpush1.msra.mxu0 0.0
        %3836 = vmatprep.subr.mxu0 0.0
        %3837 = vmatpush1.msra.mxu0 0.0
        %3838 = vmatprep.subr.mxu0 0.0
        %3839 = vmatpush1.msra.mxu0 0.0
        %3840 = vmatprep.subr.mxu0 0.0
        %3841 = vmatpush1.msra.mxu0 0.0
        %3842 = vmatprep.subr.mxu0 0.0
        %3843 = vmatpush1.msra.mxu0 0.0
        %3844 = vmatprep.subr.mxu0 0.0
        %3845 = vmatpush1.msra.mxu0 0.0
        %3846 = vmatprep.subr.mxu0 0.0
        %3847 = vmatpush1.msra.mxu0 0.0
        %3848 = vmatprep.subr.mxu0 0.0
        %3849 = vmatpush1.msra.mxu0 0.0
        %3850 = vmatprep.subr.mxu0 0.0
        %3851 = vmatpush1.msra.mxu0 0.0
        %3852 = vmatprep.subr.mxu0 0.0
        %3853 = vmatpush1.msra.mxu0 0.0
        %3854 = vmatprep.subr.mxu0 0.0
        %3855 = vmatpush1.msra.mxu0 0.0
        %3856 = vmatprep.subr.mxu0 0.0
        %3857 = vmatpush1.msra.mxu0 0.0
        %3858 = vmatprep.subr.mxu0 0.0
        %3859 = vmatpush1.msra.mxu0 0.0
        %3860 = vmatprep.subr.mxu0 0.0
        %3861 = vmatpush1.msra.mxu0 0.0
        %3862 = vmatprep.subr.mxu0 0.0
        %3863 = vmatpush1.msra.mxu0 0.0
        %3864 = vmatprep.subr.mxu0 0.0
        %3865 = vmatpush1.msra.mxu0 0.0
        %3866 = vmatprep.subr.mxu0 0.0
        %3867 = vmatpush1.msra.mxu0 0.0
        %3868 = vmatprep.subr.mxu0 0.0
        %3869 = vmatpush1.msra.mxu0 0.0
        %3870 = vmatprep.subr.mxu0 0.0
        %3871 = vmatpush1.msra.mxu0 0.0
        %3872 = vmatprep.subr.mxu0 0.0
        %3873 = vmatpush1.msra.mxu0 0.0
        %3874 = vmatprep.mubr.f32.mxu0 0.0
        %3875 = vmatmul.mubr.f32.gmra.mrb[0].mxu0 %v3712
        %v3876 = vpop.f32.mrb[0].mxu0
        %v3877 = vadd.f32 0.0, %v3876
        %v3878 = vpop.f32.mrb[0].mxu0
        %3879 = vmatprep.mubr.f32.mxu0 0.0
        %3880 = vmatmul.mubr.f32.gmra.mrb[0].mxu0 %v3715
        %v3881 = vpop.f32.mrb[0].mxu0
        %v3882 = vadd.f32 0.0, %v3881
        %v3883 = vpop.f32.mrb[0].mxu0
        %3884 = vmatprep.mubr.f32.mxu0 0.0
        %3885 = vmatmul.mubr.f32.gmra.mrb[0].mxu0 %v3718
        %v3886 = vpop.f32.mrb[0].mxu0
        %v3887 = vadd.f32 0.0, %v3886
        %v3888 = vpop.f32.mrb[0].mxu0
        %3889 = vmatprep.mubr.f32.mxu0 0.0
        %3890 = vmatmul.mubr.f32.gmra.mrb[0].mxu0 %v3721
        %v3891 = vpop.f32.mrb[0].mxu0
        %v3892 = vadd.f32 0.0, %v3891
        %v3893 = vpop.f32.mrb[0].mxu0
        %3894 = vmatprep.mubr.f32.mxu0 0.0
        %3895 = vmatmul.mubr.f32.gmra.mrb[0].mxu0 %v3724
        %v3896 = vpop.f32.mrb[0].mxu0
        %v3897 = vadd.f32 0.0, %v3896
        %v3898 = vpop.f32.mrb[0].mxu0
        %3899 = vmatprep.mubr.f32.mxu0 0.0
        %3900 = vmatmul.mubr.f32.gmra.mrb[0].mxu0 %v3727
        %v3901 = vpop.f32.mrb[0].mxu0
        %v3902 = vadd.f32 0.0, %v3901
        %v3903 = vpop.f32.mrb[0].mxu0
        %3904 = vmatprep.mubr.f32.mxu0 0.0
        %3905 = vmatmul.mubr.f32.gmra.mrb[0].mxu0 %v3730
        %v3906 = vpop.f32.mrb[0].mxu0
        %v3907 = vadd.f32 0.0, %v3906
        %v3908 = vpop.f32.mrb[0].mxu0
        %3909 = vmatprep.mubr.f32.mxu0 0.0
        %3910 = vmatmul.mubr.f32.gmra.mrb[0].mxu0 %v3733
        %v3911 = vpop.f32.mrb[0].mxu0
        %v3912 = vadd.f32 0.0, %v3911
        %v3913 = vpop.f32.mrb[0].mxu0
        %3914 = vmatprep.mubr.f32.mxu0 0.0
        %3915 = vmatmul.mubr.f32.gmra.mrb[0].mxu0 %v3736
        %v3916 = vpop.f32.mrb[0].mxu0
        %v3917 = vadd.f32 0.0, %v3916
        %v3918 = vpop.f32.mrb[0].mxu0
        %3919 = vmatprep.mubr.f32.mxu0 0.0
        %3920 = vmatmul.mubr.f32.gmra.mrb[0].mxu0 %v3739
        %v3921 = vpop.f32.mrb[0].mxu0
        %v3922 = vadd.f32 0.0, %v3921
        %v3923 = vpop.f32.mrb[0].mxu0
        %3924 = vmatprep.mubr.f32.mxu0 0.0
        %3925 = vmatmul.mubr.f32.gmra.mrb[0].mxu0 %v3742
        %v3926 = vpop.f32.mrb[0].mxu0
        %v3927 = vadd.f32 0.0, %v3926
        %v3928 = vpop.f32.mrb[0].mxu0
        %3929 = vmatprep.mubr.f32.mxu0 0.0
        %3930 = vmatmul.mubr.f32.gmra.mrb[0].mxu0 %v3745
        %v3931 = vpop.f32.mrb[0].mxu0
        %v3932 = vadd.f32 0.0, %v3931
        %v3933 = vpop.f32.mrb[0].mxu0
        %3934 = vmatprep.mubr.f32.mxu0 0.0
        %3935 = vmatmul.mubr.f32.gmra.mrb[0].mxu0 %v3748
        %v3936 = vpop.f32.mrb[0].mxu0
        %v3937 = vadd.f32 0.0, %v3936
        %v3938 = vpop.f32.mrb[0].mxu0
        %3939 = vmatprep.mubr.f32.mxu0 0.0
        %3940 = vmatmul.mubr.f32.gmra.mrb[0].mxu0 %v3751
        %v3941 = vpop.f32.mrb[0].mxu0
        %v3942 = vadd.f32 0.0, %v3941
        %v3943 = vpop.f32.mrb[0].mxu0
        %3944 = vmatprep.mubr.f32.mxu0 0.0
        %3945 = vmatmul.mubr.f32.gmra.mrb[0].mxu0 %v3754
        %v3946 = vpop.f32.mrb[0].mxu0
        %v3947 = vadd.f32 0.0, %v3946
        %v3948 = vpop.f32.mrb[0].mxu0
        %3949 = vmatprep.mubr.f32.mxu0 0.0
        %3950 = vmatmul.mubr.f32.gmra.mrb[0].mxu0 %v3757
        %v3951 = vpop.f32.mrb[0].mxu0
        %v3952 = vadd.f32 0.0, %v3951
        %v3953 = vpop.f32.mrb[0].mxu0
        %3954 = vmatprep.mubr.f32.mxu0 0.0
        %3955 = vmatmul.mubr.f32.gmra.mrb[0].mxu0 %v3760
        %v3956 = vpop.f32.mrb[0].mxu0
        %v3957 = vadd.f32 0.0, %v3956
        %v3958 = vpop.f32.mrb[0].mxu0
        %3959 = vmatprep.mubr.f32.mxu0 0.0
        %3960 = vmatmul.mubr.f32.gmra.mrb[0].mxu0 %v3763
        %v3961 = vpop.f32.mrb[0].mxu0
        %v3962 = vadd.f32 0.0, %v3961
        %v3963 = vpop.f32.mrb[0].mxu0
        %3964 = vmatprep.mubr.f32.mxu0 0.0
        %3965 = vmatmul.mubr.f32.gmra.mrb[0].mxu0 %v3766
        %v3966 = vpop.f32.mrb[0].mxu0
        %v3967 = vadd.f32 0.0, %v3966
        %v3968 = vpop.f32.mrb[0].mxu0
        %3969 = vmatprep.mubr.f32.mxu0 0.0
        %3970 = vmatmul.mubr.f32.gmra.mrb[0].mxu0 %v3769
        %v3971 = vpop.f32.mrb[0].mxu0
        %v3972 = vadd.f32 0.0, %v3971
        %v3973 = vpop.f32.mrb[0].mxu0
        %3974 = vmatprep.mubr.f32.mxu0 0.0
        %3975 = vmatmul.mubr.f32.gmra.mrb[0].mxu0 %v3772
        %v3976 = vpop.f32.mrb[0].mxu0
        %v3977 = vadd.f32 0.0, %v3976
        %v3978 = vpop.f32.mrb[0].mxu0
        %3979 = vmatprep.mubr.f32.mxu0 0.0
        %3980 = vmatmul.mubr.f32.gmra.mrb[0].mxu0 %v3775
        %v3981 = vpop.f32.mrb[0].mxu0
        %v3982 = vadd.f32 0.0, %v3981
        %v3983 = vpop.f32.mrb[0].mxu0
        %3984 = vmatprep.mubr.f32.mxu0 0.0
        %3985 = vmatmul.mubr.f32.gmra.mrb[0].mxu0 %v3778
        %v3986 = vpop.f32.mrb[0].mxu0
        %v3987 = vadd.f32 0.0, %v3986
        %v3988 = vpop.f32.mrb[0].mxu0
        %3989 = vmatprep.mubr.f32.mxu0 0.0
        %3990 = vmatmul.mubr.f32.gmra.mrb[0].mxu0 %v3781
        %v3991 = vpop.f32.mrb[0].mxu0
        %v3992 = vadd.f32 0.0, %v3991
        %v3993 = vpop.f32.mrb[0].mxu0
        %3994 = vmatprep.mubr.f32.mxu0 0.0
        %3995 = vmatmul.mubr.f32.gmra.mrb[0].mxu0 %v3784
        %v3996 = vpop.f32.mrb[0].mxu0
        %v3997 = vadd.f32 0.0, %v3996
        %v3998 = vpop.f32.mrb[0].mxu0
        %3999 = vmatprep.mubr.f32.mxu0 0.0
        %4000 = vmatmul.mubr.f32.gmra.mrb[0].mxu0 %v3787
        %v4001 = vpop.f32.mrb[0].mxu0
        %v4002 = vadd.f32 0.0, %v4001
        %v4003 = vpop.f32.mrb[0].mxu0
        %4004 = vmatprep.mubr.f32.mxu0 0.0
        %4005 = vmatmul.mubr.f32.gmra.mrb[0].mxu0 %v3790
        %v4006 = vpop.f32.mrb[0].mxu0
        %v4007 = vadd.f32 0.0, %v4006
        %v4008 = vpop.f32.mrb[0].mxu0
        %4009 = vmatprep.mubr.f32.mxu0 0.0
        %4010 = vmatmul.mubr.f32.gmra.mrb[0].mxu0 %v3793
        %v4011 = vpop.f32.mrb[0].mxu0
        %v4012 = vadd.f32 0.0, %v4011
        %v4013 = vpop.f32.mrb[0].mxu0
        %4014 = vmatprep.mubr.f32.mxu0 0.0
        %4015 = vmatmul.mubr.f32.gmra.mrb[0].mxu0 %v3796
        %v4016 = vpop.f32.mrb[0].mxu0
        %v4017 = vadd.f32 0.0, %v4016
        %v4018 = vpop.f32.mrb[0].mxu0
        %4019 = vmatprep.mubr.f32.mxu0 0.0
        %4020 = vmatmul.mubr.f32.gmra.mrb[0].mxu0 %v3799
        %v4021 = vpop.f32.mrb[0].mxu0
        %v4022 = vadd.f32 0.0, %v4021
        %v4023 = vpop.f32.mrb[0].mxu0
        %4024 = vmatprep.mubr.f32.mxu0 0.0
        %4025 = vmatmul.mubr.f32.gmra.mrb[0].mxu0 %v3802
        %v4026 = vpop.f32.mrb[0].mxu0
        %v4027 = vadd.f32 0.0, %v4026
        %v4028 = vpop.f32.mrb[0].mxu0
        %4029 = vmatprep.mubr.f32.mxu0 0.0
        %4030 = vmatmul.mubr.f32.gmra.mrb[0].mxu0 %v3805
        %v4031 = vpop.f32.mrb[0].mxu0
        %v4032 = vadd.f32 0.0, %v4031
        %v4033 = vpop.f32.mrb[0].mxu0
        %4034 = vdwg.mxu0
        %v4035 = vsel %vm261, %v3877, 0.0
        %v4036 = vsel %vm261, %v3882, 0.0
        %v4037 = vadd.f32 %v4035, %v4036
        %v4038 = vsel %vm261, %v3887, 0.0
        %v4039 = vadd.f32 %v4037, %v4038
        %v4040 = vsel %vm261, %v3892, 0.0
        %v4041 = vadd.f32 %v4039, %v4040
        %v4042 = vsel %vm261, %v3897, 0.0
        %v4043 = vadd.f32 %v4041, %v4042
        %v4044 = vsel %vm261, %v3902, 0.0
        %v4045 = vadd.f32 %v4043, %v4044
        %v4046 = vsel %vm261, %v3907, 0.0
        %v4047 = vadd.f32 %v4045, %v4046
        %v4048 = vsel %vm261, %v3912, 0.0
        %v4049 = vadd.f32 %v4047, %v4048
        %v4050 = vsel %vm261, %v3917, 0.0
        %v4051 = vadd.f32 %v4049, %v4050
        %v4052 = vsel %vm261, %v3922, 0.0
        %v4053 = vadd.f32 %v4051, %v4052
        %v4054 = vsel %vm261, %v3927, 0.0
        %v4055 = vadd.f32 %v4053, %v4054
        %v4056 = vsel %vm261, %v3932, 0.0
        %v4057 = vadd.f32 %v4055, %v4056
        %v4058 = vsel %vm261, %v3937, 0.0
        %v4059 = vadd.f32 %v4057, %v4058
        %v4060 = vsel %vm261, %v3942, 0.0
        %v4061 = vadd.f32 %v4059, %v4060
        %v4062 = vsel %vm261, %v3947, 0.0
        %v4063 = vadd.f32 %v4061, %v4062
        %v4064 = vsel %vm261, %v3952, 0.0
        %v4065 = vadd.f32 %v4063, %v4064
        %v4066 = vsel %vm261, %v3957, 0.0
        %v4067 = vadd.f32 %v4065, %v4066
        %v4068 = vsel %vm261, %v3962, 0.0
        %v4069 = vadd.f32 %v4067, %v4068
        %v4070 = vsel %vm261, %v3967, 0.0
        %v4071 = vadd.f32 %v4069, %v4070
        %v4072 = vsel %vm261, %v3972, 0.0
        %v4073 = vadd.f32 %v4071, %v4072
        %v4074 = vsel %vm261, %v3977, 0.0
        %v4075 = vadd.f32 %v4073, %v4074
        %v4076 = vsel %vm261, %v3982, 0.0
        %v4077 = vadd.f32 %v4075, %v4076
        %v4078 = vsel %vm261, %v3987, 0.0
        %v4079 = vadd.f32 %v4077, %v4078
        %v4080 = vsel %vm261, %v3992, 0.0
        %v4081 = vadd.f32 %v4079, %v4080
        %v4082 = vsel %vm261, %v3997, 0.0
        %v4083 = vadd.f32 %v4081, %v4082
        %v4084 = vsel %vm261, %v4002, 0.0
        %v4085 = vadd.f32 %v4083, %v4084
        %v4086 = vsel %vm261, %v4007, 0.0
        %v4087 = vadd.f32 %v4085, %v4086
        %v4088 = vsel %vm261, %v4012, 0.0
        %v4089 = vadd.f32 %v4087, %v4088
        %v4090 = vsel %vm261, %v4017, 0.0
        %v4091 = vadd.f32 %v4089, %v4090
        %v4092 = vsel %vm261, %v4022, 0.0
        %v4093 = vadd.f32 %v4091, %v4092
        %v4094 = vsel %vm261, %v4027, 0.0
        %v4095 = vadd.f32 %v4093, %v4094
        %v4096 = vsel %vm261, %v4032, 0.0
        %v4097 = vadd.f32 %v4095, %v4096
        %v4098 = vrot.slane %v4097, 4
        %v4099 = vadd.f32 %v4097, %v4098
        %v4100 = vrot.slane %v4099, 2
        %v4101 = vadd.f32 %v4099, %v4100
        %v4102 = vrot.slane %v4101, 1
        %v4103 = vadd.f32 %v4101, %v4102
        %v4104 = vmul.f32 %v4103, 0.00390625
        %v4105 = vmul.f32 %v3877, %v3877
        %v4106 = vmul.f32 %v3882, %v3882
        %v4107 = vmul.f32 %v3887, %v3887
        %v4108 = vmul.f32 %v3892, %v3892
        %v4109 = vmul.f32 %v3897, %v3897
        %v4110 = vmul.f32 %v3902, %v3902
        %v4111 = vmul.f32 %v3907, %v3907
        %v4112 = vmul.f32 %v3912, %v3912
        %v4113 = vmul.f32 %v3917, %v3917
        %v4114 = vmul.f32 %v3922, %v3922
        %v4115 = vmul.f32 %v3927, %v3927
        %v4116 = vmul.f32 %v3932, %v3932
        %v4117 = vmul.f32 %v3937, %v3937
        %v4118 = vmul.f32 %v3942, %v3942
        %v4119 = vmul.f32 %v3947, %v3947
        %v4120 = vmul.f32 %v3952, %v3952
        %v4121 = vmul.f32 %v3957, %v3957
        %v4122 = vmul.f32 %v3962, %v3962
        %v4123 = vmul.f32 %v3967, %v3967
        %v4124 = vmul.f32 %v3972, %v3972
        %v4125 = vmul.f32 %v3977, %v3977
        %v4126 = vmul.f32 %v3982, %v3982
        %v4127 = vmul.f32 %v3987, %v3987
        %v4128 = vmul.f32 %v3992, %v3992
        %v4129 = vmul.f32 %v3997, %v3997
        %v4130 = vmul.f32 %v4002, %v4002
        %v4131 = vmul.f32 %v4007, %v4007
        %v4132 = vmul.f32 %v4012, %v4012
        %v4133 = vmul.f32 %v4017, %v4017
        %v4134 = vmul.f32 %v4022, %v4022
        %v4135 = vmul.f32 %v4027, %v4027
        %v4136 = vmul.f32 %v4032, %v4032
        %v4137 = vsel %vm261, %v4105, 0.0
        %v4138 = vsel %vm261, %v4106, 0.0
        %v4139 = vadd.f32 %v4137, %v4138
        %v4140 = vsel %vm261, %v4107, 0.0
        %v4141 = vadd.f32 %v4139, %v4140
        %v4142 = vsel %vm261, %v4108, 0.0
        %v4143 = vadd.f32 %v4141, %v4142
        %v4144 = vsel %vm261, %v4109, 0.0
        %v4145 = vadd.f32 %v4143, %v4144
        %v4146 = vsel %vm261, %v4110, 0.0
        %v4147 = vadd.f32 %v4145, %v4146
        %v4148 = vsel %vm261, %v4111, 0.0
        %v4149 = vadd.f32 %v4147, %v4148
        %v4150 = vsel %vm261, %v4112, 0.0
        %v4151 = vadd.f32 %v4149, %v4150
        %v4152 = vsel %vm261, %v4113, 0.0
        %v4153 = vadd.f32 %v4151, %v4152
        %v4154 = vsel %vm261, %v4114, 0.0
        %v4155 = vadd.f32 %v4153, %v4154
        %v4156 = vsel %vm261, %v4115, 0.0
        %v4157 = vadd.f32 %v4155, %v4156
        %v4158 = vsel %vm261, %v4116, 0.0
        %v4159 = vadd.f32 %v4157, %v4158
        %v4160 = vsel %vm261, %v4117, 0.0
        %v4161 = vadd.f32 %v4159, %v4160
        %v4162 = vsel %vm261, %v4118, 0.0
        %v4163 = vadd.f32 %v4161, %v4162
        %v4164 = vsel %vm261, %v4119, 0.0
        %v4165 = vadd.f32 %v4163, %v4164
        %v4166 = vsel %vm261, %v4120, 0.0
        %v4167 = vadd.f32 %v4165, %v4166
        %v4168 = vsel %vm261, %v4121, 0.0
        %v4169 = vadd.f32 %v4167, %v4168
        %v4170 = vsel %vm261, %v4122, 0.0
        %v4171 = vadd.f32 %v4169, %v4170
        %v4172 = vsel %vm261, %v4123, 0.0
        %v4173 = vadd.f32 %v4171, %v4172
        %v4174 = vsel %vm261, %v4124, 0.0
        %v4175 = vadd.f32 %v4173, %v4174
        %v4176 = vsel %vm261, %v4125, 0.0
        %v4177 = vadd.f32 %v4175, %v4176
        %v4178 = vsel %vm261, %v4126, 0.0
        %v4179 = vadd.f32 %v4177, %v4178
        %v4180 = vsel %vm261, %v4127, 0.0
        %v4181 = vadd.f32 %v4179, %v4180
        %v4182 = vsel %vm261, %v4128, 0.0
        %v4183 = vadd.f32 %v4181, %v4182
        %v4184 = vsel %vm261, %v4129, 0.0
        %v4185 = vadd.f32 %v4183, %v4184
        %v4186 = vsel %vm261, %v4130, 0.0
        %v4187 = vadd.f32 %v4185, %v4186
        %v4188 = vsel %vm261, %v4131, 0.0
        %v4189 = vadd.f32 %v4187, %v4188
        %v4190 = vsel %vm261, %v4132, 0.0
        %v4191 = vadd.f32 %v4189, %v4190
        %v4192 = vsel %vm261, %v4133, 0.0
        %v4193 = vadd.f32 %v4191, %v4192
        %v4194 = vsel %vm261, %v4134, 0.0
        %v4195 = vadd.f32 %v4193, %v4194
        %v4196 = vsel %vm261, %v4135, 0.0
        %v4197 = vadd.f32 %v4195, %v4196
        %v4198 = vsel %vm261, %v4136, 0.0
        %v4199 = vadd.f32 %v4197, %v4198
        %v4200 = vrot.slane %v4199, 4
        %v4201 = vadd.f32 %v4199, %v4200
        %v4202 = vrot.slane %v4201, 2
        %v4203 = vadd.f32 %v4201, %v4202
        %v4204 = vrot.slane %v4203, 1
        %v4205 = vadd.f32 %v4203, %v4204
        %v4206 = vmul.f32 %v4205, 0.00390625
        %v4207 = vmul.f32 %v4104, %v4104
        %v4208 = vsub.f32 %v4206, %v4207
        %v4209 = vsub.f32 %v3877, %v4104
        %v4210 = vsub.f32 %v3882, %v4104
        %v4211 = vsub.f32 %v3887, %v4104
        %v4212 = vsub.f32 %v3892, %v4104
        %v4213 = vsub.f32 %v3897, %v4104
        %v4214 = vsub.f32 %v3902, %v4104
        %v4215 = vsub.f32 %v3907, %v4104
        %v4216 = vsub.f32 %v3912, %v4104
        %v4217 = vsub.f32 %v3917, %v4104
        %v4218 = vsub.f32 %v3922, %v4104
        %v4219 = vsub.f32 %v3927, %v4104
        %v4220 = vsub.f32 %v3932, %v4104
        %v4221 = vsub.f32 %v3937, %v4104
        %v4222 = vsub.f32 %v3942, %v4104
        %v4223 = vsub.f32 %v3947, %v4104
        %v4224 = vsub.f32 %v3952, %v4104
        %v4225 = vsub.f32 %v3957, %v4104
        %v4226 = vsub.f32 %v3962, %v4104
        %v4227 = vsub.f32 %v3967, %v4104
        %v4228 = vsub.f32 %v3972, %v4104
        %v4229 = vsub.f32 %v3977, %v4104
        %v4230 = vsub.f32 %v3982, %v4104
        %v4231 = vsub.f32 %v3987, %v4104
        %v4232 = vsub.f32 %v3992, %v4104
        %v4233 = vsub.f32 %v3997, %v4104
        %v4234 = vsub.f32 %v4002, %v4104
        %v4235 = vsub.f32 %v4007, %v4104
        %v4236 = vsub.f32 %v4012, %v4104
        %v4237 = vsub.f32 %v4017, %v4104
        %v4238 = vsub.f32 %v4022, %v4104
        %v4239 = vsub.f32 %v4027, %v4104
        %v4240 = vsub.f32 %v4032, %v4104
        %v4241 = vadd.f32 %v4208, 1e-05
        %v4242 = vrsqrt.pop %v4241
        %v4243 = vmul.f32 %v4209, %v4242
        %v4244 = vmul.f32 %v4210, %v4242
        %v4245 = vmul.f32 %v4211, %v4242
        %v4246 = vmul.f32 %v4212, %v4242
        %v4247 = vmul.f32 %v4213, %v4242
        %v4248 = vmul.f32 %v4214, %v4242
        %v4249 = vmul.f32 %v4215, %v4242
        %v4250 = vmul.f32 %v4216, %v4242
        %v4251 = vmul.f32 %v4217, %v4242
        %v4252 = vmul.f32 %v4218, %v4242
        %v4253 = vmul.f32 %v4219, %v4242
        %v4254 = vmul.f32 %v4220, %v4242
        %v4255 = vmul.f32 %v4221, %v4242
        %v4256 = vmul.f32 %v4222, %v4242
        %v4257 = vmul.f32 %v4223, %v4242
        %v4258 = vmul.f32 %v4224, %v4242
        %v4259 = vmul.f32 %v4225, %v4242
        %v4260 = vmul.f32 %v4226, %v4242
        %v4261 = vmul.f32 %v4227, %v4242
        %v4262 = vmul.f32 %v4228, %v4242
        %v4263 = vmul.f32 %v4229, %v4242
        %v4264 = vmul.f32 %v4230, %v4242
        %v4265 = vmul.f32 %v4231, %v4242
        %v4266 = vmul.f32 %v4232, %v4242
        %v4267 = vmul.f32 %v4233, %v4242
        %v4268 = vmul.f32 %v4234, %v4242
        %v4269 = vmul.f32 %v4235, %v4242
        %v4270 = vmul.f32 %v4236, %v4242
        %v4271 = vmul.f32 %v4237, %v4242
        %v4272 = vmul.f32 %v4238, %v4242
        %v4273 = vmul.f32 %v4239, %v4242
        %v4274 = vmul.f32 %v4240, %v4242
        %v4275 = vadd.f32 %v218, %v4243
        %v4276 = vadd.f32 %v219, %v4244
        %v4277 = vadd.f32 %v220, %v4245
        %v4278 = vadd.f32 %v221, %v4246
        %v4279 = vadd.f32 %v222, %v4247
        %v4280 = vadd.f32 %v223, %v4248
        %v4281 = vadd.f32 %v224, %v4249
        %v4282 = vadd.f32 %v225, %v4250
        %v4283 = vadd.f32 %v226, %v4251
        %v4284 = vadd.f32 %v227, %v4252
        %v4285 = vadd.f32 %v228, %v4253
        %v4286 = vadd.f32 %v229, %v4254
        %v4287 = vadd.f32 %v230, %v4255
        %v4288 = vadd.f32 %v231, %v4256
        %v4289 = vadd.f32 %v232, %v4257
        %v4290 = vadd.f32 %v233, %v4258
        %v4291 = vadd.f32 %v234, %v4259
        %v4292 = vadd.f32 %v235, %v4260
        %v4293 = vadd.f32 %v236, %v4261
        %v4294 = vadd.f32 %v237, %v4262
        %v4295 = vadd.f32 %v238, %v4263
        %v4296 = vadd.f32 %v239, %v4264
        %v4297 = vadd.f32 %v240, %v4265
        %v4298 = vadd.f32 %v241, %v4266
        %v4299 = vadd.f32 %v242, %v4267
        %v4300 = vadd.f32 %v243, %v4268
        %v4301 = vadd.f32 %v244, %v4269
        %v4302 = vadd.f32 %v245, %v4270
        %v4303 = vadd.f32 %v246, %v4271
        %v4304 = vadd.f32 %v247, %v4272
        %v4305 = vadd.f32 %v248, %v4273
        %v4306 = vadd.f32 %v249, %v4274
        %4307 = vst.msk [vmem:[%s217] sm:$0xff] %vm261, %v4275
        %4308 = vst.msk [vmem:[%s217 + $0x8] sm:$0xff] %vm261, %v4276
        %4309 = vst.msk [vmem:[%s217 + $0x10] sm:$0xff] %vm261, %v4277
        %4310 = vst.msk [vmem:[%s217 + $0x18] sm:$0xff] %vm261, %v4278
        %4311 = vst.msk [vmem:[%s217 + $0x20] sm:$0xff] %vm261, %v4279
        %4312 = vst.msk [vmem:[%s217 + $0x28] sm:$0xff] %vm261, %v4280
        %4313 = vst.msk [vmem:[%s217 + $0x30] sm:$0xff] %vm261, %v4281
        %4314 = vst.msk [vmem:[%s217 + $0x38] sm:$0xff] %vm261, %v4282
        %4315 = vst.msk [vmem:[%s217 + $0x40] sm:$0xff] %vm261, %v4283
        %4316 = vst.msk [vmem:[%s217 + $0x48] sm:$0xff] %vm261, %v4284
        %4317 = vst.msk [vmem:[%s217 + $0x50] sm:$0xff] %vm261, %v4285
        %4318 = vst.msk [vmem:[%s217 + $0x58] sm:$0xff] %vm261, %v4286
        %4319 = vst.msk [vmem:[%s217 + $0x60] sm:$0xff] %vm261, %v4287
        %4320 = vst.msk [vmem:[%s217 + $0x68] sm:$0xff] %vm261, %v4288
        %4321 = vst.msk [vmem:[%s217 + $0x70] sm:$0xff] %vm261, %v4289
        %4322 = vst.msk [vmem:[%s217 + $0x78] sm:$0xff] %vm261, %v4290
        %4323 = vst.msk [vmem:[%s217 + $0x80] sm:$0xff] %vm261, %v4291
        %4324 = vst.msk [vmem:[%s217 + $0x88] sm:$0xff] %vm261, %v4292
        %4325 = vst.msk [vmem:[%s217 + $0x90] sm:$0xff] %vm261, %v4293
        %4326 = vst.msk [vmem:[%s217 + $0x98] sm:$0xff] %vm261, %v4294
        %4327 = vst.msk [vmem:[%s217 + $0xa0] sm:$0xff] %vm261, %v4295
        %4328 = vst.msk [vmem:[%s217 + $0xa8] sm:$0xff] %vm261, %v4296
        %4329 = vst.msk [vmem:[%s217 + $0xb0] sm:$0xff] %vm261, %v4297
        %4330 = vst.msk [vmem:[%s217 + $0xb8] sm:$0xff] %vm261, %v4298
        %4331 = vst.msk [vmem:[%s217 + $0xc0] sm:$0xff] %vm261, %v4299
        %4332 = vst.msk [vmem:[%s217 + $0xc8] sm:$0xff] %vm261, %v4300
        %4333 = vst.msk [vmem:[%s217 + $0xd0] sm:$0xff] %vm261, %v4301
        %4334 = vst.msk [vmem:[%s217 + $0xd8] sm:$0xff] %vm261, %v4302
        %4335 = vst.msk [vmem:[%s217 + $0xe0] sm:$0xff] %vm261, %v4303
        %4336 = vst.msk [vmem:[%s217 + $0xe8] sm:$0xff] %vm261, %v4304
        %4337 = vst.msk [vmem:[%s217 + $0xf0] sm:$0xff] %vm261, %v4305
        %4338 = vst.msk [vmem:[%s217 + $0xf8] sm:$0xff] %vm261, %v4306
        %s4339 = sand.u32 %s97, 1
        %s4340 = scalar_lea.sflag [#allocation5], %s4339
        %s4341 = sand.u32 %s97, 1
        %s4342 = smul.addr %s4341, 256
        %s4343 = scalar_lea.vmem [#allocation9], %s4342
        // Predicated region
        $region45: #{tpu_custom_call.1} parent=31 // pred_check
          %p4344 = pneg %p107
        $region46: #{tpu_custom_call.1} parent=31 // pred_check_branch
          %4346 = sbr.rel (%p4344) target = $region48
        $region47: #{tpu_custom_call.1} parent=31 // pred_region
          %s4348 = ssub.s32 4096, 4096
          %4349 = vsyncadd %s4340, %s4348
          %s4350 = smul.addr %s21, 32
          %s4351 = smul.addr %s4350, 128
          %s4352 = scalar_lea.hbm %s3, %s4351
          %s4353 = sshll.u32 %s4343, 4
          %s4354 = int_to_ptr.vmem [resolvable:$true] %s4353
          %4359 = dma.vmem_to_hbm [thread:$0]  %s4354, 4096, %s4352, %s4340, 128, 128, 8
        $region48: #{tpu_custom_call.1} parent=31 // pred_fallthru
          _
      $region32: #{tpu_custom_call.1} parent=5 // pred_fallthru
        _
      %p4360 = scmp.le.s32.totalorder 2, %s16
      // Predicated region
      $region49: #{tpu_custom_call.1} parent=5 // pred_check
        %p4361 = pneg %p4360
      $region50: #{tpu_custom_call.1} parent=5 // pred_check_branch
        %4363 = sbr.rel (%p4361) target = $region52
      $region51: #{tpu_custom_call.1} parent=5 // pred_region
        %s4364 = ssub.s32 %s16, 2
        // Predicated region
        $region53: #{tpu_custom_call.1} parent=51 // pred_check
          %p4365 = pneg %p113
        $region54: #{tpu_custom_call.1} parent=51 // pred_check_branch
          %4367 = sbr.rel (%p4365) target = $region56
        $region55: #{tpu_custom_call.1} parent=51 // pred_region
          %s4368 = sand.u32 %s98, 1
          %s4369 = scalar_lea.sflag [#allocation5], %s4368
          %s4370 = sand.u32 %s98, 1
          %s4371 = smul.addr %s4370, 256
          %s4372 = scalar_lea.vmem [#allocation9], %s4371
          %4373 = dma.done %s4369, 4096
        $region56: #{tpu_custom_call.1} parent=51 // pred_fallthru
          _
      $region52: #{tpu_custom_call.1} parent=5 // pred_fallthru
        _
    $region6: #{tpu_custom_call.1} parent=1 // loop_footer
      %s20 = sadd.s32 1, %s16
    $region7: #{tpu_custom_call.1} parent=1 // loop_footer_branch
      %15 = sbr.rel target = $region3
    $region8: #{tpu_custom_call.1} parent=1 // loop_exit
      _
    %4374 = vsyncpa [#allocation4], 1
    %s4375 = scalar_lea.sflag [#allocation4], 1
    %4376 = vsyncpa %s4375, 1
    %4377 = vsyncpa [#allocation7], 1
    %4378 = vsyncpa [#allocation5], 1
    %s4379 = scalar_lea.sflag [#allocation5], 1
    %4380 = vsyncpa %s4379, 1

</llo_original>
